<compile_context>
chip_gen: v6e
topology: v6e:2x2x1
jax: 0.10.0
libtpu: 0.0.40
codegen_flags: <defaults>
</compile_context>

<pallas_src>
import math

import jax
import jax.numpy as jnp
from jax import lax
from jax.experimental import pallas as pl
from jax.experimental.pallas import tpu as pltpu


def _round_up(x, m):
    return ((x + m - 1) // m) * m


def _vmem_capacity_bytes():
    try:
        return int(pltpu.get_tpu_info().vmem_capacity_bytes)
    except Exception:
        return 64 << 20          # conservative default (v7x per-TensorCore)


# --------------------- in-kernel stateless RNG helpers ----------------------

def _uniform01(shape, base, stream):
    """Uniforms in [0, 1) from a per-element counter hash (TPU + interpret safe)."""
    r = lax.broadcasted_iota(jnp.int32, shape, 0).astype(jnp.uint32)
    c = lax.broadcasted_iota(jnp.int32, shape, 1).astype(jnp.uint32)
    x = (r * jnp.uint32(shape[1]) + c) * jnp.uint32(0x9E3779B9)
    x = x + base + jnp.uint32(stream) * jnp.uint32(0x6A09E667)
    # lowbias32 finalizer
    x = (x ^ (x >> 16)) * jnp.uint32(0x7FEB352D)
    x = (x ^ (x >> 15)) * jnp.uint32(0x846CA68B)
    x = x ^ (x >> 16)
    # top 24 bits -> [0, 1)
    return (x >> 8).astype(jnp.int32).astype(jnp.float32) * jnp.float32(1.0 / (1 << 24))


# ------------------------------ Pallas kernel -------------------------------

def _make_encoder_kernel(r_inner, tm, l_pad):
    def kernel(seed_ref, sigma_ref,                     # scalar prefetch (SMEM)
               x_ref, w1_ref, b1_ref, w2_ref, b2_ref, w3_ref, b3_ref,
               out_ref):
        i = pl.program_id(0)          # row-tile index
        ro = pl.program_id(1)         # outer-repeat index
        n_ro = pl.num_programs(1)

        m = r_inner * tm              # rows fed to the MXU this step (even)
        d = x_ref.shape[1]

        # Distinct hash stream per (row-tile, outer-repeat) grid cell.
        base = (seed_ref[0].astype(jnp.uint32) * jnp.uint32(0x85EBCA6B)
                + (i * n_ro + ro + 1).astype(jnp.uint32) * jnp.uint32(0xC2B2AE35))

        # Box-Muller using BOTH outputs: one log/sqrt/cos/sin per two samples.
        half = (m // 2, d)
        u1 = 1.0 - _uniform01(half, base, 0)                 # (0, 1]
        u2 = _uniform01(half, base, 1)                        # [0, 1)
        rad = jnp.sqrt(-2.0 * jnp.log(u1)) * sigma_ref[0]     # sigma folded in for free
        ang = jnp.float32(2.0 * math.pi) * u2
        noise = jnp.concatenate([rad * jnp.cos(ang), rad * jnp.sin(ang)], axis=0)

        # Fold repeats into the matmul M dimension: replicate the bf16 row tile
        # r_inner times and run ONE fc1/fc2/fc3 chain over (r_inner*tm) rows.
        # TODO(synk): mask/skip the noise transcendentals for padded rows when
        # B is far below the sublane multiple (they are sliced off anyway).
        lhs = jnp.tile(x_ref[...], (r_inner, 1)) + noise.astype(jnp.bfloat16)

        h = jnp.dot(lhs, w1_ref[...], preferred_element_type=jnp.float32) + b1_ref[...]
        h = jnp.maximum(h, 0.0).astype(jnp.bfloat16)
        h = jnp.dot(h, w2_ref[...], preferred_element_type=jnp.float32) + b2_ref[...]
        h = jnp.maximum(h, 0.0).astype(jnp.bfloat16)
        z = jnp.dot(h, w3_ref[...], preferred_element_type=jnp.float32) + b3_ref[...]

        out_ref[...] = z.reshape(r_inner, tm, l_pad).astype(out_ref.dtype)

    return kernel


# ------------------------------ model wrapper -------------------------------

class PallasEncoder:
    """Pallas port of the PyTorch Encoder (forward pass only)."""

    def __init__(self, channels_in, size_in, n_latent, n_dims, key):
        self.n_dims_in = channels_in * size_in * size_in
        self.n_latent = n_latent
        self.n_dims = n_dims

        # Lane/MXU-friendly padded widths (zero padding -> numerically exact).
        self.d_pad = _round_up(self.n_dims_in, 128)
        self.h_pad = _round_up(n_dims, 128)
        self.l_pad = _round_up(n_latent, 128)

        k1, k2, k3 = jax.random.split(key, 3)
        self.w1, self.b1 = self._linear(k1, self.n_dims_in, n_dims, self.d_pad, self.h_pad)
        self.w2, self.b2 = self._linear(k2, n_dims, n_dims, self.h_pad, self.h_pad)
        self.w3, self.b3 = self._linear(k3, n_dims, n_latent, self.h_pad, self.l_pad)

    @staticmethod
    def _linear(key, fan_in, fan_out, in_pad, out_pad):
        # nn.Linear default init U(-1/sqrt(fan_in), 1/sqrt(fan_in)); stored (in, out).
        kw, kb = jax.random.split(key)
        bound = 1.0 / math.sqrt(fan_in)
        w = jax.random.uniform(kw, (fan_in, fan_out), jnp.float32, -bound, bound)
        b = jax.random.uniform(kb, (fan_out,), jnp.float32, -bound, bound)
        w = jnp.pad(w, ((0, in_pad - fan_in), (0, out_pad - fan_out)))
        b = jnp.pad(b, (0, out_pad - fan_out)).reshape(1, out_pad)
        return w.astype(jnp.bfloat16), b           # weights bf16 (MXU), biases f32

    def forward(self, x, repeats, noise_sigma, noise_seed):
        assert repeats >= 1
        B = x.shape[0]
        flat = x.reshape(B, self.n_dims_in).astype(jnp.bfloat16)   # bf16 halves x DMA

        # Row tile: push the MXU M-dim toward 256 when B allows; multiple of 8.
        tm = min(256, _round_up(B, 8))
        b_pad = _round_up(B, tm)
        xp = jnp.pad(flat, ((0, b_pad - B), (0, self.d_pad - self.n_dims_in)))
        n_row_tiles = b_pad // tm

        # Fold as many repeats as possible into the matmul M dim (cap M ~1024),
        # then keep >= 2 grid steps so both v7x TensorCores get work.
        r_inner = 1
        for cand in range(1, repeats + 1):
            if repeats % cand == 0 and (cand == 1 or cand * tm <= 1024):
                r_inner = cand
        if n_row_tiles * (repeats // r_inner) < 2 and r_inner % 2 == 0:
            r_inner //= 2
        r_outer = repeats // r_inner

        grid = (n_row_tiles, r_outer)
        seed_arr = jnp.asarray([noise_seed], jnp.int32)
        sigma_arr = jnp.asarray([noise_sigma], jnp.float32)

        # Generation-aware VMEM budget: single-buffered resident weights, double-
        # buffered x/out tiles, plus in-kernel temporaries; capped at 75% of the
        # chip's per-core VMEM (48 MiB on v7x, 96 MiB on v5e/v6e).
        m_rows = r_inner * tm
        weight_bytes = 2 * (self.d_pad * self.h_pad + self.h_pad * self.h_pad
                            + self.h_pad * self.l_pad) + 4 * (2 * self.h_pad + self.l_pad)
        tile_bytes = 2 * (2 * tm * self.d_pad) + 2 * (4 * m_rows * self.l_pad)
        temp_bytes = m_rows * self.d_pad * (4 + 4 + 2) + 2 * (4 * m_rows * self.h_pad)
        est = weight_bytes + tile_bytes + temp_bytes + (8 << 20)
        vmem_limit = int(min(max(est, 32 << 20), (_vmem_capacity_bytes() * 3) // 4))

        def _resident(shape):
            # Constant block index -> never re-fetched; request single buffering
            # to halve the resident-weight VMEM footprint (matters on v7x).
            if hasattr(pl, "Buffered"):
                try:
                    return pl.BlockSpec(shape, lambda i, r, *_: (0, 0),
                                        pipeline_mode=pl.Buffered(1))
                except TypeError:
                    pass
            return pl.BlockSpec(shape, lambda i, r, *_: (0, 0))

        kernel = _make_encoder_kernel(r_inner, tm, self.l_pad)

        # TODO(synk): for very large d_pad*h_pad (approaching ~half of v7x's 64 MiB
        # VMEM), add an innermost "arbitrary" K-reduction grid axis for fc1 with a
        # (m_rows, h_pad) f32 accumulator and pl.when init/finalize.
        out = pl.pallas_call(
            kernel,
            out_shape=jax.ShapeDtypeStruct((repeats, b_pad, self.l_pad), jnp.float32),
            grid_spec=pltpu.PrefetchScalarGridSpec(
                num_scalar_prefetch=2,
                grid=grid,
                in_specs=[
                    # x: block index ignores the repeat axis -> each row tile DMA'd once.
                    pl.BlockSpec((tm, self.d_pad), lambda i, r, *_: (i, 0)),
                    _resident((self.d_pad, self.h_pad)),
                    _resident((1, self.h_pad)),
                    _resident((self.h_pad, self.h_pad)),
                    _resident((1, self.h_pad)),
                    _resident((self.h_pad, self.l_pad)),
                    _resident((1, self.l_pad)),
                ],
                out_specs=pl.BlockSpec((r_inner, tm, self.l_pad),
                                       lambda i, r, *_: (r, i, 0)),
            ),
            compiler_params=pltpu.CompilerParams(
                dimension_semantics=("parallel", "parallel"),
                vmem_limit_bytes=vmem_limit),
        )(seed_arr, sigma_arr, xp,
          self.w1, self.b1, self.w2, self.b2, self.w3, self.b3)

        # (repeats, b_pad, l_pad) -> (B, repeats, n_latent); padded cols are exactly 0.
        z = jnp.transpose(out, (1, 0, 2))[:B, :, :self.n_latent]
        return z


def _reference_encode(enc, x, repeats):
    """Pure-JAX reference with the same bf16-matmul / f32-accumulate numerics (sigma=0)."""
    B = x.shape[0]
    flat = x.reshape(B, enc.n_dims_in).astype(jnp.float32)
    rep = jnp.repeat(flat[:, None, :], repeats, axis=1).reshape(B * repeats, enc.n_dims_in)
    w1, b1 = enc.w1[:enc.n_dims_in, :enc.n_dims], enc.b1[:, :enc.n_dims]
    w2, b2 = enc.w2[:enc.n_dims, :enc.n_dims], enc.b2[:, :enc.n_dims]
    w3, b3 = enc.w3[:enc.n_dims, :enc.n_latent], enc.b3[:, :enc.n_latent]
    h = jnp.dot(rep.astype(jnp.bfloat16), w1, preferred_element_type=jnp.float32) + b1
    h = jnp.maximum(h, 0.0)
    h = jnp.dot(h.astype(jnp.bfloat16), w2, preferred_element_type=jnp.float32) + b2
    h = jnp.maximum(h, 0.0)
    z = jnp.dot(h.astype(jnp.bfloat16), w3, preferred_element_type=jnp.float32) + b3
    return z.reshape(B, repeats, enc.n_latent)


if __name__ == "__main__":
    key = jax.random.PRNGKey(0)
    k_param, k_x = jax.random.split(key)

    B, C, S = 2, 4, 16                      # x: B x C x H x W
    n_latent, n_dims = 8, 32
    repeats, noise_sigma = 4, 0.1

    enc = PallasEncoder(C, S, n_latent, n_dims, k_param)
    x = jax.random.uniform(k_x, (B, C, S, S), jnp.float32)

    # Forward with noise (as in the torch module).
    z = enc.forward(x, repeats, noise_sigma, noise_seed=1234)
    jax.block_until_ready(z)
    assert z.shape == (B, repeats, n_latent)
    assert bool(jnp.all(jnp.isfinite(z)))

    # Deterministic check (sigma = 0) against a pure-JAX reference.
    z0 = enc.forward(x, repeats, 0.0, noise_seed=0)
    z_ref = _reference_encode(enc, x, repeats)
    assert jnp.allclose(z0, z_ref, atol=5e-2, rtol=5e-2), \
        float(jnp.max(jnp.abs(z0 - z_ref)))

    print("KERNEL_OK")
</pallas_src>

<mosaic_0001>
module attributes {stable_mosaic.version = 11 : i64} {
  func.func @kernel(%arg0: i32, %arg1: i32, %arg2: memref<1xi32, #tpu.memory_space<smem>>, %arg3: memref<1xf32, #tpu.memory_space<smem>>, %arg4: memref<8x1024xbf16, #tpu.memory_space<vmem>>, %arg5: memref<1024x128xbf16, #tpu.memory_space<vmem>>, %arg6: memref<1x128xf32, #tpu.memory_space<vmem>>, %arg7: memref<128x128xbf16, #tpu.memory_space<vmem>>, %arg8: memref<1x128xf32, #tpu.memory_space<vmem>>, %arg9: memref<128x128xbf16, #tpu.memory_space<vmem>>, %arg10: memref<1x128xf32, #tpu.memory_space<vmem>>, %arg11: memref<2x8x128xf32, #tpu.memory_space<vmem>>) attributes {dimension_semantics = [#tpu.dimension_semantics<parallel>, #tpu.dimension_semantics<parallel>], iteration_bounds = array<i64: 1, 2>, scalar_prefetch = 2 : i64, scratch_operands = 0 : i64, tpu.core_type = #tpu.core_type<tc>, window_params = [{transform_indices = @transform_0, window_bounds = array<i64: 8, 1024>}, {pipeline_mode = #tpu.pipeline_mode<synchronous>, transform_indices = @transform_1, window_bounds = array<i64: 1024, 128>}, {pipeline_mode = #tpu.pipeline_mode<synchronous>, transform_indices = @transform_2, window_bounds = array<i64: 1, 128>}, {pipeline_mode = #tpu.pipeline_mode<synchronous>, transform_indices = @transform_3, window_bounds = array<i64: 128, 128>}, {pipeline_mode = #tpu.pipeline_mode<synchronous>, transform_indices = @transform_4, window_bounds = array<i64: 1, 128>}, {pipeline_mode = #tpu.pipeline_mode<synchronous>, transform_indices = @transform_5, window_bounds = array<i64: 128, 128>}, {pipeline_mode = #tpu.pipeline_mode<synchronous>, transform_indices = @transform_6, window_bounds = array<i64: 1, 128>}, {transform_indices = @transform_7, window_bounds = array<i64: 2, 8, 128>}]} {
    %c0 = arith.constant 0 : index
    %0 = memref.load %arg2[%c0] : memref<1xi32, #tpu.memory_space<smem>>
    %c-2048144789_i32 = arith.constant -2048144789 : i32
    %1 = arith.muli %0, %c-2048144789_i32 : i32
    %c2_i32 = arith.constant 2 : i32
    %2 = arith.muli %arg0, %c2_i32 : i32
    %3 = arith.addi %2, %arg1 : i32
    %c1_i32 = arith.constant 1 : i32
    %4 = arith.addi %3, %c1_i32 : i32
    %c-1028477387_i32 = arith.constant -1028477387 : i32
    %5 = arith.muli %4, %c-1028477387_i32 : i32
    %6 = arith.addi %1, %5 : i32
    %7 = tpu.iota {dimensions = array<i32: 0>} : vector<8x1024xi32>
    %8 = tpu.iota {dimensions = array<i32: 1>} : vector<8x1024xi32>
    %c1024_i32 = arith.constant 1024 : i32
    %9 = vector.broadcast %c1024_i32 : i32 to vector<8x1024xi32>
    %10 = arith.muli %7, %9 : vector<8x1024xi32>
    %11 = arith.addi %10, %8 : vector<8x1024xi32>
    %c-1640531527_i32 = arith.constant -1640531527 : i32
    %12 = vector.broadcast %c-1640531527_i32 : i32 to vector<8x1024xi32>
    %13 = arith.muli %11, %12 : vector<8x1024xi32>
    %14 = vector.broadcast %6 : i32 to vector<8x1024xi32>
    %15 = arith.addi %13, %14 : vector<8x1024xi32>
    %c0_i32 = arith.constant 0 : i32
    %c1779033703_i32 = arith.constant 1779033703 : i32
    %16 = arith.muli %c0_i32, %c1779033703_i32 : i32
    %17 = vector.broadcast %16 : i32 to vector<8x1024xi32>
    %18 = arith.addi %15, %17 : vector<8x1024xi32>
    %c16_i32 = arith.constant 16 : i32
    %19 = vector.broadcast %c16_i32 : i32 to vector<8x1024xi32>
    %20 = arith.shrui %18, %19 : vector<8x1024xi32>
    %21 = arith.xori %18, %20 : vector<8x1024xi32>
    %c2146121005_i32 = arith.constant 2146121005 : i32
    %22 = vector.broadcast %c2146121005_i32 : i32 to vector<8x1024xi32>
    %23 = arith.muli %21, %22 : vector<8x1024xi32>
    %c15_i32 = arith.constant 15 : i32
    %24 = vector.broadcast %c15_i32 : i32 to vector<8x1024xi32>
    %25 = arith.shrui %23, %24 : vector<8x1024xi32>
    %26 = arith.xori %23, %25 : vector<8x1024xi32>
    %c-2073254261_i32 = arith.constant -2073254261 : i32
    %27 = vector.broadcast %c-2073254261_i32 : i32 to vector<8x1024xi32>
    %28 = arith.muli %26, %27 : vector<8x1024xi32>
    %c16_i32_0 = arith.constant 16 : i32
    %29 = vector.broadcast %c16_i32_0 : i32 to vector<8x1024xi32>
    %30 = arith.shrui %28, %29 : vector<8x1024xi32>
    %31 = arith.xori %28, %30 : vector<8x1024xi32>
    %c8_i32 = arith.constant 8 : i32
    %32 = vector.broadcast %c8_i32 : i32 to vector<8x1024xi32>
    %33 = arith.shrui %31, %32 : vector<8x1024xi32>
    %34 = arith.sitofp %33 : vector<8x1024xi32> to vector<8x1024xf32>
    %cst = arith.constant 5.96046448E-8 : f32
    %35 = vector.broadcast %cst : f32 to vector<8x1024xf32>
    %36 = arith.mulf %34, %35 : vector<8x1024xf32>
    %cst_1 = arith.constant 1.000000e+00 : f32
    %37 = vector.broadcast %cst_1 : f32 to vector<8x1024xf32>
    %38 = arith.subf %37, %36 : vector<8x1024xf32>
    %39 = tpu.iota {dimensions = array<i32: 0>} : vector<8x1024xi32>
    %40 = tpu.iota {dimensions = array<i32: 1>} : vector<8x1024xi32>
    %c1024_i32_2 = arith.constant 1024 : i32
    %41 = vector.broadcast %c1024_i32_2 : i32 to vector<8x1024xi32>
    %42 = arith.muli %39, %41 : vector<8x1024xi32>
    %43 = arith.addi %42, %40 : vector<8x1024xi32>
    %c-1640531527_i32_3 = arith.constant -1640531527 : i32
    %44 = vector.broadcast %c-1640531527_i32_3 : i32 to vector<8x1024xi32>
    %45 = arith.muli %43, %44 : vector<8x1024xi32>
    %46 = vector.broadcast %6 : i32 to vector<8x1024xi32>
    %47 = arith.addi %45, %46 : vector<8x1024xi32>
    %c1_i32_4 = arith.constant 1 : i32
    %c1779033703_i32_5 = arith.constant 1779033703 : i32
    %48 = arith.muli %c1_i32_4, %c1779033703_i32_5 : i32
    %49 = vector.broadcast %48 : i32 to vector<8x1024xi32>
    %50 = arith.addi %47, %49 : vector<8x1024xi32>
    %c16_i32_6 = arith.constant 16 : i32
    %51 = vector.broadcast %c16_i32_6 : i32 to vector<8x1024xi32>
    %52 = arith.shrui %50, %51 : vector<8x1024xi32>
    %53 = arith.xori %50, %52 : vector<8x1024xi32>
    %c2146121005_i32_7 = arith.constant 2146121005 : i32
    %54 = vector.broadcast %c2146121005_i32_7 : i32 to vector<8x1024xi32>
    %55 = arith.muli %53, %54 : vector<8x1024xi32>
    %c15_i32_8 = arith.constant 15 : i32
    %56 = vector.broadcast %c15_i32_8 : i32 to vector<8x1024xi32>
    %57 = arith.shrui %55, %56 : vector<8x1024xi32>
    %58 = arith.xori %55, %57 : vector<8x1024xi32>
    %c-2073254261_i32_9 = arith.constant -2073254261 : i32
    %59 = vector.broadcast %c-2073254261_i32_9 : i32 to vector<8x1024xi32>
    %60 = arith.muli %58, %59 : vector<8x1024xi32>
    %c16_i32_10 = arith.constant 16 : i32
    %61 = vector.broadcast %c16_i32_10 : i32 to vector<8x1024xi32>
    %62 = arith.shrui %60, %61 : vector<8x1024xi32>
    %63 = arith.xori %60, %62 : vector<8x1024xi32>
    %c8_i32_11 = arith.constant 8 : i32
    %64 = vector.broadcast %c8_i32_11 : i32 to vector<8x1024xi32>
    %65 = arith.shrui %63, %64 : vector<8x1024xi32>
    %66 = arith.sitofp %65 : vector<8x1024xi32> to vector<8x1024xf32>
    %cst_12 = arith.constant 5.96046448E-8 : f32
    %67 = vector.broadcast %cst_12 : f32 to vector<8x1024xf32>
    %68 = arith.mulf %66, %67 : vector<8x1024xf32>
    %69 = math.log %38 : vector<8x1024xf32>
    %cst_13 = arith.constant -2.000000e+00 : f32
    %70 = vector.broadcast %cst_13 : f32 to vector<8x1024xf32>
    %71 = arith.mulf %70, %69 : vector<8x1024xf32>
    %72 = math.sqrt %71 : vector<8x1024xf32>
    %c0_14 = arith.constant 0 : index
    %73 = memref.load %arg3[%c0_14] : memref<1xf32, #tpu.memory_space<smem>>
    %74 = vector.broadcast %73 : f32 to vector<8x1024xf32>
    %75 = arith.mulf %72, %74 : vector<8x1024xf32>
    %cst_15 = arith.constant 6.28318548 : f32
    %76 = vector.broadcast %cst_15 : f32 to vector<8x1024xf32>
    %77 = arith.mulf %76, %68 : vector<8x1024xf32>
    %78 = math.cos %77 : vector<8x1024xf32>
    %79 = arith.mulf %75, %78 : vector<8x1024xf32>
    %80 = math.sin %77 : vector<8x1024xf32>
    %81 = arith.mulf %75, %80 : vector<8x1024xf32>
    %82 = tpu.concatenate %79, %81 in 0 : vector<8x1024xf32>, vector<8x1024xf32> -> vector<16x1024xf32>
    %c0_16 = arith.constant 0 : index
    %c0_17 = arith.constant 0 : index
    %83 = vector.load %arg4[%c0_16, %c0_17] : memref<8x1024xbf16, #tpu.memory_space<vmem>>, vector<8x1024xbf16>
    %84 = tpu.concatenate %83, %83 in 0 : vector<8x1024xbf16>, vector<8x1024xbf16> -> vector<16x1024xbf16>
    %85 = arith.truncf %82 : vector<16x1024xf32> to vector<16x1024xbf16>
    %86 = arith.addf %84, %85 : vector<16x1024xbf16>
    %c0_18 = arith.constant 0 : index
    %c0_19 = arith.constant 0 : index
    %87 = vector.load %arg5[%c0_18, %c0_19] : memref<1024x128xbf16, #tpu.memory_space<vmem>>, vector<1024x128xbf16>
    %cst_20 = arith.constant dense<0.000000e+00> : vector<16x128xf32>
    %88 = tpu.matmul %86, %87, %cst_20 {dimension_numbers = #tpu.dot_dimension_numbers<[1], [0], [0], [1], [0, 0, 1, 1], [], []>} : vector<16x1024xbf16>, vector<1024x128xbf16>, vector<16x128xf32> -> vector<16x128xf32>
    %c0_21 = arith.constant 0 : index
    %c0_22 = arith.constant 0 : index
    %89 = vector.load %arg6[%c0_21, %c0_22] : memref<1x128xf32, #tpu.memory_space<vmem>>, vector<1x128xf32>
    %90 = vector.broadcast %89 : vector<1x128xf32> to vector<16x128xf32>
    %91 = arith.addf %88, %90 : vector<16x128xf32>
    %cst_23 = arith.constant 0.000000e+00 : f32
    %92 = vector.broadcast %cst_23 : f32 to vector<16x128xf32>
    %93 = arith.maximumf %91, %92 : vector<16x128xf32>
    %94 = arith.truncf %93 : vector<16x128xf32> to vector<16x128xbf16>
    %c0_24 = arith.constant 0 : index
    %c0_25 = arith.constant 0 : index
    %95 = vector.load %arg7[%c0_24, %c0_25] : memref<128x128xbf16, #tpu.memory_space<vmem>>, vector<128x128xbf16>
    %cst_26 = arith.constant dense<0.000000e+00> : vector<16x128xf32>
    %96 = tpu.matmul %94, %95, %cst_26 {dimension_numbers = #tpu.dot_dimension_numbers<[1], [0], [0], [1], [0, 0, 1, 1], [], []>} : vector<16x128xbf16>, vector<128x128xbf16>, vector<16x128xf32> -> vector<16x128xf32>
    %c0_27 = arith.constant 0 : index
    %c0_28 = arith.constant 0 : index
    %97 = vector.load %arg8[%c0_27, %c0_28] : memref<1x128xf32, #tpu.memory_space<vmem>>, vector<1x128xf32>
    %98 = vector.broadcast %97 : vector<1x128xf32> to vector<16x128xf32>
    %99 = arith.addf %96, %98 : vector<16x128xf32>
    %cst_29 = arith.constant 0.000000e+00 : f32
    %100 = vector.broadcast %cst_29 : f32 to vector<16x128xf32>
    %101 = arith.maximumf %99, %100 : vector<16x128xf32>
    %102 = arith.truncf %101 : vector<16x128xf32> to vector<16x128xbf16>
    %c0_30 = arith.constant 0 : index
    %c0_31 = arith.constant 0 : index
    %103 = vector.load %arg9[%c0_30, %c0_31] : memref<128x128xbf16, #tpu.memory_space<vmem>>, vector<128x128xbf16>
    %cst_32 = arith.constant dense<0.000000e+00> : vector<16x128xf32>
    %104 = tpu.matmul %102, %103, %cst_32 {dimension_numbers = #tpu.dot_dimension_numbers<[1], [0], [0], [1], [0, 0, 1, 1], [], []>} : vector<16x128xbf16>, vector<128x128xbf16>, vector<16x128xf32> -> vector<16x128xf32>
    %c0_33 = arith.constant 0 : index
    %c0_34 = arith.constant 0 : index
    %105 = vector.load %arg10[%c0_33, %c0_34] : memref<1x128xf32, #tpu.memory_space<vmem>>, vector<1x128xf32>
    %106 = vector.broadcast %105 : vector<1x128xf32> to vector<16x128xf32>
    %107 = arith.addf %104, %106 : vector<16x128xf32>
    %108 = vector.shape_cast %107 : vector<16x128xf32> to vector<2x8x128xf32>
    %c0_35 = arith.constant 0 : index
    %c0_36 = arith.constant 0 : index
    %c0_37 = arith.constant 0 : index
    %109 = vector.load %arg11[%c0_35, %c0_36, %c0_37] : memref<2x8x128xf32, #tpu.memory_space<vmem>>, vector<2x8x128xf32>
    tpu.vector_store %arg11[%c0_35, %c0_36, %c0_37], %108 {strides = array<i32>} : memref<2x8x128xf32, #tpu.memory_space<vmem>>, vector<2x8x128xf32>,
    return
  }
  func.func @transform_0(%arg0: i32, %arg1: i32, %arg2: memref<1xi32, #tpu.memory_space<smem>>, %arg3: memref<1xf32, #tpu.memory_space<smem>>) -> (i32, i32) {
    %c0_i32 = arith.constant 0 : i32
    %c0_i32_0 = arith.constant 0 : i32
    return %arg0, %c0_i32 : i32, i32
  }
  func.func @transform_1(%arg0: i32, %arg1: i32, %arg2: memref<1xi32, #tpu.memory_space<smem>>, %arg3: memref<1xf32, #tpu.memory_space<smem>>) -> (i32, i32) {
    %c0_i32 = arith.constant 0 : i32
    %c0_i32_0 = arith.constant 0 : i32
    %c0_i32_1 = arith.constant 0 : i32
    return %c0_i32, %c0_i32_0 : i32, i32
  }
  func.func @transform_2(%arg0: i32, %arg1: i32, %arg2: memref<1xi32, #tpu.memory_space<smem>>, %arg3: memref<1xf32, #tpu.memory_space<smem>>) -> (i32, i32) {
    %c0_i32 = arith.constant 0 : i32
    %c0_i32_0 = arith.constant 0 : i32
    %c0_i32_1 = arith.constant 0 : i32
    return %c0_i32, %c0_i32_0 : i32, i32
  }
  func.func @transform_3(%arg0: i32, %arg1: i32, %arg2: memref<1xi32, #tpu.memory_space<smem>>, %arg3: memref<1xf32, #tpu.memory_space<smem>>) -> (i32, i32) {
    %c0_i32 = arith.constant 0 : i32
    %c0_i32_0 = arith.constant 0 : i32
    %c0_i32_1 = arith.constant 0 : i32
    return %c0_i32, %c0_i32_0 : i32, i32
  }
  func.func @transform_4(%arg0: i32, %arg1: i32, %arg2: memref<1xi32, #tpu.memory_space<smem>>, %arg3: memref<1xf32, #tpu.memory_space<smem>>) -> (i32, i32) {
    %c0_i32 = arith.constant 0 : i32
    %c0_i32_0 = arith.constant 0 : i32
    %c0_i32_1 = arith.constant 0 : i32
    return %c0_i32, %c0_i32_0 : i32, i32
  }
  func.func @transform_5(%arg0: i32, %arg1: i32, %arg2: memref<1xi32, #tpu.memory_space<smem>>, %arg3: memref<1xf32, #tpu.memory_space<smem>>) -> (i32, i32) {
    %c0_i32 = arith.constant 0 : i32
    %c0_i32_0 = arith.constant 0 : i32
    %c0_i32_1 = arith.constant 0 : i32
    return %c0_i32, %c0_i32_0 : i32, i32
  }
  func.func @transform_6(%arg0: i32, %arg1: i32, %arg2: memref<1xi32, #tpu.memory_space<smem>>, %arg3: memref<1xf32, #tpu.memory_space<smem>>) -> (i32, i32) {
    %c0_i32 = arith.constant 0 : i32
    %c0_i32_0 = arith.constant 0 : i32
    %c0_i32_1 = arith.constant 0 : i32
    return %c0_i32, %c0_i32_0 : i32, i32
  }
  func.func @transform_7(%arg0: i32, %arg1: i32, %arg2: memref<1xi32, #tpu.memory_space<smem>>, %arg3: memref<1xf32, #tpu.memory_space<smem>>) -> (i32, i32, i32) {
    %c0_i32 = arith.constant 0 : i32
    %c0_i32_0 = arith.constant 0 : i32
    return %arg1, %arg0, %c0_i32 : i32, i32, i32
  }
}

</mosaic_0001>

<llo_original>
// kernel: tpu_custom_call.1
$region0: #{tpu_custom_call.1}
  #allocation0 [shape = 'u32[]', space=smem, size = 0x4, offset = 0x4, fixed_abs, tag = 'smem constant byte address 0x4 - core index']
  #allocation1 [shape = 'u32[144,128]{1,0:T(1,128)}', space=vmem, size = 0x12000, scoped, tag = 'internal scratch']
  #allocation2 [shape = 's32[1]{0}', space=sflag, size = 0x4, scoped, tag = 'scoped memory for tpu_custom_call.1']
  #allocation3 [shape = 's32[1]{0:T(128)S(6)}', space=smem, size = 0x200, scoped, tag = 'prefetched SMEM operand 0']
  #allocation4 [shape = 'f32[1]{0:T(128)S(6)}', space=smem, size = 0x200, scoped, tag = 'prefetched SMEM operand 1']
  %s0 = inlined_call_operand.<no memory space> [shape: s32[1], index: 0, kind: input, shape index: {}]
  %s1 = inlined_call_operand.<no memory space> [shape: f32[1], index: 1, kind: input, shape index: {}]
  %s2 = inlined_call_operand.hbm [shape: bf16[8,1024], index: 2, kind: input, shape index: {}]
  %s3 = inlined_call_operand.hbm [shape: bf16[1024,128], index: 3, kind: input, shape index: {}]
  %s4 = inlined_call_operand.vmem [shape: f32[1,128], index: 4, kind: input, shape index: {}]
  %s5 = inlined_call_operand.hbm [shape: bf16[128,128], index: 5, kind: input, shape index: {}]
  %s6 = inlined_call_operand.vmem [shape: f32[1,128], index: 6, kind: input, shape index: {}]
  %s7 = inlined_call_operand.hbm [shape: bf16[128,128], index: 7, kind: input, shape index: {}]
  %s8 = inlined_call_operand.vmem [shape: f32[1,128], index: 8, kind: input, shape index: {}]
  %s9 = inlined_call_operand.hbm [shape: f32[4,8,128], index: 9, kind: output, shape index: {}]
  %s10 = sld [smem:[#allocation0]]
  $region77: #{tpu_custom_call.1} parent=0
    _
  %s12 = ssub.s32 1, %s10
  %s13 = scalar_select 0, %s12, %s10
  %14 = sst [smem:[#allocation3]] %s0
  %15 = sst [smem:[#allocation4]] %s1
  $region1: #{tpu_custom_call.1} parent=0
    #allocation5 [shape = 'u8[16384]{0}', space=vmem, size = 0x4000, scoped, tag = 'input window, operand 2, single buffered']
    #allocation6 [shape = 's32[2]{0}', space=sflag, size = 0x8, scoped, tag = 'scoped memory for tpu_custom_call.1']
    #allocation7 [shape = 's32[2]{0}', space=sflag, size = 0x8, scoped, tag = 'scoped memory for tpu_custom_call.1']
    #allocation8 [shape = 'u8[262144]{0}', space=vmem, size = 0x40000, scoped, tag = 'input window, operand 3, single buffered']
    #allocation9 [shape = 's32[1]{0}', space=sflag, size = 0x4, scoped, tag = 'scoped memory for tpu_custom_call.1']
    #allocation10 [shape = 'u8[32768]{0}', space=vmem, size = 0x8000, scoped, tag = 'input window, operand 5, single buffered']
    #allocation11 [shape = 'u8[32768]{0}', space=vmem, size = 0x8000, scoped, tag = 'input window, operand 7, single buffered']
    #allocation12 [shape = 's32[1]{0}', space=sflag, size = 0x4, scoped, tag = 'scoped memory for tpu_custom_call.1']
    #allocation13 [shape = 'u8[16384]{0}', space=vmem, size = 0x4000, scoped, tag = 'output window, operand 0']
    %16 = vsyncpa [#allocation6], 0
    %17 = vsyncpa [#allocation9], 0
    %18 = vsyncpa [#allocation12], 0
    %19 = vsyncpa [#allocation7], 0
    %s20 = scalar_lea.sflag [#allocation7], 1
    %21 = vsyncpa %s20, 0
    loop: start=0, step=1, limit=4
    $region2: #{tpu_custom_call.1} parent=1 // loop_pre_header
      _
    $region3: #{tpu_custom_call.1} parent=1 // loop_header
      %s23 = sphi 0, %s27
      %p24 = scmp.ge.s32.totalorder %s23, 4
      %s30 = sphi 0, %s42
      %s31 = sphi 0, %s38
      %s32 = sphi 0, %s30
      %s33 = sphi 0, %s31
      %s34 = sphi 0, %s32
      %s35 = sphi 0, %s33
      %s45 = sphi 0, %s47
      %s48 = sphi 0, %s45
      %s49 = sphi 0, %s48
      %s65 = sphi 0, %s49
      %s69 = sphi 0, %s69
      %s71 = sphi 0, %s69
      %s72 = sphi 0, %s71
      %s86 = sphi 0, %s72
      %s90 = sphi 0, %s90
      %s92 = sphi 0, %s90
      %s93 = sphi 0, %s92
      %s107 = sphi 0, %s93
      %s111 = sphi 0, %s111
      %s113 = sphi 0, %s111
      %s114 = sphi 0, %s113
      %s128 = sphi 0, %s114
      %s132 = sphi 0, %s132
      %s134 = sphi 0, %s132
      %s135 = sphi 0, %s134
      %s149 = sphi 0, %s135
      %s153 = sphi 0, %s153
      %s155 = sphi 0, %s153
      %s156 = sphi 0, %s155
      %s170 = sphi 0, %s156
      %s174 = sphi 0, %s174
      %s176 = sphi 0, %s174
      %s177 = sphi 0, %s176
      %s191 = sphi 0, %s177
      %s199 = sphi 0, %s201
      %s202 = sphi 0, %s199
      %s203 = sphi 0, %s202
      %s219 = sphi 0, %s203
    $region4: #{tpu_custom_call.1} parent=1 // loop_header_branch
      %26 = sbr.rel (%p24) target = $region8
    $region5: #{tpu_custom_call.1} parent=1 // loop_body
      %s28 = ssub.s32 %s23, 1
      %s29 = ssub.s32 %s23, 2
      %s36 = sadd.s32 1, %s31
      %p37 = scmp.ge.s32.totalorder %s36, 2
      %s38 = scalar_select %p37, 0, %s36
      %s39 = sadd.s32 1, %s30
      %s40 = scalar_select %p37, %s39, %s30
      %p41 = scmp.ge.s32.totalorder %s40, 1
      %s42 = scalar_select %p41, 0, %s40
      %s43 = ssub.s32 %s30, %s42
      %p44 = scmp.eq.s32.totalorder %s43, 0
      %s46 = sadd.s32 %s45, 1
      %s47 = scalar_select %p44, %s45, %s46
      %p50 = pneg %p44
      %p51 = scmp.eq.s32.totalorder %s23, 1
      %p52 = por %p50, %p51
      %p53 = scmp.ne.s32.totalorder %s45, %s48
      %p54 = scmp.eq.s32.totalorder %s23, 0
      %p55 = por %p53, %p54
      %p56 = scmp.ne.s32.totalorder %s45, %s48
      %p57 = scmp.eq.s32.totalorder %s28, 1
      %p58 = por %p56, %p57
      %p59 = scmp.ne.s32.totalorder %s48, %s49
      %p60 = scmp.eq.s32.totalorder %s28, 0
      %p61 = por %p59, %p60
      %p62 = scmp.ne.s32.totalorder %s48, %s49
      %p63 = scmp.eq.s32.totalorder %s29, 1
      %p64 = por %p62, %p63
      %p66 = scmp.ne.s32.totalorder %s49, %s65
      %p67 = scmp.eq.s32.totalorder %s29, 0
      %p68 = por %p66, %p67
      %s70 = sadd.s32 %s69, 1
      %p73 = scmp.eq.s32.totalorder %s23, 1
      %p74 = scmp.ne.s32.totalorder %s69, %s71
      %p75 = scmp.eq.s32.totalorder %s23, 0
      %p76 = por %p74, %p75
      %p77 = scmp.ne.s32.totalorder %s69, %s71
      %p78 = scmp.eq.s32.totalorder %s28, 1
      %p79 = por %p77, %p78
      %p80 = scmp.ne.s32.totalorder %s71, %s72
      %p81 = scmp.eq.s32.totalorder %s28, 0
      %p82 = por %p80, %p81
      %p83 = scmp.ne.s32.totalorder %s71, %s72
      %p84 = scmp.eq.s32.totalorder %s29, 1
      %p85 = por %p83, %p84
      %p87 = scmp.ne.s32.totalorder %s72, %s86
      %p88 = scmp.eq.s32.totalorder %s29, 0
      %p89 = por %p87, %p88
      %s91 = sadd.s32 %s90, 1
      %p94 = scmp.eq.s32.totalorder %s23, 1
      %p95 = scmp.ne.s32.totalorder %s90, %s92
      %p96 = scmp.eq.s32.totalorder %s23, 0
      %p97 = por %p95, %p96
      %p98 = scmp.ne.s32.totalorder %s90, %s92
      %p99 = scmp.eq.s32.totalorder %s28, 1
      %p100 = por %p98, %p99
      %p101 = scmp.ne.s32.totalorder %s92, %s93
      %p102 = scmp.eq.s32.totalorder %s28, 0
      %p103 = por %p101, %p102
      %p104 = scmp.ne.s32.totalorder %s92, %s93
      %p105 = scmp.eq.s32.totalorder %s29, 1
      %p106 = por %p104, %p105
      %p108 = scmp.ne.s32.totalorder %s93, %s107
      %p109 = scmp.eq.s32.totalorder %s29, 0
      %p110 = por %p108, %p109
      %s112 = sadd.s32 %s111, 1
      %p115 = scmp.eq.s32.totalorder %s23, 1
      %p116 = scmp.ne.s32.totalorder %s111, %s113
      %p117 = scmp.eq.s32.totalorder %s23, 0
      %p118 = por %p116, %p117
      %p119 = scmp.ne.s32.totalorder %s111, %s113
      %p120 = scmp.eq.s32.totalorder %s28, 1
      %p121 = por %p119, %p120
      %p122 = scmp.ne.s32.totalorder %s113, %s114
      %p123 = scmp.eq.s32.totalorder %s28, 0
      %p124 = por %p122, %p123
      %p125 = scmp.ne.s32.totalorder %s113, %s114
      %p126 = scmp.eq.s32.totalorder %s29, 1
      %p127 = por %p125, %p126
      %p129 = scmp.ne.s32.totalorder %s114, %s128
      %p130 = scmp.eq.s32.totalorder %s29, 0
      %p131 = por %p129, %p130
      %s133 = sadd.s32 %s132, 1
      %p136 = scmp.eq.s32.totalorder %s23, 1
      %p137 = scmp.ne.s32.totalorder %s132, %s134
      %p138 = scmp.eq.s32.totalorder %s23, 0
      %p139 = por %p137, %p138
      %p140 = scmp.ne.s32.totalorder %s132, %s134
      %p141 = scmp.eq.s32.totalorder %s28, 1
      %p142 = por %p140, %p141
      %p143 = scmp.ne.s32.totalorder %s134, %s135
      %p144 = scmp.eq.s32.totalorder %s28, 0
      %p145 = por %p143, %p144
      %p146 = scmp.ne.s32.totalorder %s134, %s135
      %p147 = scmp.eq.s32.totalorder %s29, 1
      %p148 = por %p146, %p147
      %p150 = scmp.ne.s32.totalorder %s135, %s149
      %p151 = scmp.eq.s32.totalorder %s29, 0
      %p152 = por %p150, %p151
      %s154 = sadd.s32 %s153, 1
      %p157 = scmp.eq.s32.totalorder %s23, 1
      %p158 = scmp.ne.s32.totalorder %s153, %s155
      %p159 = scmp.eq.s32.totalorder %s23, 0
      %p160 = por %p158, %p159
      %p161 = scmp.ne.s32.totalorder %s153, %s155
      %p162 = scmp.eq.s32.totalorder %s28, 1
      %p163 = por %p161, %p162
      %p164 = scmp.ne.s32.totalorder %s155, %s156
      %p165 = scmp.eq.s32.totalorder %s28, 0
      %p166 = por %p164, %p165
      %p167 = scmp.ne.s32.totalorder %s155, %s156
      %p168 = scmp.eq.s32.totalorder %s29, 1
      %p169 = por %p167, %p168
      %p171 = scmp.ne.s32.totalorder %s156, %s170
      %p172 = scmp.eq.s32.totalorder %s29, 0
      %p173 = por %p171, %p172
      %s175 = sadd.s32 %s174, 1
      %p178 = scmp.eq.s32.totalorder %s23, 1
      %p179 = scmp.ne.s32.totalorder %s174, %s176
      %p180 = scmp.eq.s32.totalorder %s23, 0
      %p181 = por %p179, %p180
      %p182 = scmp.ne.s32.totalorder %s174, %s176
      %p183 = scmp.eq.s32.totalorder %s28, 1
      %p184 = por %p182, %p183
      %p185 = scmp.ne.s32.totalorder %s176, %s177
      %p186 = scmp.eq.s32.totalorder %s28, 0
      %p187 = por %p185, %p186
      %p188 = scmp.ne.s32.totalorder %s176, %s177
      %p189 = scmp.eq.s32.totalorder %s29, 1
      %p190 = por %p188, %p189
      %p192 = scmp.ne.s32.totalorder %s177, %s191
      %p193 = scmp.eq.s32.totalorder %s29, 0
      %p194 = por %p192, %p193
      %s195 = ssub.s32 %s31, %s38
      %s196 = ssub.s32 %s30, %s42
      %s197 = sor.u32 %s195, %s196
      %p198 = scmp.eq.s32.totalorder %s197, 0
      %s200 = sadd.s32 %s199, 1
      %s201 = scalar_select %p198, %s199, %s200
      %p204 = pneg %p198
      %p205 = scmp.eq.s32.totalorder %s23, 1
      %p206 = por %p204, %p205
      %p207 = scmp.ne.s32.totalorder %s199, %s202
      %p208 = scmp.eq.s32.totalorder %s23, 0
      %p209 = por %p207, %p208
      %p210 = scmp.ne.s32.totalorder %s199, %s202
      %p211 = scmp.eq.s32.totalorder %s28, 1
      %p212 = por %p210, %p211
      %p213 = scmp.ne.s32.totalorder %s202, %s203
      %p214 = scmp.eq.s32.totalorder %s28, 0
      %p215 = por %p213, %p214
      %p216 = scmp.ne.s32.totalorder %s202, %s203
      %p217 = scmp.eq.s32.totalorder %s29, 1
      %p218 = por %p216, %p217
      %p220 = scmp.ne.s32.totalorder %s203, %s219
      %p221 = scmp.eq.s32.totalorder %s29, 0
      %p222 = por %p220, %p221
      %p223 = scmp.le.s32.totalorder 1, %s23
      %p224 = scmp.lt.s32.totalorder %s23, 3
      %p225 = pnand %p223, %p224
      %p226 = pneg %p225
      // Predicated region
      $region9: #{tpu_custom_call.1} parent=5 // pred_check
        _
      $region10: #{tpu_custom_call.1} parent=5 // pred_check_branch
        %228 = sbr.rel (%p225) target = $region12
      $region11: #{tpu_custom_call.1} parent=5 // pred_region
        %s229 = ssub.s32 %s23, 1
        // Predicated region
        $region13: #{tpu_custom_call.1} parent=11 // pred_check
          %p230 = pneg %p61
        $region14: #{tpu_custom_call.1} parent=11 // pred_check_branch
          %232 = sbr.rel (%p230) target = $region16
        $region15: #{tpu_custom_call.1} parent=11 // pred_region
          %s234 = ssub.s32 512, 512
          %235 = vsyncadd [#allocation6], %s234
          %s236 = smul.addr %s32, 8
          %s237 = smul.addr %s236, 64
          %s238 = scalar_lea.hbm %s2, %s237
          %s240 = sshll.u32 [#allocation5], 4
          %s241 = int_to_ptr.vmem [resolvable:$true] %s240
          %243 = dma.hbm_to_vmem [thread:$0]  %s238, 512, %s241, [#allocation6]
        $region16: #{tpu_custom_call.1} parent=11 // pred_fallthru
          _
        // Predicated region
        $region17: #{tpu_custom_call.1} parent=11 // pred_check
          %p244 = pneg %p82
        $region18: #{tpu_custom_call.1} parent=11 // pred_check_branch
          %246 = sbr.rel (%p244) target = $region20
        $region19: #{tpu_custom_call.1} parent=11 // pred_region
          %s248 = ssub.s32 8192, 8192
          %249 = vsyncadd [#allocation9], %s248
          %s250 = sshll.u32 [#allocation8], 4
          %s251 = int_to_ptr.vmem [resolvable:$true] %s250
          %256 = dma.hbm_to_vmem [thread:$0]  %s3, 8192, %s251, [#allocation9], 64, 64, 4
        $region20: #{tpu_custom_call.1} parent=11 // pred_fallthru
          _
        // Predicated region
        $region21: #{tpu_custom_call.1} parent=11 // pred_check
          %p257 = pneg %p103
        $region22: #{tpu_custom_call.1} parent=11 // pred_check_branch
          %259 = sbr.rel (%p257) target = $region24
        $region23: #{tpu_custom_call.1} parent=11 // pred_region
          _
        $region24: #{tpu_custom_call.1} parent=11 // pred_fallthru
          _
        // Predicated region
        $region25: #{tpu_custom_call.1} parent=11 // pred_check
          %p260 = pneg %p124
        $region26: #{tpu_custom_call.1} parent=11 // pred_check_branch
          %262 = sbr.rel (%p260) target = $region28
        $region27: #{tpu_custom_call.1} parent=11 // pred_region
          %s264 = ssub.s32 1024, 1024
          %265 = vsyncadd [#allocation9], %s264
          %s266 = sshll.u32 [#allocation10], 4
          %s267 = int_to_ptr.vmem [resolvable:$true] %s266
          %272 = dma.hbm_to_vmem [thread:$0]  %s5, 1024, %s267, [#allocation9], 64, 64, 4
        $region28: #{tpu_custom_call.1} parent=11 // pred_fallthru
          _
        // Predicated region
        $region29: #{tpu_custom_call.1} parent=11 // pred_check
          %p273 = pneg %p145
        $region30: #{tpu_custom_call.1} parent=11 // pred_check_branch
          %275 = sbr.rel (%p273) target = $region32
        $region31: #{tpu_custom_call.1} parent=11 // pred_region
          _
        $region32: #{tpu_custom_call.1} parent=11 // pred_fallthru
          _
        // Predicated region
        $region33: #{tpu_custom_call.1} parent=11 // pred_check
          %p276 = pneg %p166
        $region34: #{tpu_custom_call.1} parent=11 // pred_check_branch
          %278 = sbr.rel (%p276) target = $region36
        $region35: #{tpu_custom_call.1} parent=11 // pred_region
          %s280 = ssub.s32 1024, 1024
          %281 = vsyncadd [#allocation12], %s280
          %s282 = sshll.u32 [#allocation11], 4
          %s283 = int_to_ptr.vmem [resolvable:$true] %s282
          %288 = dma.hbm_to_vmem [thread:$0]  %s7, 1024, %s283, [#allocation12], 64, 64, 4
        $region36: #{tpu_custom_call.1} parent=11 // pred_fallthru
          _
        // Predicated region
        $region37: #{tpu_custom_call.1} parent=11 // pred_check
          %p289 = pneg %p187
        $region38: #{tpu_custom_call.1} parent=11 // pred_check_branch
          %291 = sbr.rel (%p289) target = $region40
        $region39: #{tpu_custom_call.1} parent=11 // pred_region
          _
        $region40: #{tpu_custom_call.1} parent=11 // pred_fallthru
          _
      $region12: #{tpu_custom_call.1} parent=5 // pred_fallthru
        _
      %p292 = scmp.lt.s32.totalorder %s23, 2
      // Predicated region
      $region41: #{tpu_custom_call.1} parent=5 // pred_check
        %p293 = pneg %p292
      $region42: #{tpu_custom_call.1} parent=5 // pred_check_branch
        %295 = sbr.rel (%p293) target = $region44
      $region43: #{tpu_custom_call.1} parent=5 // pred_region
        _
      $region44: #{tpu_custom_call.1} parent=5 // pred_fallthru
        _
      %p296 = scmp.le.s32.totalorder 1, %s23
      %p297 = scmp.lt.s32.totalorder %s23, 3
      %p298 = pnand %p296, %p297
      %p299 = pneg %p298
      // Predicated region
      $region45: #{tpu_custom_call.1} parent=5 // pred_check
        _
      $region46: #{tpu_custom_call.1} parent=5 // pred_check_branch
        %301 = sbr.rel (%p298) target = $region48
      $region47: #{tpu_custom_call.1} parent=5 // pred_region
        %s302 = ssub.s32 %s23, 1
        // Predicated region
        $region49: #{tpu_custom_call.1} parent=47 // pred_check
          %p303 = pneg %p61
        $region50: #{tpu_custom_call.1} parent=47 // pred_check_branch
          %305 = sbr.rel (%p303) target = $region52
        $region51: #{tpu_custom_call.1} parent=47 // pred_region
          %306 = dma.done [#allocation6], 512
        $region52: #{tpu_custom_call.1} parent=47 // pred_fallthru
          _
        // Predicated region
        $region53: #{tpu_custom_call.1} parent=47 // pred_check
          %p307 = pneg %p82
        $region54: #{tpu_custom_call.1} parent=47 // pred_check_branch
          %309 = sbr.rel (%p307) target = $region56
        $region55: #{tpu_custom_call.1} parent=47 // pred_region
          %310 = dma.done [#allocation9], 8192
        $region56: #{tpu_custom_call.1} parent=47 // pred_fallthru
          _
        // Predicated region
        $region57: #{tpu_custom_call.1} parent=47 // pred_check
          %p311 = pneg %p124
        $region58: #{tpu_custom_call.1} parent=47 // pred_check_branch
          %313 = sbr.rel (%p311) target = $region60
        $region59: #{tpu_custom_call.1} parent=47 // pred_region
          %314 = dma.done [#allocation9], 1024
        $region60: #{tpu_custom_call.1} parent=47 // pred_fallthru
          _
        // Predicated region
        $region61: #{tpu_custom_call.1} parent=47 // pred_check
          %p315 = pneg %p166
        $region62: #{tpu_custom_call.1} parent=47 // pred_check_branch
          %317 = sbr.rel (%p315) target = $region64
        $region63: #{tpu_custom_call.1} parent=47 // pred_region
          %318 = dma.done [#allocation12], 1024
        $region64: #{tpu_custom_call.1} parent=47 // pred_fallthru
          _
        %p319 = pneg %p61
        %p320 = pneg %p58
        %p321 = pneg %p82
        %p322 = pneg %p79
        %p323 = pneg %p103
        %p324 = pneg %p100
        %p325 = pneg %p124
        %p326 = pneg %p121
        %p327 = pneg %p145
        %p328 = pneg %p142
        %p329 = pneg %p166
        %p330 = pneg %p163
        %p331 = pneg %p187
        %p332 = pneg %p184
        %p333 = pneg %p215
        %p334 = pneg %p212
        %s335 = sand.u32 %s202, 1
        %s336 = scalar_lea.sflag [#allocation7], %s335
        %s337 = sand.u32 %s202, 1
        %s338 = smul.addr %s337, 16
        %s339 = scalar_lea.vmem [#allocation13], %s338
        %s340 = smul.u32 2, %s33
        %s342 = sld [smem:[#allocation3]]
        %s343 = smul.u32 %s342, 2246822507
        %s344 = smul.u32 %s32, 2
        %s345 = sadd.s32 %s344, %s33
        %s346 = sadd.s32 %s345, 1
        %s347 = smul.u32 %s346, 3266489909
        %s348 = sadd.s32 %s343, %s347
        %v349 = vlaneseq
        %v350 = vshrl.u32 %v349, 7
        %v351 = vlaneseq
        %v352 = vand.u32 %v351, 127
        %v353 = vadd.s32 %v352, 128
        %v354 = vadd.s32 %v352, 256
        %v355 = vadd.s32 %v352, 384
        %v356 = vadd.s32 %v352, 512
        %v357 = vadd.s32 %v352, 640
        %v358 = vadd.s32 %v352, 768
        %v359 = vadd.s32 %v352, 896
        %v360 = vmul.u32 %v350, 1024
        %v361 = vadd.s32 %v360, %v352
        %v362 = vadd.s32 %v360, %v353
        %v363 = vadd.s32 %v360, %v354
        %v364 = vadd.s32 %v360, %v355
        %v365 = vadd.s32 %v360, %v356
        %v366 = vadd.s32 %v360, %v357
        %v367 = vadd.s32 %v360, %v358
        %v368 = vadd.s32 %v360, %v359
        %v369 = vmul.u32 %v361, 2654435769
        %v370 = vmul.u32 %v362, 2654435769
        %v371 = vmul.u32 %v363, 2654435769
        %v372 = vmul.u32 %v364, 2654435769
        %v373 = vmul.u32 %v365, 2654435769
        %v374 = vmul.u32 %v366, 2654435769
        %v375 = vmul.u32 %v367, 2654435769
        %v376 = vmul.u32 %v368, 2654435769
        %v377 = vstv %s348
        %v378 = vadd.s32 %v369, %v377
        %v379 = vadd.s32 %v370, %v377
        %v380 = vadd.s32 %v371, %v377
        %v381 = vadd.s32 %v372, %v377
        %v382 = vadd.s32 %v373, %v377
        %v383 = vadd.s32 %v374, %v377
        %v384 = vadd.s32 %v375, %v377
        %v385 = vadd.s32 %v376, %v377
        %v386 = vshrl.u32 %v378, 16
        %v387 = vshrl.u32 %v379, 16
        %v388 = vshrl.u32 %v380, 16
        %v389 = vshrl.u32 %v381, 16
        %v390 = vshrl.u32 %v382, 16
        %v391 = vshrl.u32 %v383, 16
        %v392 = vshrl.u32 %v384, 16
        %v393 = vshrl.u32 %v385, 16
        %v394 = vxor.u32 %v378, %v386
        %v395 = vxor.u32 %v379, %v387
        %v396 = vxor.u32 %v380, %v388
        %v397 = vxor.u32 %v381, %v389
        %v398 = vxor.u32 %v382, %v390
        %v399 = vxor.u32 %v383, %v391
        %v400 = vxor.u32 %v384, %v392
        %v401 = vxor.u32 %v385, %v393
        %v402 = vmul.u32 %v394, 2146121005
        %v403 = vmul.u32 %v395, 2146121005
        %v404 = vmul.u32 %v396, 2146121005
        %v405 = vmul.u32 %v397, 2146121005
        %v406 = vmul.u32 %v398, 2146121005
        %v407 = vmul.u32 %v399, 2146121005
        %v408 = vmul.u32 %v400, 2146121005
        %v409 = vmul.u32 %v401, 2146121005
        %v410 = vshrl.u32 %v402, 15
        %v411 = vshrl.u32 %v403, 15
        %v412 = vshrl.u32 %v404, 15
        %v413 = vshrl.u32 %v405, 15
        %v414 = vshrl.u32 %v406, 15
        %v415 = vshrl.u32 %v407, 15
        %v416 = vshrl.u32 %v408, 15
        %v417 = vshrl.u32 %v409, 15
        %v418 = vxor.u32 %v402, %v410
        %v419 = vxor.u32 %v403, %v411
        %v420 = vxor.u32 %v404, %v412
        %v421 = vxor.u32 %v405, %v413
        %v422 = vxor.u32 %v406, %v414
        %v423 = vxor.u32 %v407, %v415
        %v424 = vxor.u32 %v408, %v416
        %v425 = vxor.u32 %v409, %v417
        %v426 = vmul.u32 %v418, 2221713035
        %v427 = vmul.u32 %v419, 2221713035
        %v428 = vmul.u32 %v420, 2221713035
        %v429 = vmul.u32 %v421, 2221713035
        %v430 = vmul.u32 %v422, 2221713035
        %v431 = vmul.u32 %v423, 2221713035
        %v432 = vmul.u32 %v424, 2221713035
        %v433 = vmul.u32 %v425, 2221713035
        %v434 = vshrl.u32 %v426, 16
        %v435 = vshrl.u32 %v427, 16
        %v436 = vshrl.u32 %v428, 16
        %v437 = vshrl.u32 %v429, 16
        %v438 = vshrl.u32 %v430, 16
        %v439 = vshrl.u32 %v431, 16
        %v440 = vshrl.u32 %v432, 16
        %v441 = vshrl.u32 %v433, 16
        %v442 = vxor.u32 %v426, %v434
        %v443 = vxor.u32 %v427, %v435
        %v444 = vxor.u32 %v428, %v436
        %v445 = vxor.u32 %v429, %v437
        %v446 = vxor.u32 %v430, %v438
        %v447 = vxor.u32 %v431, %v439
        %v448 = vxor.u32 %v432, %v440
        %v449 = vxor.u32 %v433, %v441
        %v450 = vshrl.u32 %v442, 8
        %v451 = vshrl.u32 %v443, 8
        %v452 = vshrl.u32 %v444, 8
        %v453 = vshrl.u32 %v445, 8
        %v454 = vshrl.u32 %v446, 8
        %v455 = vshrl.u32 %v447, 8
        %v456 = vshrl.u32 %v448, 8
        %v457 = vshrl.u32 %v449, 8
        %v458 = vcvt.s32.f32 %v450
        %v459 = vcvt.s32.f32 %v451
        %v460 = vcvt.s32.f32 %v452
        %v461 = vcvt.s32.f32 %v453
        %v462 = vcvt.s32.f32 %v454
        %v463 = vcvt.s32.f32 %v455
        %v464 = vcvt.s32.f32 %v456
        %v465 = vcvt.s32.f32 %v457
        %v466 = vmul.f32 %v458, 5.9604645e-08
        %v467 = vmul.f32 %v459, 5.9604645e-08
        %v468 = vmul.f32 %v460, 5.9604645e-08
        %v469 = vmul.f32 %v461, 5.9604645e-08
        %v470 = vmul.f32 %v462, 5.9604645e-08
        %v471 = vmul.f32 %v463, 5.9604645e-08
        %v472 = vmul.f32 %v464, 5.9604645e-08
        %v473 = vmul.f32 %v465, 5.9604645e-08
        %v474 = vsub.f32 1.0, %v466
        %v475 = vsub.f32 1.0, %v467
        %v476 = vsub.f32 1.0, %v468
        %v477 = vsub.f32 1.0, %v469
        %v478 = vsub.f32 1.0, %v470
        %v479 = vsub.f32 1.0, %v471
        %v480 = vsub.f32 1.0, %v472
        %v481 = vsub.f32 1.0, %v473
        %v482 = vadd.s32 %v378, 1779033703
        %v483 = vadd.s32 %v379, 1779033703
        %v484 = vadd.s32 %v380, 1779033703
        %v485 = vadd.s32 %v381, 1779033703
        %v486 = vadd.s32 %v382, 1779033703
        %v487 = vadd.s32 %v383, 1779033703
        %v488 = vadd.s32 %v384, 1779033703
        %v489 = vadd.s32 %v385, 1779033703
        %v490 = vshrl.u32 %v482, 16
        %v491 = vshrl.u32 %v483, 16
        %v492 = vshrl.u32 %v484, 16
        %v493 = vshrl.u32 %v485, 16
        %v494 = vshrl.u32 %v486, 16
        %v495 = vshrl.u32 %v487, 16
        %v496 = vshrl.u32 %v488, 16
        %v497 = vshrl.u32 %v489, 16
        %v498 = vxor.u32 %v482, %v490
        %v499 = vxor.u32 %v483, %v491
        %v500 = vxor.u32 %v484, %v492
        %v501 = vxor.u32 %v485, %v493
        %v502 = vxor.u32 %v486, %v494
        %v503 = vxor.u32 %v487, %v495
        %v504 = vxor.u32 %v488, %v496
        %v505 = vxor.u32 %v489, %v497
        %v506 = vmul.u32 %v498, 2146121005
        %v507 = vmul.u32 %v499, 2146121005
        %v508 = vmul.u32 %v500, 2146121005
        %v509 = vmul.u32 %v501, 2146121005
        %v510 = vmul.u32 %v502, 2146121005
        %v511 = vmul.u32 %v503, 2146121005
        %v512 = vmul.u32 %v504, 2146121005
        %v513 = vmul.u32 %v505, 2146121005
        %v514 = vshrl.u32 %v506, 15
        %v515 = vshrl.u32 %v507, 15
        %v516 = vshrl.u32 %v508, 15
        %v517 = vshrl.u32 %v509, 15
        %v518 = vshrl.u32 %v510, 15
        %v519 = vshrl.u32 %v511, 15
        %v520 = vshrl.u32 %v512, 15
        %v521 = vshrl.u32 %v513, 15
        %v522 = vxor.u32 %v506, %v514
        %v523 = vxor.u32 %v507, %v515
        %v524 = vxor.u32 %v508, %v516
        %v525 = vxor.u32 %v509, %v517
        %v526 = vxor.u32 %v510, %v518
        %v527 = vxor.u32 %v511, %v519
        %v528 = vxor.u32 %v512, %v520
        %v529 = vxor.u32 %v513, %v521
        %v530 = vmul.u32 %v522, 2221713035
        %v531 = vmul.u32 %v523, 2221713035
        %v532 = vmul.u32 %v524, 2221713035
        %v533 = vmul.u32 %v525, 2221713035
        %v534 = vmul.u32 %v526, 2221713035
        %v535 = vmul.u32 %v527, 2221713035
        %v536 = vmul.u32 %v528, 2221713035
        %v537 = vmul.u32 %v529, 2221713035
        %v538 = vshrl.u32 %v530, 16
        %v539 = vshrl.u32 %v531, 16
        %v540 = vshrl.u32 %v532, 16
        %v541 = vshrl.u32 %v533, 16
        %v542 = vshrl.u32 %v534, 16
        %v543 = vshrl.u32 %v535, 16
        %v544 = vshrl.u32 %v536, 16
        %v545 = vshrl.u32 %v537, 16
        %v546 = vxor.u32 %v530, %v538
        %v547 = vxor.u32 %v531, %v539
        %v548 = vxor.u32 %v532, %v540
        %v549 = vxor.u32 %v533, %v541
        %v550 = vxor.u32 %v534, %v542
        %v551 = vxor.u32 %v535, %v543
        %v552 = vxor.u32 %v536, %v544
        %v553 = vxor.u32 %v537, %v545
        %v554 = vshrl.u32 %v546, 8
        %v555 = vshrl.u32 %v547, 8
        %v556 = vshrl.u32 %v548, 8
        %v557 = vshrl.u32 %v549, 8
        %v558 = vshrl.u32 %v550, 8
        %v559 = vshrl.u32 %v551, 8
        %v560 = vshrl.u32 %v552, 8
        %v561 = vshrl.u32 %v553, 8
        %v562 = vcvt.s32.f32 %v554
        %v563 = vcvt.s32.f32 %v555
        %v564 = vcvt.s32.f32 %v556
        %v565 = vcvt.s32.f32 %v557
        %v566 = vcvt.s32.f32 %v558
        %v567 = vcvt.s32.f32 %v559
        %v568 = vcvt.s32.f32 %v560
        %v569 = vcvt.s32.f32 %v561
        %v570 = vmul.f32 %v562, 5.9604645e-08
        %v571 = vmul.f32 %v563, 5.9604645e-08
        %v572 = vmul.f32 %v564, 5.9604645e-08
        %v573 = vmul.f32 %v565, 5.9604645e-08
        %v574 = vmul.f32 %v566, 5.9604645e-08
        %v575 = vmul.f32 %v567, 5.9604645e-08
        %v576 = vmul.f32 %v568, 5.9604645e-08
        %v577 = vmul.f32 %v569, 5.9604645e-08
        %v578 = vlog2.pop %v474
        %v579 = vmul.f32 %v578, 0.6931472
        %v580 = vlog2.pop %v475
        %v581 = vmul.f32 %v580, 0.6931472
        %v582 = vlog2.pop %v476
        %v583 = vmul.f32 %v582, 0.6931472
        %v584 = vlog2.pop %v477
        %v585 = vmul.f32 %v584, 0.6931472
        %v586 = vlog2.pop %v478
        %v587 = vmul.f32 %v586, 0.6931472
        %v588 = vlog2.pop %v479
        %v589 = vmul.f32 %v588, 0.6931472
        %v590 = vlog2.pop %v480
        %v591 = vmul.f32 %v590, 0.6931472
        %v592 = vlog2.pop %v481
        %v593 = vmul.f32 %v592, 0.6931472
        %v594 = vmul.f32 %v579, -2.0
        %v595 = vmul.f32 %v581, -2.0
        %v596 = vmul.f32 %v583, -2.0
        %v597 = vmul.f32 %v585, -2.0
        %v598 = vmul.f32 %v587, -2.0
        %v599 = vmul.f32 %v589, -2.0
        %v600 = vmul.f32 %v591, -2.0
        %v601 = vmul.f32 %v593, -2.0
        %v602 = vrsqrt.pop %v594
        %v603 = vmul.f32 %v594, %v602
        %vm604 = vcmp.eq.f32.partialorder %v594, inf
        %v605 = vsel %vm604, %v594, %v603
        %vm606 = vcmp.eq.f32.partialorder %v594, 0.0
        %v607 = vand.u32 %v594, 2147483648
        %v608 = vsel %vm606, %v607, %v605
        %v609 = vrsqrt.pop %v595
        %v610 = vmul.f32 %v595, %v609
        %vm611 = vcmp.eq.f32.partialorder %v595, inf
        %v612 = vsel %vm611, %v595, %v610
        %vm613 = vcmp.eq.f32.partialorder %v595, 0.0
        %v614 = vand.u32 %v595, 2147483648
        %v615 = vsel %vm613, %v614, %v612
        %v616 = vrsqrt.pop %v596
        %v617 = vmul.f32 %v596, %v616
        %vm618 = vcmp.eq.f32.partialorder %v596, inf
        %v619 = vsel %vm618, %v596, %v617
        %vm620 = vcmp.eq.f32.partialorder %v596, 0.0
        %v621 = vand.u32 %v596, 2147483648
        %v622 = vsel %vm620, %v621, %v619
        %v623 = vrsqrt.pop %v597
        %v624 = vmul.f32 %v597, %v623
        %vm625 = vcmp.eq.f32.partialorder %v597, inf
        %v626 = vsel %vm625, %v597, %v624
        %vm627 = vcmp.eq.f32.partialorder %v597, 0.0
        %v628 = vand.u32 %v597, 2147483648
        %v629 = vsel %vm627, %v628, %v626
        %v630 = vrsqrt.pop %v598
        %v631 = vmul.f32 %v598, %v630
        %vm632 = vcmp.eq.f32.partialorder %v598, inf
        %v633 = vsel %vm632, %v598, %v631
        %vm634 = vcmp.eq.f32.partialorder %v598, 0.0
        %v635 = vand.u32 %v598, 2147483648
        %v636 = vsel %vm634, %v635, %v633
        %v637 = vrsqrt.pop %v599
        %v638 = vmul.f32 %v599, %v637
        %vm639 = vcmp.eq.f32.partialorder %v599, inf
        %v640 = vsel %vm639, %v599, %v638
        %vm641 = vcmp.eq.f32.partialorder %v599, 0.0
        %v642 = vand.u32 %v599, 2147483648
        %v643 = vsel %vm641, %v642, %v640
        %v644 = vrsqrt.pop %v600
        %v645 = vmul.f32 %v600, %v644
        %vm646 = vcmp.eq.f32.partialorder %v600, inf
        %v647 = vsel %vm646, %v600, %v645
        %vm648 = vcmp.eq.f32.partialorder %v600, 0.0
        %v649 = vand.u32 %v600, 2147483648
        %v650 = vsel %vm648, %v649, %v647
        %v651 = vrsqrt.pop %v601
        %v652 = vmul.f32 %v601, %v651
        %vm653 = vcmp.eq.f32.partialorder %v601, inf
        %v654 = vsel %vm653, %v601, %v652
        %vm655 = vcmp.eq.f32.partialorder %v601, 0.0
        %v656 = vand.u32 %v601, 2147483648
        %v657 = vsel %vm655, %v656, %v654
        %s658 = sld [smem:[#allocation4]]
        %v659 = vstv %s658
        %v660 = vmul.f32 %v608, %v659
        %v661 = vmul.f32 %v615, %v659
        %v662 = vmul.f32 %v622, %v659
        %v663 = vmul.f32 %v629, %v659
        %v664 = vmul.f32 %v636, %v659
        %v665 = vmul.f32 %v643, %v659
        %v666 = vmul.f32 %v650, %v659
        %v667 = vmul.f32 %v657, %v659
        %v668 = vmul.f32 %v570, 6.2831855
        %v669 = vmul.f32 %v571, 6.2831855
        %v670 = vmul.f32 %v572, 6.2831855
        %v671 = vmul.f32 %v573, 6.2831855
        %v672 = vmul.f32 %v574, 6.2831855
        %v673 = vmul.f32 %v575, 6.2831855
        %v674 = vmul.f32 %v576, 6.2831855
        %v675 = vmul.f32 %v577, 6.2831855
        %v676 = vand.u32 2147483647, %v668
        %vm677 = vcmp.le.f32.partialorder %v676, 0.7853982
        %vm678 = vcmp.lt.s32.totalorder %v668, 0
        %v679 = vand.u32 %v668, 2139095040
        %v680 = vshrl.u32 %v679, 23
        %v681 = vsub.s32 %v680, 127
        %v682 = vand.u32 2147483647, %v668
        %v683 = vand.u32 %v682, 8388607
        %v684 = vor.u32 %v683, 8388608
        %v685 = vsub.s32 0, %v684
        %v686 = vadd.s32 %v681, 1
        %vm687 = vcmp.gt.s32.totalorder %v686, 0
        %v688 = vsel %vm687, %v686, 0
        %v689 = vshrl.u32 %v688, 5
        %v690 = vand.u32 %v688, 31
        %v691 = vsub.s32 32, %v690
        %v692 = vshrl.u32 683565275, %v691
        %v693 = vshll.u32 683565275, %v690
        %v694 = vshrl.u32 2475754826, %v691
        %v695 = vor.u32 %v693, %v694
        %v696 = vshll.u32 2475754826, %v690
        %v697 = vshrl.u32 2131351028, %v691
        %v698 = vor.u32 %v696, %v697
        %v699 = vshll.u32 2131351028, %v690
        %v700 = vshrl.u32 2102212464, %v691
        %v701 = vor.u32 %v699, %v700
        %v702 = vshll.u32 2102212464, %v690
        %v703 = vshrl.u32 920167782, %v691
        %v704 = vor.u32 %v702, %v703
        %v705 = vshll.u32 920167782, %v690
        %v706 = vshrl.u32 1326507024, %v691
        %v707 = vor.u32 %v705, %v706
        %vm708 = vcmp.lt.s32.totalorder %v689, 1
        %vm709 = vcmp.lt.s32.totalorder %v689, 2
        %vm710 = vcmp.lt.s32.totalorder %v689, 3
        %vm711 = vcmp.lt.s32.totalorder %v689, 4
        %v712 = vsel %vm708, %v692, %v695
        %v713 = vsel %vm711, %v701, 2102212464
        %v714 = vsel %vm710, %v698, %v713
        %v715 = vsel %vm709, %v712, %v714
        %v716 = vsel %vm708, %v695, %v698
        %v717 = vsel %vm711, %v704, 920167782
        %v718 = vsel %vm710, %v701, %v717
        %v719 = vsel %vm709, %v716, %v718
        %v720 = vsel %vm708, %v698, %v701
        %v721 = vsel %vm711, %v707, 1326507024
        %v722 = vsel %vm710, %v704, %v721
        %v723 = vsel %vm709, %v720, %v722
        %v724 = vshll.u32 %v684, 8
        %v725 = vmul.u32.u64.compose %v724, %v723
        %v726 = vextract.low.u32 %v725
        %v727 = vextract.high.u32 %v725
        %v728 = vmul.u32.u64.compose %v724, %v719
        %v729 = vextract.low.u32 %v728
        %v730 = vextract.high.u32 %v728
        %v731 = vmul.u32 %v724, %v715
        %v732 = vadd.s32 %v727, %v729
        %vm733 = vc.u32 %v727, %v729
        %v734 = vadd.s32 %v730, 1
        %v735 = vsel %vm733, %v734, %v730
        %v736 = vadd.s32 %v731, %v735
        %v737 = vadd.s32 %v736, 536870912
        %v738 = vshrl.u32 %v737, 30
        %v739 = vshll.u32 %v738, 30
        %v740 = vsub.s32 %v736, %v739
        %vm741 = vcmp.lt.s32.totalorder %v740, 0
        %v742 = vsub.s32 0, %v740
        %v743 = vsel %vm741, %v742, %v740
        %v744 = vclz %v743
        %v745 = vsub.s32 %v744, 2
        %vm746 = vcmp.gt.s32.totalorder 0, %v745
        %v747 = vsel %vm746, 0, %v745
        %v748 = vsub.s32 32, %v747
        %v749 = vshll.u32 %v740, %v747
        %v750 = vshrl.u32 %v732, %v748
        %v751 = vor.u32 %v749, %v750
        %v752 = vsub.s32 4294967266, %v747
        %v753 = vadd.s32 %v752, 127
        %v754 = vshll.u32 %v753, 23
        %v755 = vor.u32 4788187, %v754
        %v756 = vand.u32 2147483647, %v755
        %v758 = vcvt.s32.f32 %v751
        %v759 = vmul.f32 %v758, %v756
        %v760 = vxor.u32 %v759, 2147483648
        %v761 = vsel %vm678, %v760, %v759
        %v762 = vsub.s32 4, %v738
        %v763 = vsel %vm678, %v762, %v738
        %v764 = vsel %vm677, %v668, %v761
        %v765 = vsel %vm677, 0, %v763
        %v766 = vcosq.f32.pop %v764
        %v767 = vsinq.f32.pop %v764
        %vm768 = vweird.f32 %v668
        %v769 = vand.u32 %v765, 3
        %vm770 = vcmp.lt.s32.totalorder %v769, 2
        %vm771 = vcmp.eq.s32.totalorder %v769, 0
        %v772 = vxor.u32 %v767, 2147483648
        %v773 = vsel %vm771, %v766, %v772
        %vm774 = vcmp.eq.s32.totalorder %v769, 2
        %v775 = vxor.u32 %v766, 2147483648
        %v776 = vsel %vm774, %v775, %v767
        %v777 = vsel %vm770, %v773, %v776
        %v778 = vsel %vm768, nan, %v777
        %v779 = vand.u32 2147483647, %v669
        %vm780 = vcmp.le.f32.partialorder %v779, 0.7853982
        %vm781 = vcmp.lt.s32.totalorder %v669, 0
        %v782 = vand.u32 %v669, 2139095040
        %v783 = vshrl.u32 %v782, 23
        %v784 = vsub.s32 %v783, 127
        %v785 = vand.u32 2147483647, %v669
        %v786 = vand.u32 %v785, 8388607
        %v787 = vor.u32 %v786, 8388608
        %v788 = vsub.s32 0, %v787
        %v789 = vadd.s32 %v784, 1
        %vm790 = vcmp.gt.s32.totalorder %v789, 0
        %v791 = vsel %vm790, %v789, 0
        %v792 = vshrl.u32 %v791, 5
        %v793 = vand.u32 %v791, 31
        %v794 = vsub.s32 32, %v793
        %v795 = vshrl.u32 683565275, %v794
        %v796 = vshll.u32 683565275, %v793
        %v797 = vshrl.u32 2475754826, %v794
        %v798 = vor.u32 %v796, %v797
        %v799 = vshll.u32 2475754826, %v793
        %v800 = vshrl.u32 2131351028, %v794
        %v801 = vor.u32 %v799, %v800
        %v802 = vshll.u32 2131351028, %v793
        %v803 = vshrl.u32 2102212464, %v794
        %v804 = vor.u32 %v802, %v803
        %v805 = vshll.u32 2102212464, %v793
        %v806 = vshrl.u32 920167782, %v794
        %v807 = vor.u32 %v805, %v806
        %v808 = vshll.u32 920167782, %v793
        %v809 = vshrl.u32 1326507024, %v794
        %v810 = vor.u32 %v808, %v809
        %vm811 = vcmp.lt.s32.totalorder %v792, 1
        %vm812 = vcmp.lt.s32.totalorder %v792, 2
        %vm813 = vcmp.lt.s32.totalorder %v792, 3
        %vm814 = vcmp.lt.s32.totalorder %v792, 4
        %v815 = vsel %vm811, %v795, %v798
        %v816 = vsel %vm814, %v804, 2102212464
        %v817 = vsel %vm813, %v801, %v816
        %v818 = vsel %vm812, %v815, %v817
        %v819 = vsel %vm811, %v798, %v801
        %v820 = vsel %vm814, %v807, 920167782
        %v821 = vsel %vm813, %v804, %v820
        %v822 = vsel %vm812, %v819, %v821
        %v823 = vsel %vm811, %v801, %v804
        %v824 = vsel %vm814, %v810, 1326507024
        %v825 = vsel %vm813, %v807, %v824
        %v826 = vsel %vm812, %v823, %v825
        %v827 = vshll.u32 %v787, 8
        %v828 = vmul.u32.u64.compose %v827, %v826
        %v829 = vextract.low.u32 %v828
        %v830 = vextract.high.u32 %v828
        %v831 = vmul.u32.u64.compose %v827, %v822
        %v832 = vextract.low.u32 %v831
        %v833 = vextract.high.u32 %v831
        %v834 = vmul.u32 %v827, %v818
        %v835 = vadd.s32 %v830, %v832
        %vm836 = vc.u32 %v830, %v832
        %v837 = vadd.s32 %v833, 1
        %v838 = vsel %vm836, %v837, %v833
        %v839 = vadd.s32 %v834, %v838
        %v840 = vadd.s32 %v839, 536870912
        %v841 = vshrl.u32 %v840, 30
        %v842 = vshll.u32 %v841, 30
        %v843 = vsub.s32 %v839, %v842
        %vm844 = vcmp.lt.s32.totalorder %v843, 0
        %v845 = vsub.s32 0, %v843
        %v846 = vsel %vm844, %v845, %v843
        %v847 = vclz %v846
        %v848 = vsub.s32 %v847, 2
        %vm849 = vcmp.gt.s32.totalorder 0, %v848
        %v850 = vsel %vm849, 0, %v848
        %v851 = vsub.s32 32, %v850
        %v852 = vshll.u32 %v843, %v850
        %v853 = vshrl.u32 %v835, %v851
        %v854 = vor.u32 %v852, %v853
        %v855 = vsub.s32 4294967266, %v850
        %v856 = vadd.s32 %v855, 127
        %v857 = vshll.u32 %v856, 23
        %v858 = vor.u32 4788187, %v857
        %v859 = vand.u32 2147483647, %v858
        %v861 = vcvt.s32.f32 %v854
        %v862 = vmul.f32 %v861, %v859
        %v863 = vxor.u32 %v862, 2147483648
        %v864 = vsel %vm781, %v863, %v862
        %v865 = vsub.s32 4, %v841
        %v866 = vsel %vm781, %v865, %v841
        %v867 = vsel %vm780, %v669, %v864
        %v868 = vsel %vm780, 0, %v866
        %v869 = vcosq.f32.pop %v867
        %v870 = vsinq.f32.pop %v867
        %vm871 = vweird.f32 %v669
        %v872 = vand.u32 %v868, 3
        %vm873 = vcmp.lt.s32.totalorder %v872, 2
        %vm874 = vcmp.eq.s32.totalorder %v872, 0
        %v875 = vxor.u32 %v870, 2147483648
        %v876 = vsel %vm874, %v869, %v875
        %vm877 = vcmp.eq.s32.totalorder %v872, 2
        %v878 = vxor.u32 %v869, 2147483648
        %v879 = vsel %vm877, %v878, %v870
        %v880 = vsel %vm873, %v876, %v879
        %v881 = vsel %vm871, nan, %v880
        %v882 = vand.u32 2147483647, %v670
        %vm883 = vcmp.le.f32.partialorder %v882, 0.7853982
        %vm884 = vcmp.lt.s32.totalorder %v670, 0
        %v885 = vand.u32 %v670, 2139095040
        %v886 = vshrl.u32 %v885, 23
        %v887 = vsub.s32 %v886, 127
        %v888 = vand.u32 2147483647, %v670
        %v889 = vand.u32 %v888, 8388607
        %v890 = vor.u32 %v889, 8388608
        %v891 = vsub.s32 0, %v890
        %v892 = vadd.s32 %v887, 1
        %vm893 = vcmp.gt.s32.totalorder %v892, 0
        %v894 = vsel %vm893, %v892, 0
        %v895 = vshrl.u32 %v894, 5
        %v896 = vand.u32 %v894, 31
        %v897 = vsub.s32 32, %v896
        %v898 = vshrl.u32 683565275, %v897
        %v899 = vshll.u32 683565275, %v896
        %v900 = vshrl.u32 2475754826, %v897
        %v901 = vor.u32 %v899, %v900
        %v902 = vshll.u32 2475754826, %v896
        %v903 = vshrl.u32 2131351028, %v897
        %v904 = vor.u32 %v902, %v903
        %v905 = vshll.u32 2131351028, %v896
        %v906 = vshrl.u32 2102212464, %v897
        %v907 = vor.u32 %v905, %v906
        %v908 = vshll.u32 2102212464, %v896
        %v909 = vshrl.u32 920167782, %v897
        %v910 = vor.u32 %v908, %v909
        %v911 = vshll.u32 920167782, %v896
        %v912 = vshrl.u32 1326507024, %v897
        %v913 = vor.u32 %v911, %v912
        %vm914 = vcmp.lt.s32.totalorder %v895, 1
        %vm915 = vcmp.lt.s32.totalorder %v895, 2
        %vm916 = vcmp.lt.s32.totalorder %v895, 3
        %vm917 = vcmp.lt.s32.totalorder %v895, 4
        %v918 = vsel %vm914, %v898, %v901
        %v919 = vsel %vm917, %v907, 2102212464
        %v920 = vsel %vm916, %v904, %v919
        %v921 = vsel %vm915, %v918, %v920
        %v922 = vsel %vm914, %v901, %v904
        %v923 = vsel %vm917, %v910, 920167782
        %v924 = vsel %vm916, %v907, %v923
        %v925 = vsel %vm915, %v922, %v924
        %v926 = vsel %vm914, %v904, %v907
        %v927 = vsel %vm917, %v913, 1326507024
        %v928 = vsel %vm916, %v910, %v927
        %v929 = vsel %vm915, %v926, %v928
        %v930 = vshll.u32 %v890, 8
        %v931 = vmul.u32.u64.compose %v930, %v929
        %v932 = vextract.low.u32 %v931
        %v933 = vextract.high.u32 %v931
        %v934 = vmul.u32.u64.compose %v930, %v925
        %v935 = vextract.low.u32 %v934
        %v936 = vextract.high.u32 %v934
        %v937 = vmul.u32 %v930, %v921
        %v938 = vadd.s32 %v933, %v935
        %vm939 = vc.u32 %v933, %v935
        %v940 = vadd.s32 %v936, 1
        %v941 = vsel %vm939, %v940, %v936
        %v942 = vadd.s32 %v937, %v941
        %v943 = vadd.s32 %v942, 536870912
        %v944 = vshrl.u32 %v943, 30
        %v945 = vshll.u32 %v944, 30
        %v946 = vsub.s32 %v942, %v945
        %vm947 = vcmp.lt.s32.totalorder %v946, 0
        %v948 = vsub.s32 0, %v946
        %v949 = vsel %vm947, %v948, %v946
        %v950 = vclz %v949
        %v951 = vsub.s32 %v950, 2
        %vm952 = vcmp.gt.s32.totalorder 0, %v951
        %v953 = vsel %vm952, 0, %v951
        %v954 = vsub.s32 32, %v953
        %v955 = vshll.u32 %v946, %v953
        %v956 = vshrl.u32 %v938, %v954
        %v957 = vor.u32 %v955, %v956
        %v958 = vsub.s32 4294967266, %v953
        %v959 = vadd.s32 %v958, 127
        %v960 = vshll.u32 %v959, 23
        %v961 = vor.u32 4788187, %v960
        %v962 = vand.u32 2147483647, %v961
        %v964 = vcvt.s32.f32 %v957
        %v965 = vmul.f32 %v964, %v962
        %v966 = vxor.u32 %v965, 2147483648
        %v967 = vsel %vm884, %v966, %v965
        %v968 = vsub.s32 4, %v944
        %v969 = vsel %vm884, %v968, %v944
        %v970 = vsel %vm883, %v670, %v967
        %v971 = vsel %vm883, 0, %v969
        %v972 = vcosq.f32.pop %v970
        %v973 = vsinq.f32.pop %v970
        %vm974 = vweird.f32 %v670
        %v975 = vand.u32 %v971, 3
        %vm976 = vcmp.lt.s32.totalorder %v975, 2
        %vm977 = vcmp.eq.s32.totalorder %v975, 0
        %v978 = vxor.u32 %v973, 2147483648
        %v979 = vsel %vm977, %v972, %v978
        %vm980 = vcmp.eq.s32.totalorder %v975, 2
        %v981 = vxor.u32 %v972, 2147483648
        %v982 = vsel %vm980, %v981, %v973
        %v983 = vsel %vm976, %v979, %v982
        %v984 = vsel %vm974, nan, %v983
        %v985 = vand.u32 2147483647, %v671
        %vm986 = vcmp.le.f32.partialorder %v985, 0.7853982
        %vm987 = vcmp.lt.s32.totalorder %v671, 0
        %v988 = vand.u32 %v671, 2139095040
        %v989 = vshrl.u32 %v988, 23
        %v990 = vsub.s32 %v989, 127
        %v991 = vand.u32 2147483647, %v671
        %v992 = vand.u32 %v991, 8388607
        %v993 = vor.u32 %v992, 8388608
        %v994 = vsub.s32 0, %v993
        %v995 = vadd.s32 %v990, 1
        %vm996 = vcmp.gt.s32.totalorder %v995, 0
        %v997 = vsel %vm996, %v995, 0
        %v998 = vshrl.u32 %v997, 5
        %v999 = vand.u32 %v997, 31
        %v1000 = vsub.s32 32, %v999
        %v1001 = vshrl.u32 683565275, %v1000
        %v1002 = vshll.u32 683565275, %v999
        %v1003 = vshrl.u32 2475754826, %v1000
        %v1004 = vor.u32 %v1002, %v1003
        %v1005 = vshll.u32 2475754826, %v999
        %v1006 = vshrl.u32 2131351028, %v1000
        %v1007 = vor.u32 %v1005, %v1006
        %v1008 = vshll.u32 2131351028, %v999
        %v1009 = vshrl.u32 2102212464, %v1000
        %v1010 = vor.u32 %v1008, %v1009
        %v1011 = vshll.u32 2102212464, %v999
        %v1012 = vshrl.u32 920167782, %v1000
        %v1013 = vor.u32 %v1011, %v1012
        %v1014 = vshll.u32 920167782, %v999
        %v1015 = vshrl.u32 1326507024, %v1000
        %v1016 = vor.u32 %v1014, %v1015
        %vm1017 = vcmp.lt.s32.totalorder %v998, 1
        %vm1018 = vcmp.lt.s32.totalorder %v998, 2
        %vm1019 = vcmp.lt.s32.totalorder %v998, 3
        %vm1020 = vcmp.lt.s32.totalorder %v998, 4
        %v1021 = vsel %vm1017, %v1001, %v1004
        %v1022 = vsel %vm1020, %v1010, 2102212464
        %v1023 = vsel %vm1019, %v1007, %v1022
        %v1024 = vsel %vm1018, %v1021, %v1023
        %v1025 = vsel %vm1017, %v1004, %v1007
        %v1026 = vsel %vm1020, %v1013, 920167782
        %v1027 = vsel %vm1019, %v1010, %v1026
        %v1028 = vsel %vm1018, %v1025, %v1027
        %v1029 = vsel %vm1017, %v1007, %v1010
        %v1030 = vsel %vm1020, %v1016, 1326507024
        %v1031 = vsel %vm1019, %v1013, %v1030
        %v1032 = vsel %vm1018, %v1029, %v1031
        %v1033 = vshll.u32 %v993, 8
        %v1034 = vmul.u32.u64.compose %v1033, %v1032
        %v1035 = vextract.low.u32 %v1034
        %v1036 = vextract.high.u32 %v1034
        %v1037 = vmul.u32.u64.compose %v1033, %v1028
        %v1038 = vextract.low.u32 %v1037
        %v1039 = vextract.high.u32 %v1037
        %v1040 = vmul.u32 %v1033, %v1024
        %v1041 = vadd.s32 %v1036, %v1038
        %vm1042 = vc.u32 %v1036, %v1038
        %v1043 = vadd.s32 %v1039, 1
        %v1044 = vsel %vm1042, %v1043, %v1039
        %v1045 = vadd.s32 %v1040, %v1044
        %v1046 = vadd.s32 %v1045, 536870912
        %v1047 = vshrl.u32 %v1046, 30
        %v1048 = vshll.u32 %v1047, 30
        %v1049 = vsub.s32 %v1045, %v1048
        %vm1050 = vcmp.lt.s32.totalorder %v1049, 0
        %v1051 = vsub.s32 0, %v1049
        %v1052 = vsel %vm1050, %v1051, %v1049
        %v1053 = vclz %v1052
        %v1054 = vsub.s32 %v1053, 2
        %vm1055 = vcmp.gt.s32.totalorder 0, %v1054
        %v1056 = vsel %vm1055, 0, %v1054
        %v1057 = vsub.s32 32, %v1056
        %v1058 = vshll.u32 %v1049, %v1056
        %v1059 = vshrl.u32 %v1041, %v1057
        %v1060 = vor.u32 %v1058, %v1059
        %v1061 = vsub.s32 4294967266, %v1056
        %v1062 = vadd.s32 %v1061, 127
        %v1063 = vshll.u32 %v1062, 23
        %v1064 = vor.u32 4788187, %v1063
        %v1065 = vand.u32 2147483647, %v1064
        %v1067 = vcvt.s32.f32 %v1060
        %v1068 = vmul.f32 %v1067, %v1065
        %v1069 = vxor.u32 %v1068, 2147483648
        %v1070 = vsel %vm987, %v1069, %v1068
        %v1071 = vsub.s32 4, %v1047
        %v1072 = vsel %vm987, %v1071, %v1047
        %v1073 = vsel %vm986, %v671, %v1070
        %v1074 = vsel %vm986, 0, %v1072
        %v1075 = vcosq.f32.pop %v1073
        %v1076 = vsinq.f32.pop %v1073
        %vm1077 = vweird.f32 %v671
        %v1078 = vand.u32 %v1074, 3
        %vm1079 = vcmp.lt.s32.totalorder %v1078, 2
        %vm1080 = vcmp.eq.s32.totalorder %v1078, 0
        %v1081 = vxor.u32 %v1076, 2147483648
        %v1082 = vsel %vm1080, %v1075, %v1081
        %vm1083 = vcmp.eq.s32.totalorder %v1078, 2
        %v1084 = vxor.u32 %v1075, 2147483648
        %v1085 = vsel %vm1083, %v1084, %v1076
        %v1086 = vsel %vm1079, %v1082, %v1085
        %v1087 = vsel %vm1077, nan, %v1086
        %v1088 = vand.u32 2147483647, %v672
        %vm1089 = vcmp.le.f32.partialorder %v1088, 0.7853982
        %vm1090 = vcmp.lt.s32.totalorder %v672, 0
        %v1091 = vand.u32 %v672, 2139095040
        %v1092 = vshrl.u32 %v1091, 23
        %v1093 = vsub.s32 %v1092, 127
        %v1094 = vand.u32 2147483647, %v672
        %v1095 = vand.u32 %v1094, 8388607
        %v1096 = vor.u32 %v1095, 8388608
        %v1097 = vsub.s32 0, %v1096
        %v1098 = vadd.s32 %v1093, 1
        %vm1099 = vcmp.gt.s32.totalorder %v1098, 0
        %v1100 = vsel %vm1099, %v1098, 0
        %v1101 = vshrl.u32 %v1100, 5
        %v1102 = vand.u32 %v1100, 31
        %v1103 = vsub.s32 32, %v1102
        %v1104 = vshrl.u32 683565275, %v1103
        %v1105 = vshll.u32 683565275, %v1102
        %v1106 = vshrl.u32 2475754826, %v1103
        %v1107 = vor.u32 %v1105, %v1106
        %v1108 = vshll.u32 2475754826, %v1102
        %v1109 = vshrl.u32 2131351028, %v1103
        %v1110 = vor.u32 %v1108, %v1109
        %v1111 = vshll.u32 2131351028, %v1102
        %v1112 = vshrl.u32 2102212464, %v1103
        %v1113 = vor.u32 %v1111, %v1112
        %v1114 = vshll.u32 2102212464, %v1102
        %v1115 = vshrl.u32 920167782, %v1103
        %v1116 = vor.u32 %v1114, %v1115
        %v1117 = vshll.u32 920167782, %v1102
        %v1118 = vshrl.u32 1326507024, %v1103
        %v1119 = vor.u32 %v1117, %v1118
        %vm1120 = vcmp.lt.s32.totalorder %v1101, 1
        %vm1121 = vcmp.lt.s32.totalorder %v1101, 2
        %vm1122 = vcmp.lt.s32.totalorder %v1101, 3
        %vm1123 = vcmp.lt.s32.totalorder %v1101, 4
        %v1124 = vsel %vm1120, %v1104, %v1107
        %v1125 = vsel %vm1123, %v1113, 2102212464
        %v1126 = vsel %vm1122, %v1110, %v1125
        %v1127 = vsel %vm1121, %v1124, %v1126
        %v1128 = vsel %vm1120, %v1107, %v1110
        %v1129 = vsel %vm1123, %v1116, 920167782
        %v1130 = vsel %vm1122, %v1113, %v1129
        %v1131 = vsel %vm1121, %v1128, %v1130
        %v1132 = vsel %vm1120, %v1110, %v1113
        %v1133 = vsel %vm1123, %v1119, 1326507024
        %v1134 = vsel %vm1122, %v1116, %v1133
        %v1135 = vsel %vm1121, %v1132, %v1134
        %v1136 = vshll.u32 %v1096, 8
        %v1137 = vmul.u32.u64.compose %v1136, %v1135
        %v1138 = vextract.low.u32 %v1137
        %v1139 = vextract.high.u32 %v1137
        %v1140 = vmul.u32.u64.compose %v1136, %v1131
        %v1141 = vextract.low.u32 %v1140
        %v1142 = vextract.high.u32 %v1140
        %v1143 = vmul.u32 %v1136, %v1127
        %v1144 = vadd.s32 %v1139, %v1141
        %vm1145 = vc.u32 %v1139, %v1141
        %v1146 = vadd.s32 %v1142, 1
        %v1147 = vsel %vm1145, %v1146, %v1142
        %v1148 = vadd.s32 %v1143, %v1147
        %v1149 = vadd.s32 %v1148, 536870912
        %v1150 = vshrl.u32 %v1149, 30
        %v1151 = vshll.u32 %v1150, 30
        %v1152 = vsub.s32 %v1148, %v1151
        %vm1153 = vcmp.lt.s32.totalorder %v1152, 0
        %v1154 = vsub.s32 0, %v1152
        %v1155 = vsel %vm1153, %v1154, %v1152
        %v1156 = vclz %v1155
        %v1157 = vsub.s32 %v1156, 2
        %vm1158 = vcmp.gt.s32.totalorder 0, %v1157
        %v1159 = vsel %vm1158, 0, %v1157
        %v1160 = vsub.s32 32, %v1159
        %v1161 = vshll.u32 %v1152, %v1159
        %v1162 = vshrl.u32 %v1144, %v1160
        %v1163 = vor.u32 %v1161, %v1162
        %v1164 = vsub.s32 4294967266, %v1159
        %v1165 = vadd.s32 %v1164, 127
        %v1166 = vshll.u32 %v1165, 23
        %v1167 = vor.u32 4788187, %v1166
        %v1168 = vand.u32 2147483647, %v1167
        %v1170 = vcvt.s32.f32 %v1163
        %v1171 = vmul.f32 %v1170, %v1168
        %v1172 = vxor.u32 %v1171, 2147483648
        %v1173 = vsel %vm1090, %v1172, %v1171
        %v1174 = vsub.s32 4, %v1150
        %v1175 = vsel %vm1090, %v1174, %v1150
        %v1176 = vsel %vm1089, %v672, %v1173
        %v1177 = vsel %vm1089, 0, %v1175
        %v1178 = vcosq.f32.pop %v1176
        %v1179 = vsinq.f32.pop %v1176
        %vm1180 = vweird.f32 %v672
        %v1181 = vand.u32 %v1177, 3
        %vm1182 = vcmp.lt.s32.totalorder %v1181, 2
        %vm1183 = vcmp.eq.s32.totalorder %v1181, 0
        %v1184 = vxor.u32 %v1179, 2147483648
        %v1185 = vsel %vm1183, %v1178, %v1184
        %vm1186 = vcmp.eq.s32.totalorder %v1181, 2
        %v1187 = vxor.u32 %v1178, 2147483648
        %v1188 = vsel %vm1186, %v1187, %v1179
        %v1189 = vsel %vm1182, %v1185, %v1188
        %v1190 = vsel %vm1180, nan, %v1189
        %v1191 = vand.u32 2147483647, %v673
        %vm1192 = vcmp.le.f32.partialorder %v1191, 0.7853982
        %vm1193 = vcmp.lt.s32.totalorder %v673, 0
        %v1194 = vand.u32 %v673, 2139095040
        %v1195 = vshrl.u32 %v1194, 23
        %v1196 = vsub.s32 %v1195, 127
        %v1197 = vand.u32 2147483647, %v673
        %v1198 = vand.u32 %v1197, 8388607
        %v1199 = vor.u32 %v1198, 8388608
        %v1200 = vsub.s32 0, %v1199
        %v1201 = vadd.s32 %v1196, 1
        %vm1202 = vcmp.gt.s32.totalorder %v1201, 0
        %v1203 = vsel %vm1202, %v1201, 0
        %v1204 = vshrl.u32 %v1203, 5
        %v1205 = vand.u32 %v1203, 31
        %v1206 = vsub.s32 32, %v1205
        %v1207 = vshrl.u32 683565275, %v1206
        %v1208 = vshll.u32 683565275, %v1205
        %v1209 = vshrl.u32 2475754826, %v1206
        %v1210 = vor.u32 %v1208, %v1209
        %v1211 = vshll.u32 2475754826, %v1205
        %v1212 = vshrl.u32 2131351028, %v1206
        %v1213 = vor.u32 %v1211, %v1212
        %v1214 = vshll.u32 2131351028, %v1205
        %v1215 = vshrl.u32 2102212464, %v1206
        %v1216 = vor.u32 %v1214, %v1215
        %v1217 = vshll.u32 2102212464, %v1205
        %v1218 = vshrl.u32 920167782, %v1206
        %v1219 = vor.u32 %v1217, %v1218
        %v1220 = vshll.u32 920167782, %v1205
        %v1221 = vshrl.u32 1326507024, %v1206
        %v1222 = vor.u32 %v1220, %v1221
        %vm1223 = vcmp.lt.s32.totalorder %v1204, 1
        %vm1224 = vcmp.lt.s32.totalorder %v1204, 2
        %vm1225 = vcmp.lt.s32.totalorder %v1204, 3
        %vm1226 = vcmp.lt.s32.totalorder %v1204, 4
        %v1227 = vsel %vm1223, %v1207, %v1210
        %v1228 = vsel %vm1226, %v1216, 2102212464
        %v1229 = vsel %vm1225, %v1213, %v1228
        %v1230 = vsel %vm1224, %v1227, %v1229
        %v1231 = vsel %vm1223, %v1210, %v1213
        %v1232 = vsel %vm1226, %v1219, 920167782
        %v1233 = vsel %vm1225, %v1216, %v1232
        %v1234 = vsel %vm1224, %v1231, %v1233
        %v1235 = vsel %vm1223, %v1213, %v1216
        %v1236 = vsel %vm1226, %v1222, 1326507024
        %v1237 = vsel %vm1225, %v1219, %v1236
        %v1238 = vsel %vm1224, %v1235, %v1237
        %v1239 = vshll.u32 %v1199, 8
        %v1240 = vmul.u32.u64.compose %v1239, %v1238
        %v1241 = vextract.low.u32 %v1240
        %v1242 = vextract.high.u32 %v1240
        %v1243 = vmul.u32.u64.compose %v1239, %v1234
        %v1244 = vextract.low.u32 %v1243
        %v1245 = vextract.high.u32 %v1243
        %v1246 = vmul.u32 %v1239, %v1230
        %v1247 = vadd.s32 %v1242, %v1244
        %vm1248 = vc.u32 %v1242, %v1244
        %v1249 = vadd.s32 %v1245, 1
        %v1250 = vsel %vm1248, %v1249, %v1245
        %v1251 = vadd.s32 %v1246, %v1250
        %v1252 = vadd.s32 %v1251, 536870912
        %v1253 = vshrl.u32 %v1252, 30
        %v1254 = vshll.u32 %v1253, 30
        %v1255 = vsub.s32 %v1251, %v1254
        %vm1256 = vcmp.lt.s32.totalorder %v1255, 0
        %v1257 = vsub.s32 0, %v1255
        %v1258 = vsel %vm1256, %v1257, %v1255
        %v1259 = vclz %v1258
        %v1260 = vsub.s32 %v1259, 2
        %vm1261 = vcmp.gt.s32.totalorder 0, %v1260
        %v1262 = vsel %vm1261, 0, %v1260
        %v1263 = vsub.s32 32, %v1262
        %v1264 = vshll.u32 %v1255, %v1262
        %v1265 = vshrl.u32 %v1247, %v1263
        %v1266 = vor.u32 %v1264, %v1265
        %v1267 = vsub.s32 4294967266, %v1262
        %v1268 = vadd.s32 %v1267, 127
        %v1269 = vshll.u32 %v1268, 23
        %v1270 = vor.u32 4788187, %v1269
        %v1271 = vand.u32 2147483647, %v1270
        %v1273 = vcvt.s32.f32 %v1266
        %v1274 = vmul.f32 %v1273, %v1271
        %v1275 = vxor.u32 %v1274, 2147483648
        %v1276 = vsel %vm1193, %v1275, %v1274
        %v1277 = vsub.s32 4, %v1253
        %v1278 = vsel %vm1193, %v1277, %v1253
        %v1279 = vsel %vm1192, %v673, %v1276
        %v1280 = vsel %vm1192, 0, %v1278
        %v1281 = vcosq.f32.pop %v1279
        %v1282 = vsinq.f32.pop %v1279
        %vm1283 = vweird.f32 %v673
        %v1284 = vand.u32 %v1280, 3
        %vm1285 = vcmp.lt.s32.totalorder %v1284, 2
        %vm1286 = vcmp.eq.s32.totalorder %v1284, 0
        %v1287 = vxor.u32 %v1282, 2147483648
        %v1288 = vsel %vm1286, %v1281, %v1287
        %vm1289 = vcmp.eq.s32.totalorder %v1284, 2
        %v1290 = vxor.u32 %v1281, 2147483648
        %v1291 = vsel %vm1289, %v1290, %v1282
        %v1292 = vsel %vm1285, %v1288, %v1291
        %v1293 = vsel %vm1283, nan, %v1292
        %v1294 = vand.u32 2147483647, %v674
        %vm1295 = vcmp.le.f32.partialorder %v1294, 0.7853982
        %vm1296 = vcmp.lt.s32.totalorder %v674, 0
        %v1297 = vand.u32 %v674, 2139095040
        %v1298 = vshrl.u32 %v1297, 23
        %v1299 = vsub.s32 %v1298, 127
        %v1300 = vand.u32 2147483647, %v674
        %v1301 = vand.u32 %v1300, 8388607
        %v1302 = vor.u32 %v1301, 8388608
        %v1303 = vsub.s32 0, %v1302
        %v1304 = vadd.s32 %v1299, 1
        %vm1305 = vcmp.gt.s32.totalorder %v1304, 0
        %v1306 = vsel %vm1305, %v1304, 0
        %v1307 = vshrl.u32 %v1306, 5
        %v1308 = vand.u32 %v1306, 31
        %v1309 = vsub.s32 32, %v1308
        %v1310 = vshrl.u32 683565275, %v1309
        %v1311 = vshll.u32 683565275, %v1308
        %v1312 = vshrl.u32 2475754826, %v1309
        %v1313 = vor.u32 %v1311, %v1312
        %v1314 = vshll.u32 2475754826, %v1308
        %v1315 = vshrl.u32 2131351028, %v1309
        %v1316 = vor.u32 %v1314, %v1315
        %v1317 = vshll.u32 2131351028, %v1308
        %v1318 = vshrl.u32 2102212464, %v1309
        %v1319 = vor.u32 %v1317, %v1318
        %v1320 = vshll.u32 2102212464, %v1308
        %v1321 = vshrl.u32 920167782, %v1309
        %v1322 = vor.u32 %v1320, %v1321
        %v1323 = vshll.u32 920167782, %v1308
        %v1324 = vshrl.u32 1326507024, %v1309
        %v1325 = vor.u32 %v1323, %v1324
        %vm1326 = vcmp.lt.s32.totalorder %v1307, 1
        %vm1327 = vcmp.lt.s32.totalorder %v1307, 2
        %vm1328 = vcmp.lt.s32.totalorder %v1307, 3
        %vm1329 = vcmp.lt.s32.totalorder %v1307, 4
        %v1330 = vsel %vm1326, %v1310, %v1313
        %v1331 = vsel %vm1329, %v1319, 2102212464
        %v1332 = vsel %vm1328, %v1316, %v1331
        %v1333 = vsel %vm1327, %v1330, %v1332
        %v1334 = vsel %vm1326, %v1313, %v1316
        %v1335 = vsel %vm1329, %v1322, 920167782
        %v1336 = vsel %vm1328, %v1319, %v1335
        %v1337 = vsel %vm1327, %v1334, %v1336
        %v1338 = vsel %vm1326, %v1316, %v1319
        %v1339 = vsel %vm1329, %v1325, 1326507024
        %v1340 = vsel %vm1328, %v1322, %v1339
        %v1341 = vsel %vm1327, %v1338, %v1340
        %v1342 = vshll.u32 %v1302, 8
        %v1343 = vmul.u32.u64.compose %v1342, %v1341
        %v1344 = vextract.low.u32 %v1343
        %v1345 = vextract.high.u32 %v1343
        %v1346 = vmul.u32.u64.compose %v1342, %v1337
        %v1347 = vextract.low.u32 %v1346
        %v1348 = vextract.high.u32 %v1346
        %v1349 = vmul.u32 %v1342, %v1333
        %v1350 = vadd.s32 %v1345, %v1347
        %vm1351 = vc.u32 %v1345, %v1347
        %v1352 = vadd.s32 %v1348, 1
        %v1353 = vsel %vm1351, %v1352, %v1348
        %v1354 = vadd.s32 %v1349, %v1353
        %v1355 = vadd.s32 %v1354, 536870912
        %v1356 = vshrl.u32 %v1355, 30
        %v1357 = vshll.u32 %v1356, 30
        %v1358 = vsub.s32 %v1354, %v1357
        %vm1359 = vcmp.lt.s32.totalorder %v1358, 0
        %v1360 = vsub.s32 0, %v1358
        %v1361 = vsel %vm1359, %v1360, %v1358
        %v1362 = vclz %v1361
        %v1363 = vsub.s32 %v1362, 2
        %vm1364 = vcmp.gt.s32.totalorder 0, %v1363
        %v1365 = vsel %vm1364, 0, %v1363
        %v1366 = vsub.s32 32, %v1365
        %v1367 = vshll.u32 %v1358, %v1365
        %v1368 = vshrl.u32 %v1350, %v1366
        %v1369 = vor.u32 %v1367, %v1368
        %v1370 = vsub.s32 4294967266, %v1365
        %v1371 = vadd.s32 %v1370, 127
        %v1372 = vshll.u32 %v1371, 23
        %v1373 = vor.u32 4788187, %v1372
        %v1374 = vand.u32 2147483647, %v1373
        %v1376 = vcvt.s32.f32 %v1369
        %v1377 = vmul.f32 %v1376, %v1374
        %v1378 = vxor.u32 %v1377, 2147483648
        %v1379 = vsel %vm1296, %v1378, %v1377
        %v1380 = vsub.s32 4, %v1356
        %v1381 = vsel %vm1296, %v1380, %v1356
        %v1382 = vsel %vm1295, %v674, %v1379
        %v1383 = vsel %vm1295, 0, %v1381
        %v1384 = vcosq.f32.pop %v1382
        %v1385 = vsinq.f32.pop %v1382
        %vm1386 = vweird.f32 %v674
        %v1387 = vand.u32 %v1383, 3
        %vm1388 = vcmp.lt.s32.totalorder %v1387, 2
        %vm1389 = vcmp.eq.s32.totalorder %v1387, 0
        %v1390 = vxor.u32 %v1385, 2147483648
        %v1391 = vsel %vm1389, %v1384, %v1390
        %vm1392 = vcmp.eq.s32.totalorder %v1387, 2
        %v1393 = vxor.u32 %v1384, 2147483648
        %v1394 = vsel %vm1392, %v1393, %v1385
        %v1395 = vsel %vm1388, %v1391, %v1394
        %v1396 = vsel %vm1386, nan, %v1395
        %v1397 = vand.u32 2147483647, %v675
        %vm1398 = vcmp.le.f32.partialorder %v1397, 0.7853982
        %vm1399 = vcmp.lt.s32.totalorder %v675, 0
        %v1400 = vand.u32 %v675, 2139095040
        %v1401 = vshrl.u32 %v1400, 23
        %v1402 = vsub.s32 %v1401, 127
        %v1403 = vand.u32 2147483647, %v675
        %v1404 = vand.u32 %v1403, 8388607
        %v1405 = vor.u32 %v1404, 8388608
        %v1406 = vsub.s32 0, %v1405
        %v1407 = vadd.s32 %v1402, 1
        %vm1408 = vcmp.gt.s32.totalorder %v1407, 0
        %v1409 = vsel %vm1408, %v1407, 0
        %v1410 = vshrl.u32 %v1409, 5
        %v1411 = vand.u32 %v1409, 31
        %v1412 = vsub.s32 32, %v1411
        %v1413 = vshrl.u32 683565275, %v1412
        %v1414 = vshll.u32 683565275, %v1411
        %v1415 = vshrl.u32 2475754826, %v1412
        %v1416 = vor.u32 %v1414, %v1415
        %v1417 = vshll.u32 2475754826, %v1411
        %v1418 = vshrl.u32 2131351028, %v1412
        %v1419 = vor.u32 %v1417, %v1418
        %v1420 = vshll.u32 2131351028, %v1411
        %v1421 = vshrl.u32 2102212464, %v1412
        %v1422 = vor.u32 %v1420, %v1421
        %v1423 = vshll.u32 2102212464, %v1411
        %v1424 = vshrl.u32 920167782, %v1412
        %v1425 = vor.u32 %v1423, %v1424
        %v1426 = vshll.u32 920167782, %v1411
        %v1427 = vshrl.u32 1326507024, %v1412
        %v1428 = vor.u32 %v1426, %v1427
        %vm1429 = vcmp.lt.s32.totalorder %v1410, 1
        %vm1430 = vcmp.lt.s32.totalorder %v1410, 2
        %vm1431 = vcmp.lt.s32.totalorder %v1410, 3
        %vm1432 = vcmp.lt.s32.totalorder %v1410, 4
        %v1433 = vsel %vm1429, %v1413, %v1416
        %v1434 = vsel %vm1432, %v1422, 2102212464
        %v1435 = vsel %vm1431, %v1419, %v1434
        %v1436 = vsel %vm1430, %v1433, %v1435
        %v1437 = vsel %vm1429, %v1416, %v1419
        %v1438 = vsel %vm1432, %v1425, 920167782
        %v1439 = vsel %vm1431, %v1422, %v1438
        %v1440 = vsel %vm1430, %v1437, %v1439
        %v1441 = vsel %vm1429, %v1419, %v1422
        %v1442 = vsel %vm1432, %v1428, 1326507024
        %v1443 = vsel %vm1431, %v1425, %v1442
        %v1444 = vsel %vm1430, %v1441, %v1443
        %v1445 = vshll.u32 %v1405, 8
        %v1446 = vmul.u32.u64.compose %v1445, %v1444
        %v1447 = vextract.low.u32 %v1446
        %v1448 = vextract.high.u32 %v1446
        %v1449 = vmul.u32.u64.compose %v1445, %v1440
        %v1450 = vextract.low.u32 %v1449
        %v1451 = vextract.high.u32 %v1449
        %v1452 = vmul.u32 %v1445, %v1436
        %v1453 = vadd.s32 %v1448, %v1450
        %vm1454 = vc.u32 %v1448, %v1450
        %v1455 = vadd.s32 %v1451, 1
        %v1456 = vsel %vm1454, %v1455, %v1451
        %v1457 = vadd.s32 %v1452, %v1456
        %v1458 = vadd.s32 %v1457, 536870912
        %v1459 = vshrl.u32 %v1458, 30
        %v1460 = vshll.u32 %v1459, 30
        %v1461 = vsub.s32 %v1457, %v1460
        %vm1462 = vcmp.lt.s32.totalorder %v1461, 0
        %v1463 = vsub.s32 0, %v1461
        %v1464 = vsel %vm1462, %v1463, %v1461
        %v1465 = vclz %v1464
        %v1466 = vsub.s32 %v1465, 2
        %vm1467 = vcmp.gt.s32.totalorder 0, %v1466
        %v1468 = vsel %vm1467, 0, %v1466
        %v1469 = vsub.s32 32, %v1468
        %v1470 = vshll.u32 %v1461, %v1468
        %v1471 = vshrl.u32 %v1453, %v1469
        %v1472 = vor.u32 %v1470, %v1471
        %v1473 = vsub.s32 4294967266, %v1468
        %v1474 = vadd.s32 %v1473, 127
        %v1475 = vshll.u32 %v1474, 23
        %v1476 = vor.u32 4788187, %v1475
        %v1477 = vand.u32 2147483647, %v1476
        %v1479 = vcvt.s32.f32 %v1472
        %v1480 = vmul.f32 %v1479, %v1477
        %v1481 = vxor.u32 %v1480, 2147483648
        %v1482 = vsel %vm1399, %v1481, %v1480
        %v1483 = vsub.s32 4, %v1459
        %v1484 = vsel %vm1399, %v1483, %v1459
        %v1485 = vsel %vm1398, %v675, %v1482
        %v1486 = vsel %vm1398, 0, %v1484
        %v1487 = vcosq.f32.pop %v1485
        %v1488 = vsinq.f32.pop %v1485
        %vm1489 = vweird.f32 %v675
        %v1490 = vand.u32 %v1486, 3
        %vm1491 = vcmp.lt.s32.totalorder %v1490, 2
        %vm1492 = vcmp.eq.s32.totalorder %v1490, 0
        %v1493 = vxor.u32 %v1488, 2147483648
        %v1494 = vsel %vm1492, %v1487, %v1493
        %vm1495 = vcmp.eq.s32.totalorder %v1490, 2
        %v1496 = vxor.u32 %v1487, 2147483648
        %v1497 = vsel %vm1495, %v1496, %v1488
        %v1498 = vsel %vm1491, %v1494, %v1497
        %v1499 = vsel %vm1489, nan, %v1498
        %v1500 = vmul.f32 %v660, %v778
        %v1501 = vmul.f32 %v661, %v881
        %v1502 = vmul.f32 %v662, %v984
        %v1503 = vmul.f32 %v663, %v1087
        %v1504 = vmul.f32 %v664, %v1190
        %v1505 = vmul.f32 %v665, %v1293
        %v1506 = vmul.f32 %v666, %v1396
        %v1507 = vmul.f32 %v667, %v1499
        %v1508 = vand.u32 2147483647, %v668
        %vm1509 = vcmp.le.f32.partialorder %v1508, 0.7853982
        %vm1510 = vcmp.lt.s32.totalorder %v668, 0
        %v1511 = vand.u32 %v668, 2139095040
        %v1512 = vshrl.u32 %v1511, 23
        %v1513 = vsub.s32 %v1512, 127
        %v1514 = vand.u32 2147483647, %v668
        %v1515 = vand.u32 %v1514, 8388607
        %v1516 = vor.u32 %v1515, 8388608
        %v1517 = vsub.s32 0, %v1516
        %v1518 = vadd.s32 %v1513, 1
        %vm1519 = vcmp.gt.s32.totalorder %v1518, 0
        %v1520 = vsel %vm1519, %v1518, 0
        %v1521 = vshrl.u32 %v1520, 5
        %v1522 = vand.u32 %v1520, 31
        %v1523 = vsub.s32 32, %v1522
        %v1524 = vshrl.u32 683565275, %v1523
        %v1525 = vshll.u32 683565275, %v1522
        %v1526 = vshrl.u32 2475754826, %v1523
        %v1527 = vor.u32 %v1525, %v1526
        %v1528 = vshll.u32 2475754826, %v1522
        %v1529 = vshrl.u32 2131351028, %v1523
        %v1530 = vor.u32 %v1528, %v1529
        %v1531 = vshll.u32 2131351028, %v1522
        %v1532 = vshrl.u32 2102212464, %v1523
        %v1533 = vor.u32 %v1531, %v1532
        %v1534 = vshll.u32 2102212464, %v1522
        %v1535 = vshrl.u32 920167782, %v1523
        %v1536 = vor.u32 %v1534, %v1535
        %v1537 = vshll.u32 920167782, %v1522
        %v1538 = vshrl.u32 1326507024, %v1523
        %v1539 = vor.u32 %v1537, %v1538
        %vm1540 = vcmp.lt.s32.totalorder %v1521, 1
        %vm1541 = vcmp.lt.s32.totalorder %v1521, 2
        %vm1542 = vcmp.lt.s32.totalorder %v1521, 3
        %vm1543 = vcmp.lt.s32.totalorder %v1521, 4
        %v1544 = vsel %vm1540, %v1524, %v1527
        %v1545 = vsel %vm1543, %v1533, 2102212464
        %v1546 = vsel %vm1542, %v1530, %v1545
        %v1547 = vsel %vm1541, %v1544, %v1546
        %v1548 = vsel %vm1540, %v1527, %v1530
        %v1549 = vsel %vm1543, %v1536, 920167782
        %v1550 = vsel %vm1542, %v1533, %v1549
        %v1551 = vsel %vm1541, %v1548, %v1550
        %v1552 = vsel %vm1540, %v1530, %v1533
        %v1553 = vsel %vm1543, %v1539, 1326507024
        %v1554 = vsel %vm1542, %v1536, %v1553
        %v1555 = vsel %vm1541, %v1552, %v1554
        %v1556 = vshll.u32 %v1516, 8
        %v1557 = vmul.u32.u64.compose %v1556, %v1555
        %v1558 = vextract.low.u32 %v1557
        %v1559 = vextract.high.u32 %v1557
        %v1560 = vmul.u32.u64.compose %v1556, %v1551
        %v1561 = vextract.low.u32 %v1560
        %v1562 = vextract.high.u32 %v1560
        %v1563 = vmul.u32 %v1556, %v1547
        %v1564 = vadd.s32 %v1559, %v1561
        %vm1565 = vc.u32 %v1559, %v1561
        %v1566 = vadd.s32 %v1562, 1
        %v1567 = vsel %vm1565, %v1566, %v1562
        %v1568 = vadd.s32 %v1563, %v1567
        %v1569 = vadd.s32 %v1568, 536870912
        %v1570 = vshrl.u32 %v1569, 30
        %v1571 = vshll.u32 %v1570, 30
        %v1572 = vsub.s32 %v1568, %v1571
        %vm1573 = vcmp.lt.s32.totalorder %v1572, 0
        %v1574 = vsub.s32 0, %v1572
        %v1575 = vsel %vm1573, %v1574, %v1572
        %v1576 = vclz %v1575
        %v1577 = vsub.s32 %v1576, 2
        %vm1578 = vcmp.gt.s32.totalorder 0, %v1577
        %v1579 = vsel %vm1578, 0, %v1577
        %v1580 = vsub.s32 32, %v1579
        %v1581 = vshll.u32 %v1572, %v1579
        %v1582 = vshrl.u32 %v1564, %v1580
        %v1583 = vor.u32 %v1581, %v1582
        %v1584 = vsub.s32 4294967266, %v1579
        %v1585 = vadd.s32 %v1584, 127
        %v1586 = vshll.u32 %v1585, 23
        %v1587 = vor.u32 4788187, %v1586
        %v1588 = vand.u32 2147483647, %v1587
        %v1590 = vcvt.s32.f32 %v1583
        %v1591 = vmul.f32 %v1590, %v1588
        %v1592 = vxor.u32 %v1591, 2147483648
        %v1593 = vsel %vm1510, %v1592, %v1591
        %v1594 = vsub.s32 4, %v1570
        %v1595 = vsel %vm1510, %v1594, %v1570
        %v1596 = vsel %vm1509, %v668, %v1593
        %v1597 = vsel %vm1509, 0, %v1595
        %v1598 = vcosq.f32.pop %v1596
        %v1599 = vsinq.f32.pop %v1596
        %vm1600 = vweird.f32 %v668
        %v1601 = vadd.s32 %v1597, 3
        %v1602 = vand.u32 %v1601, 3
        %vm1603 = vcmp.lt.s32.totalorder %v1602, 2
        %vm1604 = vcmp.eq.s32.totalorder %v1602, 0
        %v1605 = vxor.u32 %v1599, 2147483648
        %v1606 = vsel %vm1604, %v1598, %v1605
        %vm1607 = vcmp.eq.s32.totalorder %v1602, 2
        %v1608 = vxor.u32 %v1598, 2147483648
        %v1609 = vsel %vm1607, %v1608, %v1599
        %v1610 = vsel %vm1603, %v1606, %v1609
        %v1611 = vsel %vm1600, nan, %v1610
        %v1612 = vand.u32 2147483647, %v669
        %vm1613 = vcmp.le.f32.partialorder %v1612, 0.7853982
        %vm1614 = vcmp.lt.s32.totalorder %v669, 0
        %v1615 = vand.u32 %v669, 2139095040
        %v1616 = vshrl.u32 %v1615, 23
        %v1617 = vsub.s32 %v1616, 127
        %v1618 = vand.u32 2147483647, %v669
        %v1619 = vand.u32 %v1618, 8388607
        %v1620 = vor.u32 %v1619, 8388608
        %v1621 = vsub.s32 0, %v1620
        %v1622 = vadd.s32 %v1617, 1
        %vm1623 = vcmp.gt.s32.totalorder %v1622, 0
        %v1624 = vsel %vm1623, %v1622, 0
        %v1625 = vshrl.u32 %v1624, 5
        %v1626 = vand.u32 %v1624, 31
        %v1627 = vsub.s32 32, %v1626
        %v1628 = vshrl.u32 683565275, %v1627
        %v1629 = vshll.u32 683565275, %v1626
        %v1630 = vshrl.u32 2475754826, %v1627
        %v1631 = vor.u32 %v1629, %v1630
        %v1632 = vshll.u32 2475754826, %v1626
        %v1633 = vshrl.u32 2131351028, %v1627
        %v1634 = vor.u32 %v1632, %v1633
        %v1635 = vshll.u32 2131351028, %v1626
        %v1636 = vshrl.u32 2102212464, %v1627
        %v1637 = vor.u32 %v1635, %v1636
        %v1638 = vshll.u32 2102212464, %v1626
        %v1639 = vshrl.u32 920167782, %v1627
        %v1640 = vor.u32 %v1638, %v1639
        %v1641 = vshll.u32 920167782, %v1626
        %v1642 = vshrl.u32 1326507024, %v1627
        %v1643 = vor.u32 %v1641, %v1642
        %vm1644 = vcmp.lt.s32.totalorder %v1625, 1
        %vm1645 = vcmp.lt.s32.totalorder %v1625, 2
        %vm1646 = vcmp.lt.s32.totalorder %v1625, 3
        %vm1647 = vcmp.lt.s32.totalorder %v1625, 4
        %v1648 = vsel %vm1644, %v1628, %v1631
        %v1649 = vsel %vm1647, %v1637, 2102212464
        %v1650 = vsel %vm1646, %v1634, %v1649
        %v1651 = vsel %vm1645, %v1648, %v1650
        %v1652 = vsel %vm1644, %v1631, %v1634
        %v1653 = vsel %vm1647, %v1640, 920167782
        %v1654 = vsel %vm1646, %v1637, %v1653
        %v1655 = vsel %vm1645, %v1652, %v1654
        %v1656 = vsel %vm1644, %v1634, %v1637
        %v1657 = vsel %vm1647, %v1643, 1326507024
        %v1658 = vsel %vm1646, %v1640, %v1657
        %v1659 = vsel %vm1645, %v1656, %v1658
        %v1660 = vshll.u32 %v1620, 8
        %v1661 = vmul.u32.u64.compose %v1660, %v1659
        %v1662 = vextract.low.u32 %v1661
        %v1663 = vextract.high.u32 %v1661
        %v1664 = vmul.u32.u64.compose %v1660, %v1655
        %v1665 = vextract.low.u32 %v1664
        %v1666 = vextract.high.u32 %v1664
        %v1667 = vmul.u32 %v1660, %v1651
        %v1668 = vadd.s32 %v1663, %v1665
        %vm1669 = vc.u32 %v1663, %v1665
        %v1670 = vadd.s32 %v1666, 1
        %v1671 = vsel %vm1669, %v1670, %v1666
        %v1672 = vadd.s32 %v1667, %v1671
        %v1673 = vadd.s32 %v1672, 536870912
        %v1674 = vshrl.u32 %v1673, 30
        %v1675 = vshll.u32 %v1674, 30
        %v1676 = vsub.s32 %v1672, %v1675
        %vm1677 = vcmp.lt.s32.totalorder %v1676, 0
        %v1678 = vsub.s32 0, %v1676
        %v1679 = vsel %vm1677, %v1678, %v1676
        %v1680 = vclz %v1679
        %v1681 = vsub.s32 %v1680, 2
        %vm1682 = vcmp.gt.s32.totalorder 0, %v1681
        %v1683 = vsel %vm1682, 0, %v1681
        %v1684 = vsub.s32 32, %v1683
        %v1685 = vshll.u32 %v1676, %v1683
        %v1686 = vshrl.u32 %v1668, %v1684
        %v1687 = vor.u32 %v1685, %v1686
        %v1688 = vsub.s32 4294967266, %v1683
        %v1689 = vadd.s32 %v1688, 127
        %v1690 = vshll.u32 %v1689, 23
        %v1691 = vor.u32 4788187, %v1690
        %v1692 = vand.u32 2147483647, %v1691
        %v1694 = vcvt.s32.f32 %v1687
        %v1695 = vmul.f32 %v1694, %v1692
        %v1696 = vxor.u32 %v1695, 2147483648
        %v1697 = vsel %vm1614, %v1696, %v1695
        %v1698 = vsub.s32 4, %v1674
        %v1699 = vsel %vm1614, %v1698, %v1674
        %v1700 = vsel %vm1613, %v669, %v1697
        %v1701 = vsel %vm1613, 0, %v1699
        %v1702 = vcosq.f32.pop %v1700
        %v1703 = vsinq.f32.pop %v1700
        %vm1704 = vweird.f32 %v669
        %v1705 = vadd.s32 %v1701, 3
        %v1706 = vand.u32 %v1705, 3
        %vm1707 = vcmp.lt.s32.totalorder %v1706, 2
        %vm1708 = vcmp.eq.s32.totalorder %v1706, 0
        %v1709 = vxor.u32 %v1703, 2147483648
        %v1710 = vsel %vm1708, %v1702, %v1709
        %vm1711 = vcmp.eq.s32.totalorder %v1706, 2
        %v1712 = vxor.u32 %v1702, 2147483648
        %v1713 = vsel %vm1711, %v1712, %v1703
        %v1714 = vsel %vm1707, %v1710, %v1713
        %v1715 = vsel %vm1704, nan, %v1714
        %v1716 = vand.u32 2147483647, %v670
        %vm1717 = vcmp.le.f32.partialorder %v1716, 0.7853982
        %vm1718 = vcmp.lt.s32.totalorder %v670, 0
        %v1719 = vand.u32 %v670, 2139095040
        %v1720 = vshrl.u32 %v1719, 23
        %v1721 = vsub.s32 %v1720, 127
        %v1722 = vand.u32 2147483647, %v670
        %v1723 = vand.u32 %v1722, 8388607
        %v1724 = vor.u32 %v1723, 8388608
        %v1725 = vsub.s32 0, %v1724
        %v1726 = vadd.s32 %v1721, 1
        %vm1727 = vcmp.gt.s32.totalorder %v1726, 0
        %v1728 = vsel %vm1727, %v1726, 0
        %v1729 = vshrl.u32 %v1728, 5
        %v1730 = vand.u32 %v1728, 31
        %v1731 = vsub.s32 32, %v1730
        %v1732 = vshrl.u32 683565275, %v1731
        %v1733 = vshll.u32 683565275, %v1730
        %v1734 = vshrl.u32 2475754826, %v1731
        %v1735 = vor.u32 %v1733, %v1734
        %v1736 = vshll.u32 2475754826, %v1730
        %v1737 = vshrl.u32 2131351028, %v1731
        %v1738 = vor.u32 %v1736, %v1737
        %v1739 = vshll.u32 2131351028, %v1730
        %v1740 = vshrl.u32 2102212464, %v1731
        %v1741 = vor.u32 %v1739, %v1740
        %v1742 = vshll.u32 2102212464, %v1730
        %v1743 = vshrl.u32 920167782, %v1731
        %v1744 = vor.u32 %v1742, %v1743
        %v1745 = vshll.u32 920167782, %v1730
        %v1746 = vshrl.u32 1326507024, %v1731
        %v1747 = vor.u32 %v1745, %v1746
        %vm1748 = vcmp.lt.s32.totalorder %v1729, 1
        %vm1749 = vcmp.lt.s32.totalorder %v1729, 2
        %vm1750 = vcmp.lt.s32.totalorder %v1729, 3
        %vm1751 = vcmp.lt.s32.totalorder %v1729, 4
        %v1752 = vsel %vm1748, %v1732, %v1735
        %v1753 = vsel %vm1751, %v1741, 2102212464
        %v1754 = vsel %vm1750, %v1738, %v1753
        %v1755 = vsel %vm1749, %v1752, %v1754
        %v1756 = vsel %vm1748, %v1735, %v1738
        %v1757 = vsel %vm1751, %v1744, 920167782
        %v1758 = vsel %vm1750, %v1741, %v1757
        %v1759 = vsel %vm1749, %v1756, %v1758
        %v1760 = vsel %vm1748, %v1738, %v1741
        %v1761 = vsel %vm1751, %v1747, 1326507024
        %v1762 = vsel %vm1750, %v1744, %v1761
        %v1763 = vsel %vm1749, %v1760, %v1762
        %v1764 = vshll.u32 %v1724, 8
        %v1765 = vmul.u32.u64.compose %v1764, %v1763
        %v1766 = vextract.low.u32 %v1765
        %v1767 = vextract.high.u32 %v1765
        %v1768 = vmul.u32.u64.compose %v1764, %v1759
        %v1769 = vextract.low.u32 %v1768
        %v1770 = vextract.high.u32 %v1768
        %v1771 = vmul.u32 %v1764, %v1755
        %v1772 = vadd.s32 %v1767, %v1769
        %vm1773 = vc.u32 %v1767, %v1769
        %v1774 = vadd.s32 %v1770, 1
        %v1775 = vsel %vm1773, %v1774, %v1770
        %v1776 = vadd.s32 %v1771, %v1775
        %v1777 = vadd.s32 %v1776, 536870912
        %v1778 = vshrl.u32 %v1777, 30
        %v1779 = vshll.u32 %v1778, 30
        %v1780 = vsub.s32 %v1776, %v1779
        %vm1781 = vcmp.lt.s32.totalorder %v1780, 0
        %v1782 = vsub.s32 0, %v1780
        %v1783 = vsel %vm1781, %v1782, %v1780
        %v1784 = vclz %v1783
        %v1785 = vsub.s32 %v1784, 2
        %vm1786 = vcmp.gt.s32.totalorder 0, %v1785
        %v1787 = vsel %vm1786, 0, %v1785
        %v1788 = vsub.s32 32, %v1787
        %v1789 = vshll.u32 %v1780, %v1787
        %v1790 = vshrl.u32 %v1772, %v1788
        %v1791 = vor.u32 %v1789, %v1790
        %v1792 = vsub.s32 4294967266, %v1787
        %v1793 = vadd.s32 %v1792, 127
        %v1794 = vshll.u32 %v1793, 23
        %v1795 = vor.u32 4788187, %v1794
        %v1796 = vand.u32 2147483647, %v1795
        %v1798 = vcvt.s32.f32 %v1791
        %v1799 = vmul.f32 %v1798, %v1796
        %v1800 = vxor.u32 %v1799, 2147483648
        %v1801 = vsel %vm1718, %v1800, %v1799
        %v1802 = vsub.s32 4, %v1778
        %v1803 = vsel %vm1718, %v1802, %v1778
        %v1804 = vsel %vm1717, %v670, %v1801
        %v1805 = vsel %vm1717, 0, %v1803
        %v1806 = vcosq.f32.pop %v1804
        %v1807 = vsinq.f32.pop %v1804
        %vm1808 = vweird.f32 %v670
        %v1809 = vadd.s32 %v1805, 3
        %v1810 = vand.u32 %v1809, 3
        %vm1811 = vcmp.lt.s32.totalorder %v1810, 2
        %vm1812 = vcmp.eq.s32.totalorder %v1810, 0
        %v1813 = vxor.u32 %v1807, 2147483648
        %v1814 = vsel %vm1812, %v1806, %v1813
        %vm1815 = vcmp.eq.s32.totalorder %v1810, 2
        %v1816 = vxor.u32 %v1806, 2147483648
        %v1817 = vsel %vm1815, %v1816, %v1807
        %v1818 = vsel %vm1811, %v1814, %v1817
        %v1819 = vsel %vm1808, nan, %v1818
        %v1820 = vand.u32 2147483647, %v671
        %vm1821 = vcmp.le.f32.partialorder %v1820, 0.7853982
        %vm1822 = vcmp.lt.s32.totalorder %v671, 0
        %v1823 = vand.u32 %v671, 2139095040
        %v1824 = vshrl.u32 %v1823, 23
        %v1825 = vsub.s32 %v1824, 127
        %v1826 = vand.u32 2147483647, %v671
        %v1827 = vand.u32 %v1826, 8388607
        %v1828 = vor.u32 %v1827, 8388608
        %v1829 = vsub.s32 0, %v1828
        %v1830 = vadd.s32 %v1825, 1
        %vm1831 = vcmp.gt.s32.totalorder %v1830, 0
        %v1832 = vsel %vm1831, %v1830, 0
        %v1833 = vshrl.u32 %v1832, 5
        %v1834 = vand.u32 %v1832, 31
        %v1835 = vsub.s32 32, %v1834
        %v1836 = vshrl.u32 683565275, %v1835
        %v1837 = vshll.u32 683565275, %v1834
        %v1838 = vshrl.u32 2475754826, %v1835
        %v1839 = vor.u32 %v1837, %v1838
        %v1840 = vshll.u32 2475754826, %v1834
        %v1841 = vshrl.u32 2131351028, %v1835
        %v1842 = vor.u32 %v1840, %v1841
        %v1843 = vshll.u32 2131351028, %v1834
        %v1844 = vshrl.u32 2102212464, %v1835
        %v1845 = vor.u32 %v1843, %v1844
        %v1846 = vshll.u32 2102212464, %v1834
        %v1847 = vshrl.u32 920167782, %v1835
        %v1848 = vor.u32 %v1846, %v1847
        %v1849 = vshll.u32 920167782, %v1834
        %v1850 = vshrl.u32 1326507024, %v1835
        %v1851 = vor.u32 %v1849, %v1850
        %vm1852 = vcmp.lt.s32.totalorder %v1833, 1
        %vm1853 = vcmp.lt.s32.totalorder %v1833, 2
        %vm1854 = vcmp.lt.s32.totalorder %v1833, 3
        %vm1855 = vcmp.lt.s32.totalorder %v1833, 4
        %v1856 = vsel %vm1852, %v1836, %v1839
        %v1857 = vsel %vm1855, %v1845, 2102212464
        %v1858 = vsel %vm1854, %v1842, %v1857
        %v1859 = vsel %vm1853, %v1856, %v1858
        %v1860 = vsel %vm1852, %v1839, %v1842
        %v1861 = vsel %vm1855, %v1848, 920167782
        %v1862 = vsel %vm1854, %v1845, %v1861
        %v1863 = vsel %vm1853, %v1860, %v1862
        %v1864 = vsel %vm1852, %v1842, %v1845
        %v1865 = vsel %vm1855, %v1851, 1326507024
        %v1866 = vsel %vm1854, %v1848, %v1865
        %v1867 = vsel %vm1853, %v1864, %v1866
        %v1868 = vshll.u32 %v1828, 8
        %v1869 = vmul.u32.u64.compose %v1868, %v1867
        %v1870 = vextract.low.u32 %v1869
        %v1871 = vextract.high.u32 %v1869
        %v1872 = vmul.u32.u64.compose %v1868, %v1863
        %v1873 = vextract.low.u32 %v1872
        %v1874 = vextract.high.u32 %v1872
        %v1875 = vmul.u32 %v1868, %v1859
        %v1876 = vadd.s32 %v1871, %v1873
        %vm1877 = vc.u32 %v1871, %v1873
        %v1878 = vadd.s32 %v1874, 1
        %v1879 = vsel %vm1877, %v1878, %v1874
        %v1880 = vadd.s32 %v1875, %v1879
        %v1881 = vadd.s32 %v1880, 536870912
        %v1882 = vshrl.u32 %v1881, 30
        %v1883 = vshll.u32 %v1882, 30
        %v1884 = vsub.s32 %v1880, %v1883
        %vm1885 = vcmp.lt.s32.totalorder %v1884, 0
        %v1886 = vsub.s32 0, %v1884
        %v1887 = vsel %vm1885, %v1886, %v1884
        %v1888 = vclz %v1887
        %v1889 = vsub.s32 %v1888, 2
        %vm1890 = vcmp.gt.s32.totalorder 0, %v1889
        %v1891 = vsel %vm1890, 0, %v1889
        %v1892 = vsub.s32 32, %v1891
        %v1893 = vshll.u32 %v1884, %v1891
        %v1894 = vshrl.u32 %v1876, %v1892
        %v1895 = vor.u32 %v1893, %v1894
        %v1896 = vsub.s32 4294967266, %v1891
        %v1897 = vadd.s32 %v1896, 127
        %v1898 = vshll.u32 %v1897, 23
        %v1899 = vor.u32 4788187, %v1898
        %v1900 = vand.u32 2147483647, %v1899
        %v1902 = vcvt.s32.f32 %v1895
        %v1903 = vmul.f32 %v1902, %v1900
        %v1904 = vxor.u32 %v1903, 2147483648
        %v1905 = vsel %vm1822, %v1904, %v1903
        %v1906 = vsub.s32 4, %v1882
        %v1907 = vsel %vm1822, %v1906, %v1882
        %v1908 = vsel %vm1821, %v671, %v1905
        %v1909 = vsel %vm1821, 0, %v1907
        %v1910 = vcosq.f32.pop %v1908
        %v1911 = vsinq.f32.pop %v1908
        %vm1912 = vweird.f32 %v671
        %v1913 = vadd.s32 %v1909, 3
        %v1914 = vand.u32 %v1913, 3
        %vm1915 = vcmp.lt.s32.totalorder %v1914, 2
        %vm1916 = vcmp.eq.s32.totalorder %v1914, 0
        %v1917 = vxor.u32 %v1911, 2147483648
        %v1918 = vsel %vm1916, %v1910, %v1917
        %vm1919 = vcmp.eq.s32.totalorder %v1914, 2
        %v1920 = vxor.u32 %v1910, 2147483648
        %v1921 = vsel %vm1919, %v1920, %v1911
        %v1922 = vsel %vm1915, %v1918, %v1921
        %v1923 = vsel %vm1912, nan, %v1922
        %v1924 = vand.u32 2147483647, %v672
        %vm1925 = vcmp.le.f32.partialorder %v1924, 0.7853982
        %vm1926 = vcmp.lt.s32.totalorder %v672, 0
        %v1927 = vand.u32 %v672, 2139095040
        %v1928 = vshrl.u32 %v1927, 23
        %v1929 = vsub.s32 %v1928, 127
        %v1930 = vand.u32 2147483647, %v672
        %v1931 = vand.u32 %v1930, 8388607
        %v1932 = vor.u32 %v1931, 8388608
        %v1933 = vsub.s32 0, %v1932
        %v1934 = vadd.s32 %v1929, 1
        %vm1935 = vcmp.gt.s32.totalorder %v1934, 0
        %v1936 = vsel %vm1935, %v1934, 0
        %v1937 = vshrl.u32 %v1936, 5
        %v1938 = vand.u32 %v1936, 31
        %v1939 = vsub.s32 32, %v1938
        %v1940 = vshrl.u32 683565275, %v1939
        %v1941 = vshll.u32 683565275, %v1938
        %v1942 = vshrl.u32 2475754826, %v1939
        %v1943 = vor.u32 %v1941, %v1942
        %v1944 = vshll.u32 2475754826, %v1938
        %v1945 = vshrl.u32 2131351028, %v1939
        %v1946 = vor.u32 %v1944, %v1945
        %v1947 = vshll.u32 2131351028, %v1938
        %v1948 = vshrl.u32 2102212464, %v1939
        %v1949 = vor.u32 %v1947, %v1948
        %v1950 = vshll.u32 2102212464, %v1938
        %v1951 = vshrl.u32 920167782, %v1939
        %v1952 = vor.u32 %v1950, %v1951
        %v1953 = vshll.u32 920167782, %v1938
        %v1954 = vshrl.u32 1326507024, %v1939
        %v1955 = vor.u32 %v1953, %v1954
        %vm1956 = vcmp.lt.s32.totalorder %v1937, 1
        %vm1957 = vcmp.lt.s32.totalorder %v1937, 2
        %vm1958 = vcmp.lt.s32.totalorder %v1937, 3
        %vm1959 = vcmp.lt.s32.totalorder %v1937, 4
        %v1960 = vsel %vm1956, %v1940, %v1943
        %v1961 = vsel %vm1959, %v1949, 2102212464
        %v1962 = vsel %vm1958, %v1946, %v1961
        %v1963 = vsel %vm1957, %v1960, %v1962
        %v1964 = vsel %vm1956, %v1943, %v1946
        %v1965 = vsel %vm1959, %v1952, 920167782
        %v1966 = vsel %vm1958, %v1949, %v1965
        %v1967 = vsel %vm1957, %v1964, %v1966
        %v1968 = vsel %vm1956, %v1946, %v1949
        %v1969 = vsel %vm1959, %v1955, 1326507024
        %v1970 = vsel %vm1958, %v1952, %v1969
        %v1971 = vsel %vm1957, %v1968, %v1970
        %v1972 = vshll.u32 %v1932, 8
        %v1973 = vmul.u32.u64.compose %v1972, %v1971
        %v1974 = vextract.low.u32 %v1973
        %v1975 = vextract.high.u32 %v1973
        %v1976 = vmul.u32.u64.compose %v1972, %v1967
        %v1977 = vextract.low.u32 %v1976
        %v1978 = vextract.high.u32 %v1976
        %v1979 = vmul.u32 %v1972, %v1963
        %v1980 = vadd.s32 %v1975, %v1977
        %vm1981 = vc.u32 %v1975, %v1977
        %v1982 = vadd.s32 %v1978, 1
        %v1983 = vsel %vm1981, %v1982, %v1978
        %v1984 = vadd.s32 %v1979, %v1983
        %v1985 = vadd.s32 %v1984, 536870912
        %v1986 = vshrl.u32 %v1985, 30
        %v1987 = vshll.u32 %v1986, 30
        %v1988 = vsub.s32 %v1984, %v1987
        %vm1989 = vcmp.lt.s32.totalorder %v1988, 0
        %v1990 = vsub.s32 0, %v1988
        %v1991 = vsel %vm1989, %v1990, %v1988
        %v1992 = vclz %v1991
        %v1993 = vsub.s32 %v1992, 2
        %vm1994 = vcmp.gt.s32.totalorder 0, %v1993
        %v1995 = vsel %vm1994, 0, %v1993
        %v1996 = vsub.s32 32, %v1995
        %v1997 = vshll.u32 %v1988, %v1995
        %v1998 = vshrl.u32 %v1980, %v1996
        %v1999 = vor.u32 %v1997, %v1998
        %v2000 = vsub.s32 4294967266, %v1995
        %v2001 = vadd.s32 %v2000, 127
        %v2002 = vshll.u32 %v2001, 23
        %v2003 = vor.u32 4788187, %v2002
        %v2004 = vand.u32 2147483647, %v2003
        %v2006 = vcvt.s32.f32 %v1999
        %v2007 = vmul.f32 %v2006, %v2004
        %v2008 = vxor.u32 %v2007, 2147483648
        %v2009 = vsel %vm1926, %v2008, %v2007
        %v2010 = vsub.s32 4, %v1986
        %v2011 = vsel %vm1926, %v2010, %v1986
        %v2012 = vsel %vm1925, %v672, %v2009
        %v2013 = vsel %vm1925, 0, %v2011
        %v2014 = vcosq.f32.pop %v2012
        %v2015 = vsinq.f32.pop %v2012
        %vm2016 = vweird.f32 %v672
        %v2017 = vadd.s32 %v2013, 3
        %v2018 = vand.u32 %v2017, 3
        %vm2019 = vcmp.lt.s32.totalorder %v2018, 2
        %vm2020 = vcmp.eq.s32.totalorder %v2018, 0
        %v2021 = vxor.u32 %v2015, 2147483648
        %v2022 = vsel %vm2020, %v2014, %v2021
        %vm2023 = vcmp.eq.s32.totalorder %v2018, 2
        %v2024 = vxor.u32 %v2014, 2147483648
        %v2025 = vsel %vm2023, %v2024, %v2015
        %v2026 = vsel %vm2019, %v2022, %v2025
        %v2027 = vsel %vm2016, nan, %v2026
        %v2028 = vand.u32 2147483647, %v673
        %vm2029 = vcmp.le.f32.partialorder %v2028, 0.7853982
        %vm2030 = vcmp.lt.s32.totalorder %v673, 0
        %v2031 = vand.u32 %v673, 2139095040
        %v2032 = vshrl.u32 %v2031, 23
        %v2033 = vsub.s32 %v2032, 127
        %v2034 = vand.u32 2147483647, %v673
        %v2035 = vand.u32 %v2034, 8388607
        %v2036 = vor.u32 %v2035, 8388608
        %v2037 = vsub.s32 0, %v2036
        %v2038 = vadd.s32 %v2033, 1
        %vm2039 = vcmp.gt.s32.totalorder %v2038, 0
        %v2040 = vsel %vm2039, %v2038, 0
        %v2041 = vshrl.u32 %v2040, 5
        %v2042 = vand.u32 %v2040, 31
        %v2043 = vsub.s32 32, %v2042
        %v2044 = vshrl.u32 683565275, %v2043
        %v2045 = vshll.u32 683565275, %v2042
        %v2046 = vshrl.u32 2475754826, %v2043
        %v2047 = vor.u32 %v2045, %v2046
        %v2048 = vshll.u32 2475754826, %v2042
        %v2049 = vshrl.u32 2131351028, %v2043
        %v2050 = vor.u32 %v2048, %v2049
        %v2051 = vshll.u32 2131351028, %v2042
        %v2052 = vshrl.u32 2102212464, %v2043
        %v2053 = vor.u32 %v2051, %v2052
        %v2054 = vshll.u32 2102212464, %v2042
        %v2055 = vshrl.u32 920167782, %v2043
        %v2056 = vor.u32 %v2054, %v2055
        %v2057 = vshll.u32 920167782, %v2042
        %v2058 = vshrl.u32 1326507024, %v2043
        %v2059 = vor.u32 %v2057, %v2058
        %vm2060 = vcmp.lt.s32.totalorder %v2041, 1
        %vm2061 = vcmp.lt.s32.totalorder %v2041, 2
        %vm2062 = vcmp.lt.s32.totalorder %v2041, 3
        %vm2063 = vcmp.lt.s32.totalorder %v2041, 4
        %v2064 = vsel %vm2060, %v2044, %v2047
        %v2065 = vsel %vm2063, %v2053, 2102212464
        %v2066 = vsel %vm2062, %v2050, %v2065
        %v2067 = vsel %vm2061, %v2064, %v2066
        %v2068 = vsel %vm2060, %v2047, %v2050
        %v2069 = vsel %vm2063, %v2056, 920167782
        %v2070 = vsel %vm2062, %v2053, %v2069
        %v2071 = vsel %vm2061, %v2068, %v2070
        %v2072 = vsel %vm2060, %v2050, %v2053
        %v2073 = vsel %vm2063, %v2059, 1326507024
        %v2074 = vsel %vm2062, %v2056, %v2073
        %v2075 = vsel %vm2061, %v2072, %v2074
        %v2076 = vshll.u32 %v2036, 8
        %v2077 = vmul.u32.u64.compose %v2076, %v2075
        %v2078 = vextract.low.u32 %v2077
        %v2079 = vextract.high.u32 %v2077
        %v2080 = vmul.u32.u64.compose %v2076, %v2071
        %v2081 = vextract.low.u32 %v2080
        %v2082 = vextract.high.u32 %v2080
        %v2083 = vmul.u32 %v2076, %v2067
        %v2084 = vadd.s32 %v2079, %v2081
        %vm2085 = vc.u32 %v2079, %v2081
        %v2086 = vadd.s32 %v2082, 1
        %v2087 = vsel %vm2085, %v2086, %v2082
        %v2088 = vadd.s32 %v2083, %v2087
        %v2089 = vadd.s32 %v2088, 536870912
        %v2090 = vshrl.u32 %v2089, 30
        %v2091 = vshll.u32 %v2090, 30
        %v2092 = vsub.s32 %v2088, %v2091
        %vm2093 = vcmp.lt.s32.totalorder %v2092, 0
        %v2094 = vsub.s32 0, %v2092
        %v2095 = vsel %vm2093, %v2094, %v2092
        %v2096 = vclz %v2095
        %v2097 = vsub.s32 %v2096, 2
        %vm2098 = vcmp.gt.s32.totalorder 0, %v2097
        %v2099 = vsel %vm2098, 0, %v2097
        %v2100 = vsub.s32 32, %v2099
        %v2101 = vshll.u32 %v2092, %v2099
        %v2102 = vshrl.u32 %v2084, %v2100
        %v2103 = vor.u32 %v2101, %v2102
        %v2104 = vsub.s32 4294967266, %v2099
        %v2105 = vadd.s32 %v2104, 127
        %v2106 = vshll.u32 %v2105, 23
        %v2107 = vor.u32 4788187, %v2106
        %v2108 = vand.u32 2147483647, %v2107
        %v2110 = vcvt.s32.f32 %v2103
        %v2111 = vmul.f32 %v2110, %v2108
        %v2112 = vxor.u32 %v2111, 2147483648
        %v2113 = vsel %vm2030, %v2112, %v2111
        %v2114 = vsub.s32 4, %v2090
        %v2115 = vsel %vm2030, %v2114, %v2090
        %v2116 = vsel %vm2029, %v673, %v2113
        %v2117 = vsel %vm2029, 0, %v2115
        %v2118 = vcosq.f32.pop %v2116
        %v2119 = vsinq.f32.pop %v2116
        %vm2120 = vweird.f32 %v673
        %v2121 = vadd.s32 %v2117, 3
        %v2122 = vand.u32 %v2121, 3
        %vm2123 = vcmp.lt.s32.totalorder %v2122, 2
        %vm2124 = vcmp.eq.s32.totalorder %v2122, 0
        %v2125 = vxor.u32 %v2119, 2147483648
        %v2126 = vsel %vm2124, %v2118, %v2125
        %vm2127 = vcmp.eq.s32.totalorder %v2122, 2
        %v2128 = vxor.u32 %v2118, 2147483648
        %v2129 = vsel %vm2127, %v2128, %v2119
        %v2130 = vsel %vm2123, %v2126, %v2129
        %v2131 = vsel %vm2120, nan, %v2130
        %v2132 = vand.u32 2147483647, %v674
        %vm2133 = vcmp.le.f32.partialorder %v2132, 0.7853982
        %vm2134 = vcmp.lt.s32.totalorder %v674, 0
        %v2135 = vand.u32 %v674, 2139095040
        %v2136 = vshrl.u32 %v2135, 23
        %v2137 = vsub.s32 %v2136, 127
        %v2138 = vand.u32 2147483647, %v674
        %v2139 = vand.u32 %v2138, 8388607
        %v2140 = vor.u32 %v2139, 8388608
        %v2141 = vsub.s32 0, %v2140
        %v2142 = vadd.s32 %v2137, 1
        %vm2143 = vcmp.gt.s32.totalorder %v2142, 0
        %v2144 = vsel %vm2143, %v2142, 0
        %v2145 = vshrl.u32 %v2144, 5
        %v2146 = vand.u32 %v2144, 31
        %v2147 = vsub.s32 32, %v2146
        %v2148 = vshrl.u32 683565275, %v2147
        %v2149 = vshll.u32 683565275, %v2146
        %v2150 = vshrl.u32 2475754826, %v2147
        %v2151 = vor.u32 %v2149, %v2150
        %v2152 = vshll.u32 2475754826, %v2146
        %v2153 = vshrl.u32 2131351028, %v2147
        %v2154 = vor.u32 %v2152, %v2153
        %v2155 = vshll.u32 2131351028, %v2146
        %v2156 = vshrl.u32 2102212464, %v2147
        %v2157 = vor.u32 %v2155, %v2156
        %v2158 = vshll.u32 2102212464, %v2146
        %v2159 = vshrl.u32 920167782, %v2147
        %v2160 = vor.u32 %v2158, %v2159
        %v2161 = vshll.u32 920167782, %v2146
        %v2162 = vshrl.u32 1326507024, %v2147
        %v2163 = vor.u32 %v2161, %v2162
        %vm2164 = vcmp.lt.s32.totalorder %v2145, 1
        %vm2165 = vcmp.lt.s32.totalorder %v2145, 2
        %vm2166 = vcmp.lt.s32.totalorder %v2145, 3
        %vm2167 = vcmp.lt.s32.totalorder %v2145, 4
        %v2168 = vsel %vm2164, %v2148, %v2151
        %v2169 = vsel %vm2167, %v2157, 2102212464
        %v2170 = vsel %vm2166, %v2154, %v2169
        %v2171 = vsel %vm2165, %v2168, %v2170
        %v2172 = vsel %vm2164, %v2151, %v2154
        %v2173 = vsel %vm2167, %v2160, 920167782
        %v2174 = vsel %vm2166, %v2157, %v2173
        %v2175 = vsel %vm2165, %v2172, %v2174
        %v2176 = vsel %vm2164, %v2154, %v2157
        %v2177 = vsel %vm2167, %v2163, 1326507024
        %v2178 = vsel %vm2166, %v2160, %v2177
        %v2179 = vsel %vm2165, %v2176, %v2178
        %v2180 = vshll.u32 %v2140, 8
        %v2181 = vmul.u32.u64.compose %v2180, %v2179
        %v2182 = vextract.low.u32 %v2181
        %v2183 = vextract.high.u32 %v2181
        %v2184 = vmul.u32.u64.compose %v2180, %v2175
        %v2185 = vextract.low.u32 %v2184
        %v2186 = vextract.high.u32 %v2184
        %v2187 = vmul.u32 %v2180, %v2171
        %v2188 = vadd.s32 %v2183, %v2185
        %vm2189 = vc.u32 %v2183, %v2185
        %v2190 = vadd.s32 %v2186, 1
        %v2191 = vsel %vm2189, %v2190, %v2186
        %v2192 = vadd.s32 %v2187, %v2191
        %v2193 = vadd.s32 %v2192, 536870912
        %v2194 = vshrl.u32 %v2193, 30
        %v2195 = vshll.u32 %v2194, 30
        %v2196 = vsub.s32 %v2192, %v2195
        %vm2197 = vcmp.lt.s32.totalorder %v2196, 0
        %v2198 = vsub.s32 0, %v2196
        %v2199 = vsel %vm2197, %v2198, %v2196
        %v2200 = vclz %v2199
        %v2201 = vsub.s32 %v2200, 2
        %vm2202 = vcmp.gt.s32.totalorder 0, %v2201
        %v2203 = vsel %vm2202, 0, %v2201
        %v2204 = vsub.s32 32, %v2203
        %v2205 = vshll.u32 %v2196, %v2203
        %v2206 = vshrl.u32 %v2188, %v2204
        %v2207 = vor.u32 %v2205, %v2206
        %v2208 = vsub.s32 4294967266, %v2203
        %v2209 = vadd.s32 %v2208, 127
        %v2210 = vshll.u32 %v2209, 23
        %v2211 = vor.u32 4788187, %v2210
        %v2212 = vand.u32 2147483647, %v2211
        %v2214 = vcvt.s32.f32 %v2207
        %v2215 = vmul.f32 %v2214, %v2212
        %v2216 = vxor.u32 %v2215, 2147483648
        %v2217 = vsel %vm2134, %v2216, %v2215
        %v2218 = vsub.s32 4, %v2194
        %v2219 = vsel %vm2134, %v2218, %v2194
        %v2220 = vsel %vm2133, %v674, %v2217
        %v2221 = vsel %vm2133, 0, %v2219
        %v2222 = vcosq.f32.pop %v2220
        %v2223 = vsinq.f32.pop %v2220
        %vm2224 = vweird.f32 %v674
        %v2225 = vadd.s32 %v2221, 3
        %v2226 = vand.u32 %v2225, 3
        %vm2227 = vcmp.lt.s32.totalorder %v2226, 2
        %vm2228 = vcmp.eq.s32.totalorder %v2226, 0
        %v2229 = vxor.u32 %v2223, 2147483648
        %v2230 = vsel %vm2228, %v2222, %v2229
        %vm2231 = vcmp.eq.s32.totalorder %v2226, 2
        %v2232 = vxor.u32 %v2222, 2147483648
        %v2233 = vsel %vm2231, %v2232, %v2223
        %v2234 = vsel %vm2227, %v2230, %v2233
        %v2235 = vsel %vm2224, nan, %v2234
        %v2236 = vand.u32 2147483647, %v675
        %vm2237 = vcmp.le.f32.partialorder %v2236, 0.7853982
        %vm2238 = vcmp.lt.s32.totalorder %v675, 0
        %v2239 = vand.u32 %v675, 2139095040
        %v2240 = vshrl.u32 %v2239, 23
        %v2241 = vsub.s32 %v2240, 127
        %v2242 = vand.u32 2147483647, %v675
        %v2243 = vand.u32 %v2242, 8388607
        %v2244 = vor.u32 %v2243, 8388608
        %v2245 = vsub.s32 0, %v2244
        %v2246 = vadd.s32 %v2241, 1
        %vm2247 = vcmp.gt.s32.totalorder %v2246, 0
        %v2248 = vsel %vm2247, %v2246, 0
        %v2249 = vshrl.u32 %v2248, 5
        %v2250 = vand.u32 %v2248, 31
        %v2251 = vsub.s32 32, %v2250
        %v2252 = vshrl.u32 683565275, %v2251
        %v2253 = vshll.u32 683565275, %v2250
        %v2254 = vshrl.u32 2475754826, %v2251
        %v2255 = vor.u32 %v2253, %v2254
        %v2256 = vshll.u32 2475754826, %v2250
        %v2257 = vshrl.u32 2131351028, %v2251
        %v2258 = vor.u32 %v2256, %v2257
        %v2259 = vshll.u32 2131351028, %v2250
        %v2260 = vshrl.u32 2102212464, %v2251
        %v2261 = vor.u32 %v2259, %v2260
        %v2262 = vshll.u32 2102212464, %v2250
        %v2263 = vshrl.u32 920167782, %v2251
        %v2264 = vor.u32 %v2262, %v2263
        %v2265 = vshll.u32 920167782, %v2250
        %v2266 = vshrl.u32 1326507024, %v2251
        %v2267 = vor.u32 %v2265, %v2266
        %vm2268 = vcmp.lt.s32.totalorder %v2249, 1
        %vm2269 = vcmp.lt.s32.totalorder %v2249, 2
        %vm2270 = vcmp.lt.s32.totalorder %v2249, 3
        %vm2271 = vcmp.lt.s32.totalorder %v2249, 4
        %v2272 = vsel %vm2268, %v2252, %v2255
        %v2273 = vsel %vm2271, %v2261, 2102212464
        %v2274 = vsel %vm2270, %v2258, %v2273
        %v2275 = vsel %vm2269, %v2272, %v2274
        %v2276 = vsel %vm2268, %v2255, %v2258
        %v2277 = vsel %vm2271, %v2264, 920167782
        %v2278 = vsel %vm2270, %v2261, %v2277
        %v2279 = vsel %vm2269, %v2276, %v2278
        %v2280 = vsel %vm2268, %v2258, %v2261
        %v2281 = vsel %vm2271, %v2267, 1326507024
        %v2282 = vsel %vm2270, %v2264, %v2281
        %v2283 = vsel %vm2269, %v2280, %v2282
        %v2284 = vshll.u32 %v2244, 8
        %v2285 = vmul.u32.u64.compose %v2284, %v2283
        %v2286 = vextract.low.u32 %v2285
        %v2287 = vextract.high.u32 %v2285
        %v2288 = vmul.u32.u64.compose %v2284, %v2279
        %v2289 = vextract.low.u32 %v2288
        %v2290 = vextract.high.u32 %v2288
        %v2291 = vmul.u32 %v2284, %v2275
        %v2292 = vadd.s32 %v2287, %v2289
        %vm2293 = vc.u32 %v2287, %v2289
        %v2294 = vadd.s32 %v2290, 1
        %v2295 = vsel %vm2293, %v2294, %v2290
        %v2296 = vadd.s32 %v2291, %v2295
        %v2297 = vadd.s32 %v2296, 536870912
        %v2298 = vshrl.u32 %v2297, 30
        %v2299 = vshll.u32 %v2298, 30
        %v2300 = vsub.s32 %v2296, %v2299
        %vm2301 = vcmp.lt.s32.totalorder %v2300, 0
        %v2302 = vsub.s32 0, %v2300
        %v2303 = vsel %vm2301, %v2302, %v2300
        %v2304 = vclz %v2303
        %v2305 = vsub.s32 %v2304, 2
        %vm2306 = vcmp.gt.s32.totalorder 0, %v2305
        %v2307 = vsel %vm2306, 0, %v2305
        %v2308 = vsub.s32 32, %v2307
        %v2309 = vshll.u32 %v2300, %v2307
        %v2310 = vshrl.u32 %v2292, %v2308
        %v2311 = vor.u32 %v2309, %v2310
        %v2312 = vsub.s32 4294967266, %v2307
        %v2313 = vadd.s32 %v2312, 127
        %v2314 = vshll.u32 %v2313, 23
        %v2315 = vor.u32 4788187, %v2314
        %v2316 = vand.u32 2147483647, %v2315
        %v2318 = vcvt.s32.f32 %v2311
        %v2319 = vmul.f32 %v2318, %v2316
        %v2320 = vxor.u32 %v2319, 2147483648
        %v2321 = vsel %vm2238, %v2320, %v2319
        %v2322 = vsub.s32 4, %v2298
        %v2323 = vsel %vm2238, %v2322, %v2298
        %v2324 = vsel %vm2237, %v675, %v2321
        %v2325 = vsel %vm2237, 0, %v2323
        %v2326 = vcosq.f32.pop %v2324
        %v2327 = vsinq.f32.pop %v2324
        %vm2328 = vweird.f32 %v675
        %v2329 = vadd.s32 %v2325, 3
        %v2330 = vand.u32 %v2329, 3
        %vm2331 = vcmp.lt.s32.totalorder %v2330, 2
        %vm2332 = vcmp.eq.s32.totalorder %v2330, 0
        %v2333 = vxor.u32 %v2327, 2147483648
        %v2334 = vsel %vm2332, %v2326, %v2333
        %vm2335 = vcmp.eq.s32.totalorder %v2330, 2
        %v2336 = vxor.u32 %v2326, 2147483648
        %v2337 = vsel %vm2335, %v2336, %v2327
        %v2338 = vsel %vm2331, %v2334, %v2337
        %v2339 = vsel %vm2328, nan, %v2338
        %v2340 = vmul.f32 %v660, %v1611
        %v2341 = vmul.f32 %v661, %v1715
        %v2342 = vmul.f32 %v662, %v1819
        %v2343 = vmul.f32 %v663, %v1923
        %v2344 = vmul.f32 %v664, %v2027
        %v2345 = vmul.f32 %v665, %v2131
        %v2346 = vmul.f32 %v666, %v2235
        %v2347 = vmul.f32 %v667, %v2339
        %v2348 = vld [vmem:[#allocation5] sm:$0xff]
        %v2349 = vld [vmem:[#allocation5 + $0x8] sm:$0xff]
        %v2350 = vld [vmem:[#allocation5 + $0x10] sm:$0xff]
        %v2351 = vld [vmem:[#allocation5 + $0x18] sm:$0xff]
        %v2356 = vunpack.c.l.b16 %v2348
        %v2357 = vunpack.c.h.b16 %v2348
        %v2358 = vunpack.c.l.b16 %v2349
        %v2359 = vunpack.c.h.b16 %v2349
        %v2360 = vunpack.c.l.b16 %v2350
        %v2361 = vunpack.c.h.b16 %v2350
        %v2362 = vunpack.c.l.b16 %v2351
        %v2363 = vunpack.c.h.b16 %v2351
        %v2364 = vpack.c.b16 %v2356, %v2356
        %v2365 = vpack.c.b16 %v2357, %v2357
        %v2366 = vpack.c.b16 %v2358, %v2358
        %v2367 = vpack.c.b16 %v2359, %v2359
        %v2368 = vpack.c.b16 %v2360, %v2360
        %v2369 = vpack.c.b16 %v2361, %v2361
        %v2370 = vpack.c.b16 %v2362, %v2362
        %v2371 = vpack.c.b16 %v2363, %v2363
        %vm2372 = vcmask 1043456
        %v2374 = vsel %vm2372, %v2364, %v2364
        %v2377 = vsel %vm2372, %v2365, %v2365
        %v2380 = vsel %vm2372, %v2366, %v2366
        %v2383 = vsel %vm2372, %v2367, %v2367
        %v2386 = vsel %vm2372, %v2368, %v2368
        %v2389 = vsel %vm2372, %v2369, %v2369
        %v2392 = vsel %vm2372, %v2370, %v2370
        %v2395 = vsel %vm2372, %v2371, %v2371
        %v2397 = vpack.c.bf16 %v2340, %v1500
        %v2398 = vpack.c.bf16 %v2341, %v1501
        %v2399 = vpack.c.bf16 %v2342, %v1502
        %v2400 = vpack.c.bf16 %v2343, %v1503
        %v2401 = vpack.c.bf16 %v2344, %v1504
        %v2402 = vpack.c.bf16 %v2345, %v1505
        %v2403 = vpack.c.bf16 %v2346, %v1506
        %v2404 = vpack.c.bf16 %v2347, %v1507
        %v2405 = vadd.bf16 %v2374, %v2397
        %v2406 = vadd.bf16 %v2377, %v2398
        %v2407 = vadd.bf16 %v2380, %v2399
        %v2408 = vadd.bf16 %v2383, %v2400
        %v2409 = vadd.bf16 %v2386, %v2401
        %v2410 = vadd.bf16 %v2389, %v2402
        %v2411 = vadd.bf16 %v2392, %v2403
        %v2412 = vadd.bf16 %v2395, %v2404
        %v2413 = vld [vmem:[#allocation8] sm:$0xf]
        %v2414 = vld [vmem:[#allocation8 + $0x4] sm:$0xf]
        %v2415 = vld [vmem:[#allocation8 + $0x8] sm:$0xf]
        %v2416 = vld [vmem:[#allocation8 + $0xc] sm:$0xf]
        %v2417 = vld [vmem:[#allocation8 + $0x10] sm:$0xf]
        %v2418 = vld [vmem:[#allocation8 + $0x14] sm:$0xf]
        %v2419 = vld [vmem:[#allocation8 + $0x18] sm:$0xf]
        %v2420 = vld [vmem:[#allocation8 + $0x1c] sm:$0xf]
        %v2421 = vld [vmem:[#allocation8 + $0x20] sm:$0xf]
        %v2422 = vld [vmem:[#allocation8 + $0x24] sm:$0xf]
        %v2423 = vld [vmem:[#allocation8 + $0x28] sm:$0xf]
        %v2424 = vld [vmem:[#allocation8 + $0x2c] sm:$0xf]
        %v2425 = vld [vmem:[#allocation8 + $0x30] sm:$0xf]
        %v2426 = vld [vmem:[#allocation8 + $0x34] sm:$0xf]
        %v2427 = vld [vmem:[#allocation8 + $0x38] sm:$0xf]
        %v2428 = vld [vmem:[#allocation8 + $0x3c] sm:$0xf]
        %v2429 = vld [vmem:[#allocation8 + $0x40] sm:$0xf]
        %v2430 = vld [vmem:[#allocation8 + $0x44] sm:$0xf]
        %v2431 = vld [vmem:[#allocation8 + $0x48] sm:$0xf]
        %v2432 = vld [vmem:[#allocation8 + $0x4c] sm:$0xf]
        %v2433 = vld [vmem:[#allocation8 + $0x50] sm:$0xf]
        %v2434 = vld [vmem:[#allocation8 + $0x54] sm:$0xf]
        %v2435 = vld [vmem:[#allocation8 + $0x58] sm:$0xf]
        %v2436 = vld [vmem:[#allocation8 + $0x5c] sm:$0xf]
        %v2437 = vld [vmem:[#allocation8 + $0x60] sm:$0xf]
        %v2438 = vld [vmem:[#allocation8 + $0x64] sm:$0xf]
        %v2439 = vld [vmem:[#allocation8 + $0x68] sm:$0xf]
        %v2440 = vld [vmem:[#allocation8 + $0x6c] sm:$0xf]
        %v2441 = vld [vmem:[#allocation8 + $0x70] sm:$0xf]
        %v2442 = vld [vmem:[#allocation8 + $0x74] sm:$0xf]
        %v2443 = vld [vmem:[#allocation8 + $0x78] sm:$0xf]
        %v2444 = vld [vmem:[#allocation8 + $0x7c] sm:$0xf]
        %v2445 = vld [vmem:[#allocation8 + $0x80] sm:$0xf]
        %v2446 = vld [vmem:[#allocation8 + $0x84] sm:$0xf]
        %v2447 = vld [vmem:[#allocation8 + $0x88] sm:$0xf]
        %v2448 = vld [vmem:[#allocation8 + $0x8c] sm:$0xf]
        %v2449 = vld [vmem:[#allocation8 + $0x90] sm:$0xf]
        %v2450 = vld [vmem:[#allocation8 + $0x94] sm:$0xf]
        %v2451 = vld [vmem:[#allocation8 + $0x98] sm:$0xf]
        %v2452 = vld [vmem:[#allocation8 + $0x9c] sm:$0xf]
        %v2453 = vld [vmem:[#allocation8 + $0xa0] sm:$0xf]
        %v2454 = vld [vmem:[#allocation8 + $0xa4] sm:$0xf]
        %v2455 = vld [vmem:[#allocation8 + $0xa8] sm:$0xf]
        %v2456 = vld [vmem:[#allocation8 + $0xac] sm:$0xf]
        %v2457 = vld [vmem:[#allocation8 + $0xb0] sm:$0xf]
        %v2458 = vld [vmem:[#allocation8 + $0xb4] sm:$0xf]
        %v2459 = vld [vmem:[#allocation8 + $0xb8] sm:$0xf]
        %v2460 = vld [vmem:[#allocation8 + $0xbc] sm:$0xf]
        %v2461 = vld [vmem:[#allocation8 + $0xc0] sm:$0xf]
        %v2462 = vld [vmem:[#allocation8 + $0xc4] sm:$0xf]
        %v2463 = vld [vmem:[#allocation8 + $0xc8] sm:$0xf]
        %v2464 = vld [vmem:[#allocation8 + $0xcc] sm:$0xf]
        %v2465 = vld [vmem:[#allocation8 + $0xd0] sm:$0xf]
        %v2466 = vld [vmem:[#allocation8 + $0xd4] sm:$0xf]
        %v2467 = vld [vmem:[#allocation8 + $0xd8] sm:$0xf]
        %v2468 = vld [vmem:[#allocation8 + $0xdc] sm:$0xf]
        %v2469 = vld [vmem:[#allocation8 + $0xe0] sm:$0xf]
        %v2470 = vld [vmem:[#allocation8 + $0xe4] sm:$0xf]
        %v2471 = vld [vmem:[#allocation8 + $0xe8] sm:$0xf]
        %v2472 = vld [vmem:[#allocation8 + $0xec] sm:$0xf]
        %v2473 = vld [vmem:[#allocation8 + $0xf0] sm:$0xf]
        %v2474 = vld [vmem:[#allocation8 + $0xf4] sm:$0xf]
        %v2475 = vld [vmem:[#allocation8 + $0xf8] sm:$0xf]
        %v2476 = vld [vmem:[#allocation8 + $0xfc] sm:$0xf]
        %v2477 = vld [vmem:[#allocation8 + $0x100] sm:$0xf]
        %v2478 = vld [vmem:[#allocation8 + $0x104] sm:$0xf]
        %v2479 = vld [vmem:[#allocation8 + $0x108] sm:$0xf]
        %v2480 = vld [vmem:[#allocation8 + $0x10c] sm:$0xf]
        %v2481 = vld [vmem:[#allocation8 + $0x110] sm:$0xf]
        %v2482 = vld [vmem:[#allocation8 + $0x114] sm:$0xf]
        %v2483 = vld [vmem:[#allocation8 + $0x118] sm:$0xf]
        %v2484 = vld [vmem:[#allocation8 + $0x11c] sm:$0xf]
        %v2485 = vld [vmem:[#allocation8 + $0x120] sm:$0xf]
        %v2486 = vld [vmem:[#allocation8 + $0x124] sm:$0xf]
        %v2487 = vld [vmem:[#allocation8 + $0x128] sm:$0xf]
        %v2488 = vld [vmem:[#allocation8 + $0x12c] sm:$0xf]
        %v2489 = vld [vmem:[#allocation8 + $0x130] sm:$0xf]
        %v2490 = vld [vmem:[#allocation8 + $0x134] sm:$0xf]
        %v2491 = vld [vmem:[#allocation8 + $0x138] sm:$0xf]
        %v2492 = vld [vmem:[#allocation8 + $0x13c] sm:$0xf]
        %v2493 = vld [vmem:[#allocation8 + $0x140] sm:$0xf]
        %v2494 = vld [vmem:[#allocation8 + $0x144] sm:$0xf]
        %v2495 = vld [vmem:[#allocation8 + $0x148] sm:$0xf]
        %v2496 = vld [vmem:[#allocation8 + $0x14c] sm:$0xf]
        %v2497 = vld [vmem:[#allocation8 + $0x150] sm:$0xf]
        %v2498 = vld [vmem:[#allocation8 + $0x154] sm:$0xf]
        %v2499 = vld [vmem:[#allocation8 + $0x158] sm:$0xf]
        %v2500 = vld [vmem:[#allocation8 + $0x15c] sm:$0xf]
        %v2501 = vld [vmem:[#allocation8 + $0x160] sm:$0xf]
        %v2502 = vld [vmem:[#allocation8 + $0x164] sm:$0xf]
        %v2503 = vld [vmem:[#allocation8 + $0x168] sm:$0xf]
        %v2504 = vld [vmem:[#allocation8 + $0x16c] sm:$0xf]
        %v2505 = vld [vmem:[#allocation8 + $0x170] sm:$0xf]
        %v2506 = vld [vmem:[#allocation8 + $0x174] sm:$0xf]
        %v2507 = vld [vmem:[#allocation8 + $0x178] sm:$0xf]
        %v2508 = vld [vmem:[#allocation8 + $0x17c] sm:$0xf]
        %v2509 = vld [vmem:[#allocation8 + $0x180] sm:$0xf]
        %v2510 = vld [vmem:[#allocation8 + $0x184] sm:$0xf]
        %v2511 = vld [vmem:[#allocation8 + $0x188] sm:$0xf]
        %v2512 = vld [vmem:[#allocation8 + $0x18c] sm:$0xf]
        %v2513 = vld [vmem:[#allocation8 + $0x190] sm:$0xf]
        %v2514 = vld [vmem:[#allocation8 + $0x194] sm:$0xf]
        %v2515 = vld [vmem:[#allocation8 + $0x198] sm:$0xf]
        %v2516 = vld [vmem:[#allocation8 + $0x19c] sm:$0xf]
        %v2517 = vld [vmem:[#allocation8 + $0x1a0] sm:$0xf]
        %v2518 = vld [vmem:[#allocation8 + $0x1a4] sm:$0xf]
        %v2519 = vld [vmem:[#allocation8 + $0x1a8] sm:$0xf]
        %v2520 = vld [vmem:[#allocation8 + $0x1ac] sm:$0xf]
        %v2521 = vld [vmem:[#allocation8 + $0x1b0] sm:$0xf]
        %v2522 = vld [vmem:[#allocation8 + $0x1b4] sm:$0xf]
        %v2523 = vld [vmem:[#allocation8 + $0x1b8] sm:$0xf]
        %v2524 = vld [vmem:[#allocation8 + $0x1bc] sm:$0xf]
        %v2525 = vld [vmem:[#allocation8 + $0x1c0] sm:$0xf]
        %v2526 = vld [vmem:[#allocation8 + $0x1c4] sm:$0xf]
        %v2527 = vld [vmem:[#allocation8 + $0x1c8] sm:$0xf]
        %v2528 = vld [vmem:[#allocation8 + $0x1cc] sm:$0xf]
        %v2529 = vld [vmem:[#allocation8 + $0x1d0] sm:$0xf]
        %v2530 = vld [vmem:[#allocation8 + $0x1d4] sm:$0xf]
        %v2531 = vld [vmem:[#allocation8 + $0x1d8] sm:$0xf]
        %v2532 = vld [vmem:[#allocation8 + $0x1dc] sm:$0xf]
        %v2533 = vld [vmem:[#allocation8 + $0x1e0] sm:$0xf]
        %v2534 = vld [vmem:[#allocation8 + $0x1e4] sm:$0xf]
        %v2535 = vld [vmem:[#allocation8 + $0x1e8] sm:$0xf]
        %v2536 = vld [vmem:[#allocation8 + $0x1ec] sm:$0xf]
        %v2537 = vld [vmem:[#allocation8 + $0x1f0] sm:$0xf]
        %v2538 = vld [vmem:[#allocation8 + $0x1f4] sm:$0xf]
        %v2539 = vld [vmem:[#allocation8 + $0x1f8] sm:$0xf]
        %v2540 = vld [vmem:[#allocation8 + $0x1fc] sm:$0xf]
        %v2541 = vld [vmem:[%s4] sm:$0x1]
        %v2543 = vlaneseq
        %v2544 = vshrl.u32 %v2543, 7
        %v2545 = vsub.s32 0, %v2544
        %v2546 = vrot.slane %v2541, %v2545
        %v2676 = vunpack.c.l.b16 %v2413
        %v2677 = vunpack.c.l.b16 %v2414
        %v2678 = vunpack.c.l.b16 %v2415
        %v2679 = vunpack.c.l.b16 %v2416
        %v2680 = vunpack.c.l.b16 %v2417
        %v2681 = vunpack.c.l.b16 %v2418
        %v2682 = vunpack.c.l.b16 %v2419
        %v2683 = vunpack.c.l.b16 %v2420
        %v2684 = vunpack.c.l.b16 %v2421
        %v2685 = vunpack.c.l.b16 %v2422
        %v2686 = vunpack.c.l.b16 %v2423
        %v2687 = vunpack.c.l.b16 %v2424
        %v2688 = vunpack.c.l.b16 %v2425
        %v2689 = vunpack.c.l.b16 %v2426
        %v2690 = vunpack.c.l.b16 %v2427
        %v2691 = vunpack.c.l.b16 %v2428
        %v2692 = vunpack.c.l.b16 %v2429
        %v2693 = vunpack.c.l.b16 %v2430
        %v2694 = vunpack.c.l.b16 %v2431
        %v2695 = vunpack.c.l.b16 %v2432
        %v2696 = vunpack.c.l.b16 %v2433
        %v2697 = vunpack.c.l.b16 %v2434
        %v2698 = vunpack.c.l.b16 %v2435
        %v2699 = vunpack.c.l.b16 %v2436
        %v2700 = vunpack.c.l.b16 %v2437
        %v2701 = vunpack.c.l.b16 %v2438
        %v2702 = vunpack.c.l.b16 %v2439
        %v2703 = vunpack.c.l.b16 %v2440
        %v2704 = vunpack.c.l.b16 %v2441
        %v2705 = vunpack.c.l.b16 %v2442
        %v2706 = vunpack.c.l.b16 %v2443
        %v2707 = vunpack.c.l.b16 %v2444
        %v2708 = vunpack.c.l.b16 %v2445
        %v2709 = vunpack.c.l.b16 %v2446
        %v2710 = vunpack.c.l.b16 %v2447
        %v2711 = vunpack.c.l.b16 %v2448
        %v2712 = vunpack.c.l.b16 %v2449
        %v2713 = vunpack.c.l.b16 %v2450
        %v2714 = vunpack.c.l.b16 %v2451
        %v2715 = vunpack.c.l.b16 %v2452
        %v2716 = vunpack.c.l.b16 %v2453
        %v2717 = vunpack.c.l.b16 %v2454
        %v2718 = vunpack.c.l.b16 %v2455
        %v2719 = vunpack.c.l.b16 %v2456
        %v2720 = vunpack.c.l.b16 %v2457
        %v2721 = vunpack.c.l.b16 %v2458
        %v2722 = vunpack.c.l.b16 %v2459
        %v2723 = vunpack.c.l.b16 %v2460
        %v2724 = vunpack.c.l.b16 %v2461
        %v2725 = vunpack.c.l.b16 %v2462
        %v2726 = vunpack.c.l.b16 %v2463
        %v2727 = vunpack.c.l.b16 %v2464
        %v2728 = vunpack.c.l.b16 %v2465
        %v2729 = vunpack.c.l.b16 %v2466
        %v2730 = vunpack.c.l.b16 %v2467
        %v2731 = vunpack.c.l.b16 %v2468
        %v2732 = vunpack.c.l.b16 %v2469
        %v2733 = vunpack.c.l.b16 %v2470
        %v2734 = vunpack.c.l.b16 %v2471
        %v2735 = vunpack.c.l.b16 %v2472
        %v2736 = vunpack.c.l.b16 %v2473
        %v2737 = vunpack.c.l.b16 %v2474
        %v2738 = vunpack.c.l.b16 %v2475
        %v2739 = vunpack.c.l.b16 %v2476
        %v2740 = vunpack.c.l.b16 %v2477
        %v2741 = vunpack.c.l.b16 %v2478
        %v2742 = vunpack.c.l.b16 %v2479
        %v2743 = vunpack.c.l.b16 %v2480
        %v2744 = vunpack.c.l.b16 %v2481
        %v2745 = vunpack.c.l.b16 %v2482
        %v2746 = vunpack.c.l.b16 %v2483
        %v2747 = vunpack.c.l.b16 %v2484
        %v2748 = vunpack.c.l.b16 %v2485
        %v2749 = vunpack.c.l.b16 %v2486
        %v2750 = vunpack.c.l.b16 %v2487
        %v2751 = vunpack.c.l.b16 %v2488
        %v2752 = vunpack.c.l.b16 %v2489
        %v2753 = vunpack.c.l.b16 %v2490
        %v2754 = vunpack.c.l.b16 %v2491
        %v2755 = vunpack.c.l.b16 %v2492
        %v2756 = vunpack.c.l.b16 %v2493
        %v2757 = vunpack.c.l.b16 %v2494
        %v2758 = vunpack.c.l.b16 %v2495
        %v2759 = vunpack.c.l.b16 %v2496
        %v2760 = vunpack.c.l.b16 %v2497
        %v2761 = vunpack.c.l.b16 %v2498
        %v2762 = vunpack.c.l.b16 %v2499
        %v2763 = vunpack.c.l.b16 %v2500
        %v2764 = vunpack.c.l.b16 %v2501
        %v2765 = vunpack.c.l.b16 %v2502
        %v2766 = vunpack.c.l.b16 %v2503
        %v2767 = vunpack.c.l.b16 %v2504
        %v2768 = vunpack.c.l.b16 %v2505
        %v2769 = vunpack.c.l.b16 %v2506
        %v2770 = vunpack.c.l.b16 %v2507
        %v2771 = vunpack.c.l.b16 %v2508
        %v2772 = vunpack.c.l.b16 %v2509
        %v2773 = vunpack.c.l.b16 %v2510
        %v2774 = vunpack.c.l.b16 %v2511
        %v2775 = vunpack.c.l.b16 %v2512
        %v2776 = vunpack.c.l.b16 %v2513
        %v2777 = vunpack.c.l.b16 %v2514
        %v2778 = vunpack.c.l.b16 %v2515
        %v2779 = vunpack.c.l.b16 %v2516
        %v2780 = vunpack.c.l.b16 %v2517
        %v2781 = vunpack.c.l.b16 %v2518
        %v2782 = vunpack.c.l.b16 %v2519
        %v2783 = vunpack.c.l.b16 %v2520
        %v2784 = vunpack.c.l.b16 %v2521
        %v2785 = vunpack.c.l.b16 %v2522
        %v2786 = vunpack.c.l.b16 %v2523
        %v2787 = vunpack.c.l.b16 %v2524
        %v2788 = vunpack.c.l.b16 %v2525
        %v2789 = vunpack.c.l.b16 %v2526
        %v2790 = vunpack.c.l.b16 %v2527
        %v2791 = vunpack.c.l.b16 %v2528
        %v2792 = vunpack.c.l.b16 %v2529
        %v2793 = vunpack.c.l.b16 %v2530
        %v2794 = vunpack.c.l.b16 %v2531
        %v2795 = vunpack.c.l.b16 %v2532
        %v2796 = vunpack.c.l.b16 %v2533
        %v2797 = vunpack.c.l.b16 %v2534
        %v2798 = vunpack.c.l.b16 %v2535
        %v2799 = vunpack.c.l.b16 %v2536
        %v2800 = vunpack.c.l.b16 %v2537
        %v2801 = vunpack.c.l.b16 %v2538
        %v2802 = vunpack.c.l.b16 %v2539
        %v2803 = vunpack.c.l.b16 %v2540
        %v2804 = vpack.c.b16 %v2677, %v2676
        %v2805 = vpack.c.b16 %v2679, %v2678
        %v2806 = vpack.c.b16 %v2681, %v2680
        %v2807 = vpack.c.b16 %v2683, %v2682
        %v2808 = vpack.c.b16 %v2685, %v2684
        %v2809 = vpack.c.b16 %v2687, %v2686
        %v2810 = vpack.c.b16 %v2689, %v2688
        %v2811 = vpack.c.b16 %v2691, %v2690
        %v2812 = vpack.c.b16 %v2693, %v2692
        %v2813 = vpack.c.b16 %v2695, %v2694
        %v2814 = vpack.c.b16 %v2697, %v2696
        %v2815 = vpack.c.b16 %v2699, %v2698
        %v2816 = vpack.c.b16 %v2701, %v2700
        %v2817 = vpack.c.b16 %v2703, %v2702
        %v2818 = vpack.c.b16 %v2705, %v2704
        %v2819 = vpack.c.b16 %v2707, %v2706
        %v2820 = vpack.c.b16 %v2709, %v2708
        %v2821 = vpack.c.b16 %v2711, %v2710
        %v2822 = vpack.c.b16 %v2713, %v2712
        %v2823 = vpack.c.b16 %v2715, %v2714
        %v2824 = vpack.c.b16 %v2717, %v2716
        %v2825 = vpack.c.b16 %v2719, %v2718
        %v2826 = vpack.c.b16 %v2721, %v2720
        %v2827 = vpack.c.b16 %v2723, %v2722
        %v2828 = vpack.c.b16 %v2725, %v2724
        %v2829 = vpack.c.b16 %v2727, %v2726
        %v2830 = vpack.c.b16 %v2729, %v2728
        %v2831 = vpack.c.b16 %v2731, %v2730
        %v2832 = vpack.c.b16 %v2733, %v2732
        %v2833 = vpack.c.b16 %v2735, %v2734
        %v2834 = vpack.c.b16 %v2737, %v2736
        %v2835 = vpack.c.b16 %v2739, %v2738
        %v2836 = vpack.c.b16 %v2741, %v2740
        %v2837 = vpack.c.b16 %v2743, %v2742
        %v2838 = vpack.c.b16 %v2745, %v2744
        %v2839 = vpack.c.b16 %v2747, %v2746
        %v2840 = vpack.c.b16 %v2749, %v2748
        %v2841 = vpack.c.b16 %v2751, %v2750
        %v2842 = vpack.c.b16 %v2753, %v2752
        %v2843 = vpack.c.b16 %v2755, %v2754
        %v2844 = vpack.c.b16 %v2757, %v2756
        %v2845 = vpack.c.b16 %v2759, %v2758
        %v2846 = vpack.c.b16 %v2761, %v2760
        %v2847 = vpack.c.b16 %v2763, %v2762
        %v2848 = vpack.c.b16 %v2765, %v2764
        %v2849 = vpack.c.b16 %v2767, %v2766
        %v2850 = vpack.c.b16 %v2769, %v2768
        %v2851 = vpack.c.b16 %v2771, %v2770
        %v2852 = vpack.c.b16 %v2773, %v2772
        %v2853 = vpack.c.b16 %v2775, %v2774
        %v2854 = vpack.c.b16 %v2777, %v2776
        %v2855 = vpack.c.b16 %v2779, %v2778
        %v2856 = vpack.c.b16 %v2781, %v2780
        %v2857 = vpack.c.b16 %v2783, %v2782
        %v2858 = vpack.c.b16 %v2785, %v2784
        %v2859 = vpack.c.b16 %v2787, %v2786
        %v2860 = vpack.c.b16 %v2789, %v2788
        %v2861 = vpack.c.b16 %v2791, %v2790
        %v2862 = vpack.c.b16 %v2793, %v2792
        %v2863 = vpack.c.b16 %v2795, %v2794
        %v2864 = vpack.c.b16 %v2797, %v2796
        %v2865 = vpack.c.b16 %v2799, %v2798
        %v2866 = vpack.c.b16 %v2801, %v2800
        %v2867 = vpack.c.b16 %v2803, %v2802
        %2932 = vmatprep.subr.bf16.mxu0 0
        %2933 = vmatpush1.bf16.msra.mxu0 %v2811
        %2934 = vmatprep.subr.bf16.mxu0 0
        %2935 = vmatpush1.bf16.msra.mxu0 %v2810
        %2936 = vmatprep.subr.bf16.mxu0 0
        %2937 = vmatpush1.bf16.msra.mxu0 %v2809
        %2938 = vmatprep.subr.bf16.mxu0 0
        %2939 = vmatpush1.bf16.msra.mxu0 %v2808
        %2940 = vmatprep.subr.bf16.mxu0 0
        %2941 = vmatpush1.bf16.msra.mxu0 %v2807
        %2942 = vmatprep.subr.bf16.mxu0 0
        %2943 = vmatpush1.bf16.msra.mxu0 %v2806
        %2944 = vmatprep.subr.bf16.mxu0 0
        %2945 = vmatpush1.bf16.msra.mxu0 %v2805
        %2946 = vmatprep.subr.bf16.mxu0 0
        %2947 = vmatpush1.bf16.msra.mxu0 %v2804
        %2948 = vmatprep.subr.bf16.mxu0 0
        %2949 = vmatpush2.bf16.msra.mxu0 %v2819
        %2950 = vmatprep.subr.bf16.mxu0 0
        %2951 = vmatpush2.bf16.msra.mxu0 %v2818
        %2952 = vmatprep.subr.bf16.mxu0 0
        %2953 = vmatpush2.bf16.msra.mxu0 %v2817
        %2954 = vmatprep.subr.bf16.mxu0 0
        %2955 = vmatpush2.bf16.msra.mxu0 %v2816
        %2956 = vmatprep.subr.bf16.mxu0 0
        %2957 = vmatpush2.bf16.msra.mxu0 %v2815
        %2958 = vmatprep.subr.bf16.mxu0 0
        %2959 = vmatpush2.bf16.msra.mxu0 %v2814
        %2960 = vmatprep.subr.bf16.mxu0 0
        %2961 = vmatpush2.bf16.msra.mxu0 %v2813
        %2962 = vmatprep.subr.bf16.mxu0 0
        %2963 = vmatpush2.bf16.msra.mxu0 %v2812
        %2964 = vmatprep.mubr.bf16.mxu0 %v2406
        %2965 = vmatmul.mubr.bf16.gmra.mxu0 %v2405
        %v2966 = vpop.f32.mrf.mxu0
        %v2967 = vadd.f32 %v2546, %v2966
        %v2968 = vpop.f32.mrf.mxu0
        %v2969 = vpop.f32.mrf.mxu0
        %v2970 = vadd.f32 %v2546, %v2969
        %v2971 = vpop.f32.mrf.mxu0
        %2972 = vdwg.mxu0
        %2973 = vmatprep.subr.bf16.mxu0 0
        %2974 = vmatpush1.bf16.msra.mxu0 %v2827
        %2975 = vmatprep.subr.bf16.mxu0 0
        %2976 = vmatpush1.bf16.msra.mxu0 %v2826
        %2977 = vmatprep.subr.bf16.mxu0 0
        %2978 = vmatpush1.bf16.msra.mxu0 %v2825
        %2979 = vmatprep.subr.bf16.mxu0 0
        %2980 = vmatpush1.bf16.msra.mxu0 %v2824
        %2981 = vmatprep.subr.bf16.mxu0 0
        %2982 = vmatpush1.bf16.msra.mxu0 %v2823
        %2983 = vmatprep.subr.bf16.mxu0 0
        %2984 = vmatpush1.bf16.msra.mxu0 %v2822
        %2985 = vmatprep.subr.bf16.mxu0 0
        %2986 = vmatpush1.bf16.msra.mxu0 %v2821
        %2987 = vmatprep.subr.bf16.mxu0 0
        %2988 = vmatpush1.bf16.msra.mxu0 %v2820
        %2989 = vmatprep.subr.bf16.mxu0 0
        %2990 = vmatpush2.bf16.msra.mxu0 %v2835
        %2991 = vmatprep.subr.bf16.mxu0 0
        %2992 = vmatpush2.bf16.msra.mxu0 %v2834
        %2993 = vmatprep.subr.bf16.mxu0 0
        %2994 = vmatpush2.bf16.msra.mxu0 %v2833
        %2995 = vmatprep.subr.bf16.mxu0 0
        %2996 = vmatpush2.bf16.msra.mxu0 %v2832
        %2997 = vmatprep.subr.bf16.mxu0 0
        %2998 = vmatpush2.bf16.msra.mxu0 %v2831
        %2999 = vmatprep.subr.bf16.mxu0 0
        %3000 = vmatpush2.bf16.msra.mxu0 %v2830
        %3001 = vmatprep.subr.bf16.mxu0 0
        %3002 = vmatpush2.bf16.msra.mxu0 %v2829
        %3003 = vmatprep.subr.bf16.mxu0 0
        %3004 = vmatpush2.bf16.msra.mxu0 %v2828
        %3005 = vmatprep.mubr.bf16.mxu0 %v2408
        %3006 = vmatmul.mubr.bf16.gmra.mxu0 %v2407
        %v3007 = vpop.f32.mrf.mxu0
        %v3008 = vadd.f32 %v2967, %v3007
        %v3009 = vpop.f32.mrf.mxu0
        %v3010 = vpop.f32.mrf.mxu0
        %v3011 = vadd.f32 %v2970, %v3010
        %v3012 = vpop.f32.mrf.mxu0
        %3013 = vdwg.mxu0
        %3014 = vmatprep.subr.bf16.mxu0 0
        %3015 = vmatpush1.bf16.msra.mxu0 %v2843
        %3016 = vmatprep.subr.bf16.mxu0 0
        %3017 = vmatpush1.bf16.msra.mxu0 %v2842
        %3018 = vmatprep.subr.bf16.mxu0 0
        %3019 = vmatpush1.bf16.msra.mxu0 %v2841
        %3020 = vmatprep.subr.bf16.mxu0 0
        %3021 = vmatpush1.bf16.msra.mxu0 %v2840
        %3022 = vmatprep.subr.bf16.mxu0 0
        %3023 = vmatpush1.bf16.msra.mxu0 %v2839
        %3024 = vmatprep.subr.bf16.mxu0 0
        %3025 = vmatpush1.bf16.msra.mxu0 %v2838
        %3026 = vmatprep.subr.bf16.mxu0 0
        %3027 = vmatpush1.bf16.msra.mxu0 %v2837
        %3028 = vmatprep.subr.bf16.mxu0 0
        %3029 = vmatpush1.bf16.msra.mxu0 %v2836
        %3030 = vmatprep.subr.bf16.mxu0 0
        %3031 = vmatpush2.bf16.msra.mxu0 %v2851
        %3032 = vmatprep.subr.bf16.mxu0 0
        %3033 = vmatpush2.bf16.msra.mxu0 %v2850
        %3034 = vmatprep.subr.bf16.mxu0 0
        %3035 = vmatpush2.bf16.msra.mxu0 %v2849
        %3036 = vmatprep.subr.bf16.mxu0 0
        %3037 = vmatpush2.bf16.msra.mxu0 %v2848
        %3038 = vmatprep.subr.bf16.mxu0 0
        %3039 = vmatpush2.bf16.msra.mxu0 %v2847
        %3040 = vmatprep.subr.bf16.mxu0 0
        %3041 = vmatpush2.bf16.msra.mxu0 %v2846
        %3042 = vmatprep.subr.bf16.mxu0 0
        %3043 = vmatpush2.bf16.msra.mxu0 %v2845
        %3044 = vmatprep.subr.bf16.mxu0 0
        %3045 = vmatpush2.bf16.msra.mxu0 %v2844
        %3046 = vmatprep.mubr.bf16.mxu0 %v2410
        %3047 = vmatmul.mubr.bf16.gmra.mxu0 %v2409
        %v3048 = vpop.f32.mrf.mxu0
        %v3049 = vadd.f32 %v3008, %v3048
        %v3050 = vpop.f32.mrf.mxu0
        %v3051 = vpop.f32.mrf.mxu0
        %v3052 = vadd.f32 %v3011, %v3051
        %v3053 = vpop.f32.mrf.mxu0
        %3054 = vdwg.mxu0
        %3055 = vmatprep.subr.bf16.mxu0 0
        %3056 = vmatpush1.bf16.msra.mxu0 %v2859
        %3057 = vmatprep.subr.bf16.mxu0 0
        %3058 = vmatpush1.bf16.msra.mxu0 %v2858
        %3059 = vmatprep.subr.bf16.mxu0 0
        %3060 = vmatpush1.bf16.msra.mxu0 %v2857
        %3061 = vmatprep.subr.bf16.mxu0 0
        %3062 = vmatpush1.bf16.msra.mxu0 %v2856
        %3063 = vmatprep.subr.bf16.mxu0 0
        %3064 = vmatpush1.bf16.msra.mxu0 %v2855
        %3065 = vmatprep.subr.bf16.mxu0 0
        %3066 = vmatpush1.bf16.msra.mxu0 %v2854
        %3067 = vmatprep.subr.bf16.mxu0 0
        %3068 = vmatpush1.bf16.msra.mxu0 %v2853
        %3069 = vmatprep.subr.bf16.mxu0 0
        %3070 = vmatpush1.bf16.msra.mxu0 %v2852
        %3071 = vmatprep.subr.bf16.mxu0 0
        %3072 = vmatpush2.bf16.msra.mxu0 %v2867
        %3073 = vmatprep.subr.bf16.mxu0 0
        %3074 = vmatpush2.bf16.msra.mxu0 %v2866
        %3075 = vmatprep.subr.bf16.mxu0 0
        %3076 = vmatpush2.bf16.msra.mxu0 %v2865
        %3077 = vmatprep.subr.bf16.mxu0 0
        %3078 = vmatpush2.bf16.msra.mxu0 %v2864
        %3079 = vmatprep.subr.bf16.mxu0 0
        %3080 = vmatpush2.bf16.msra.mxu0 %v2863
        %3081 = vmatprep.subr.bf16.mxu0 0
        %3082 = vmatpush2.bf16.msra.mxu0 %v2862
        %3083 = vmatprep.subr.bf16.mxu0 0
        %3084 = vmatpush2.bf16.msra.mxu0 %v2861
        %3085 = vmatprep.subr.bf16.mxu0 0
        %3086 = vmatpush2.bf16.msra.mxu0 %v2860
        %3087 = vmatprep.mubr.bf16.mxu0 %v2412
        %3088 = vmatmul.mubr.bf16.gmra.mxu0 %v2411
        %v3089 = vpop.f32.mrf.mxu0
        %v3090 = vadd.f32 %v3049, %v3089
        %v3091 = vpop.f32.mrf.mxu0
        %v3092 = vpop.f32.mrf.mxu0
        %v3093 = vadd.f32 %v3052, %v3092
        %v3094 = vpop.f32.mrf.mxu0
        %3095 = vdwg.mxu0
        %v3096 = vmax.f32 %v3090, 0.0
        %v3097 = vmax.f32 %v3093, 0.0
        %v3098 = vpack.c.bf16 %v3097, %v3096
        %v3099 = vld [vmem:[#allocation10] sm:$0xf]
        %v3100 = vld [vmem:[#allocation10 + $0x4] sm:$0xf]
        %v3101 = vld [vmem:[#allocation10 + $0x8] sm:$0xf]
        %v3102 = vld [vmem:[#allocation10 + $0xc] sm:$0xf]
        %v3103 = vld [vmem:[#allocation10 + $0x10] sm:$0xf]
        %v3104 = vld [vmem:[#allocation10 + $0x14] sm:$0xf]
        %v3105 = vld [vmem:[#allocation10 + $0x18] sm:$0xf]
        %v3106 = vld [vmem:[#allocation10 + $0x1c] sm:$0xf]
        %v3107 = vld [vmem:[#allocation10 + $0x20] sm:$0xf]
        %v3108 = vld [vmem:[#allocation10 + $0x24] sm:$0xf]
        %v3109 = vld [vmem:[#allocation10 + $0x28] sm:$0xf]
        %v3110 = vld [vmem:[#allocation10 + $0x2c] sm:$0xf]
        %v3111 = vld [vmem:[#allocation10 + $0x30] sm:$0xf]
        %v3112 = vld [vmem:[#allocation10 + $0x34] sm:$0xf]
        %v3113 = vld [vmem:[#allocation10 + $0x38] sm:$0xf]
        %v3114 = vld [vmem:[#allocation10 + $0x3c] sm:$0xf]
        %v3115 = vld [vmem:[%s6] sm:$0x1]
        %v3117 = vlaneseq
        %v3118 = vshrl.u32 %v3117, 7
        %v3119 = vsub.s32 0, %v3118
        %v3120 = vrot.slane %v3115, %v3119
        %v3138 = vunpack.c.l.b16 %v3099
        %v3139 = vunpack.c.l.b16 %v3100
        %v3140 = vunpack.c.l.b16 %v3101
        %v3141 = vunpack.c.l.b16 %v3102
        %v3142 = vunpack.c.l.b16 %v3103
        %v3143 = vunpack.c.l.b16 %v3104
        %v3144 = vunpack.c.l.b16 %v3105
        %v3145 = vunpack.c.l.b16 %v3106
        %v3146 = vunpack.c.l.b16 %v3107
        %v3147 = vunpack.c.l.b16 %v3108
        %v3148 = vunpack.c.l.b16 %v3109
        %v3149 = vunpack.c.l.b16 %v3110
        %v3150 = vunpack.c.l.b16 %v3111
        %v3151 = vunpack.c.l.b16 %v3112
        %v3152 = vunpack.c.l.b16 %v3113
        %v3153 = vunpack.c.l.b16 %v3114
        %v3154 = vpack.c.b16 %v3139, %v3138
        %v3155 = vpack.c.b16 %v3141, %v3140
        %v3156 = vpack.c.b16 %v3143, %v3142
        %v3157 = vpack.c.b16 %v3145, %v3144
        %v3158 = vpack.c.b16 %v3147, %v3146
        %v3159 = vpack.c.b16 %v3149, %v3148
        %v3160 = vpack.c.b16 %v3151, %v3150
        %v3161 = vpack.c.b16 %v3153, %v3152
        %3170 = vmatprep.subr.bf16.mxu0 0
        %3171 = vmatpush1.bf16.msra.mxu0 %v3161
        %3172 = vmatprep.subr.bf16.mxu0 0
        %3173 = vmatpush1.bf16.msra.mxu0 %v3160
        %3174 = vmatprep.subr.bf16.mxu0 0
        %3175 = vmatpush1.bf16.msra.mxu0 %v3159
        %3176 = vmatprep.subr.bf16.mxu0 0
        %3177 = vmatpush1.bf16.msra.mxu0 %v3158
        %3178 = vmatprep.subr.bf16.mxu0 0
        %3179 = vmatpush1.bf16.msra.mxu0 %v3157
        %3180 = vmatprep.subr.bf16.mxu0 0
        %3181 = vmatpush1.bf16.msra.mxu0 %v3156
        %3182 = vmatprep.subr.bf16.mxu0 0
        %3183 = vmatpush1.bf16.msra.mxu0 %v3155
        %3184 = vmatprep.subr.bf16.mxu0 0
        %3185 = vmatpush1.bf16.msra.mxu0 %v3154
        %3186 = vmatprep.subr.bf16.mxu0 0
        %3187 = vmatpush2.bf16.msra.mxu0 0
        %3188 = vmatprep.subr.bf16.mxu0 0
        %3189 = vmatpush2.bf16.msra.mxu0 0
        %3190 = vmatprep.subr.bf16.mxu0 0
        %3191 = vmatpush2.bf16.msra.mxu0 0
        %3192 = vmatprep.subr.bf16.mxu0 0
        %3193 = vmatpush2.bf16.msra.mxu0 0
        %3194 = vmatprep.subr.bf16.mxu0 0
        %3195 = vmatpush2.bf16.msra.mxu0 0
        %3196 = vmatprep.subr.bf16.mxu0 0
        %3197 = vmatpush2.bf16.msra.mxu0 0
        %3198 = vmatprep.subr.bf16.mxu0 0
        %3199 = vmatpush2.bf16.msra.mxu0 0
        %3200 = vmatprep.subr.bf16.mxu0 0
        %3201 = vmatpush2.bf16.msra.mxu0 0
        %3202 = vmatprep.mubr.bf16.mxu0 0
        %3203 = vmatmul.mubr.bf16.gmra.mxu0 %v3098
        %v3204 = vpop.f32.mrf.mxu0
        %v3205 = vadd.f32 %v3120, %v3204
        %v3206 = vpop.f32.mrf.mxu0
        %v3207 = vpop.f32.mrf.mxu0
        %v3208 = vadd.f32 %v3120, %v3207
        %v3209 = vpop.f32.mrf.mxu0
        %3210 = vdwg.mxu0
        %v3211 = vmax.f32 %v3205, 0.0
        %v3212 = vmax.f32 %v3208, 0.0
        %v3213 = vpack.c.bf16 %v3212, %v3211
        %v3214 = vld [vmem:[#allocation11] sm:$0xf]
        %v3215 = vld [vmem:[#allocation11 + $0x4] sm:$0xf]
        %v3216 = vld [vmem:[#allocation11 + $0x8] sm:$0xf]
        %v3217 = vld [vmem:[#allocation11 + $0xc] sm:$0xf]
        %v3218 = vld [vmem:[#allocation11 + $0x10] sm:$0xf]
        %v3219 = vld [vmem:[#allocation11 + $0x14] sm:$0xf]
        %v3220 = vld [vmem:[#allocation11 + $0x18] sm:$0xf]
        %v3221 = vld [vmem:[#allocation11 + $0x1c] sm:$0xf]
        %v3222 = vld [vmem:[#allocation11 + $0x20] sm:$0xf]
        %v3223 = vld [vmem:[#allocation11 + $0x24] sm:$0xf]
        %v3224 = vld [vmem:[#allocation11 + $0x28] sm:$0xf]
        %v3225 = vld [vmem:[#allocation11 + $0x2c] sm:$0xf]
        %v3226 = vld [vmem:[#allocation11 + $0x30] sm:$0xf]
        %v3227 = vld [vmem:[#allocation11 + $0x34] sm:$0xf]
        %v3228 = vld [vmem:[#allocation11 + $0x38] sm:$0xf]
        %v3229 = vld [vmem:[#allocation11 + $0x3c] sm:$0xf]
        %v3230 = vld [vmem:[%s8] sm:$0x1]
        %v3232 = vlaneseq
        %v3233 = vshrl.u32 %v3232, 7
        %v3234 = vsub.s32 0, %v3233
        %v3235 = vrot.slane %v3230, %v3234
        %v3253 = vunpack.c.l.b16 %v3214
        %v3254 = vunpack.c.l.b16 %v3215
        %v3255 = vunpack.c.l.b16 %v3216
        %v3256 = vunpack.c.l.b16 %v3217
        %v3257 = vunpack.c.l.b16 %v3218
        %v3258 = vunpack.c.l.b16 %v3219
        %v3259 = vunpack.c.l.b16 %v3220
        %v3260 = vunpack.c.l.b16 %v3221
        %v3261 = vunpack.c.l.b16 %v3222
        %v3262 = vunpack.c.l.b16 %v3223
        %v3263 = vunpack.c.l.b16 %v3224
        %v3264 = vunpack.c.l.b16 %v3225
        %v3265 = vunpack.c.l.b16 %v3226
        %v3266 = vunpack.c.l.b16 %v3227
        %v3267 = vunpack.c.l.b16 %v3228
        %v3268 = vunpack.c.l.b16 %v3229
        %v3269 = vpack.c.b16 %v3254, %v3253
        %v3270 = vpack.c.b16 %v3256, %v3255
        %v3271 = vpack.c.b16 %v3258, %v3257
        %v3272 = vpack.c.b16 %v3260, %v3259
        %v3273 = vpack.c.b16 %v3262, %v3261
        %v3274 = vpack.c.b16 %v3264, %v3263
        %v3275 = vpack.c.b16 %v3266, %v3265
        %v3276 = vpack.c.b16 %v3268, %v3267
        %3285 = vmatprep.subr.bf16.mxu0 0
        %3286 = vmatpush1.bf16.msra.mxu0 %v3276
        %3287 = vmatprep.subr.bf16.mxu0 0
        %3288 = vmatpush1.bf16.msra.mxu0 %v3275
        %3289 = vmatprep.subr.bf16.mxu0 0
        %3290 = vmatpush1.bf16.msra.mxu0 %v3274
        %3291 = vmatprep.subr.bf16.mxu0 0
        %3292 = vmatpush1.bf16.msra.mxu0 %v3273
        %3293 = vmatprep.subr.bf16.mxu0 0
        %3294 = vmatpush1.bf16.msra.mxu0 %v3272
        %3295 = vmatprep.subr.bf16.mxu0 0
        %3296 = vmatpush1.bf16.msra.mxu0 %v3271
        %3297 = vmatprep.subr.bf16.mxu0 0
        %3298 = vmatpush1.bf16.msra.mxu0 %v3270
        %3299 = vmatprep.subr.bf16.mxu0 0
        %3300 = vmatpush1.bf16.msra.mxu0 %v3269
        %3301 = vmatprep.subr.bf16.mxu0 0
        %3302 = vmatpush2.bf16.msra.mxu0 0
        %3303 = vmatprep.subr.bf16.mxu0 0
        %3304 = vmatpush2.bf16.msra.mxu0 0
        %3305 = vmatprep.subr.bf16.mxu0 0
        %3306 = vmatpush2.bf16.msra.mxu0 0
        %3307 = vmatprep.subr.bf16.mxu0 0
        %3308 = vmatpush2.bf16.msra.mxu0 0
        %3309 = vmatprep.subr.bf16.mxu0 0
        %3310 = vmatpush2.bf16.msra.mxu0 0
        %3311 = vmatprep.subr.bf16.mxu0 0
        %3312 = vmatpush2.bf16.msra.mxu0 0
        %3313 = vmatprep.subr.bf16.mxu0 0
        %3314 = vmatpush2.bf16.msra.mxu0 0
        %3315 = vmatprep.subr.bf16.mxu0 0
        %3316 = vmatpush2.bf16.msra.mxu0 0
        %3317 = vmatprep.mubr.bf16.mxu0 0
        %3318 = vmatmul.mubr.bf16.gmra.mxu0 %v3213
        %v3319 = vpop.f32.mrf.mxu0
        %v3320 = vadd.f32 %v3235, %v3319
        %v3321 = vpop.f32.mrf.mxu0
        %v3322 = vpop.f32.mrf.mxu0
        %v3323 = vadd.f32 %v3235, %v3322
        %v3324 = vpop.f32.mrf.mxu0
        %3325 = vdwg.mxu0
        %3326 = vst [vmem:[%s339] sm:$0xff] %v3320
        %3327 = vst [vmem:[%s339 + $0x8] sm:$0xff] %v3323
        %s3328 = sand.u32 %s202, 1
        %s3329 = scalar_lea.sflag [#allocation7], %s3328
        %s3330 = sand.u32 %s202, 1
        %s3331 = smul.addr %s3330, 16
        %s3332 = scalar_lea.vmem [#allocation13], %s3331
        // Predicated region
        $region65: #{tpu_custom_call.1} parent=47 // pred_check
          %p3333 = pneg %p212
        $region66: #{tpu_custom_call.1} parent=47 // pred_check_branch
          %3335 = sbr.rel (%p3333) target = $region68
        $region67: #{tpu_custom_call.1} parent=47 // pred_region
          %s3336 = smul.u32 2, %s33
          %s3338 = ssub.s32 256, 256
          %3339 = vsyncadd %s3329, %s3338
          %s3340 = sadd.s32 %s32, %s3336
          %s3341 = smul.addr %s3340, 128
          %s3342 = scalar_lea.hbm %s9, %s3341
          %s3343 = sshll.u32 %s3332, 4
          %s3344 = int_to_ptr.vmem [resolvable:$true] %s3343
          %3349 = dma.vmem_to_hbm [thread:$0]  %s3344, 256, %s3342, %s3329, 128, 128, 8
        $region68: #{tpu_custom_call.1} parent=47 // pred_fallthru
          _
      $region48: #{tpu_custom_call.1} parent=5 // pred_fallthru
        _
      %p3350 = scmp.le.s32.totalorder 2, %s23
      // Predicated region
      $region69: #{tpu_custom_call.1} parent=5 // pred_check
        %p3351 = pneg %p3350
      $region70: #{tpu_custom_call.1} parent=5 // pred_check_branch
        %3353 = sbr.rel (%p3351) target = $region72
      $region71: #{tpu_custom_call.1} parent=5 // pred_region
        %s3354 = ssub.s32 %s23, 2
        // Predicated region
        $region73: #{tpu_custom_call.1} parent=71 // pred_check
          %p3355 = pneg %p218
        $region74: #{tpu_custom_call.1} parent=71 // pred_check_branch
          %3357 = sbr.rel (%p3355) target = $region76
        $region75: #{tpu_custom_call.1} parent=71 // pred_region
          %s3358 = sand.u32 %s203, 1
          %s3359 = scalar_lea.sflag [#allocation7], %s3358
          %s3360 = sand.u32 %s203, 1
          %s3361 = smul.addr %s3360, 16
          %s3362 = scalar_lea.vmem [#allocation13], %s3361
          %3363 = dma.done %s3359, 256
        $region76: #{tpu_custom_call.1} parent=71 // pred_fallthru
          _
      $region72: #{tpu_custom_call.1} parent=5 // pred_fallthru
        _
    $region6: #{tpu_custom_call.1} parent=1 // loop_footer
      %s27 = sadd.s32 1, %s23
    $region7: #{tpu_custom_call.1} parent=1 // loop_footer_branch
      %22 = sbr.rel target = $region3
    $region8: #{tpu_custom_call.1} parent=1 // loop_exit
      _
    %3364 = vsyncpa [#allocation6], 1
    %s3365 = scalar_lea.sflag [#allocation6], 1
    %3366 = vsyncpa %s3365, 1
    %3367 = vsyncpa [#allocation9], 1
    %3368 = vsyncpa [#allocation12], 1
    %3369 = vsyncpa [#allocation7], 1
    %s3370 = scalar_lea.sflag [#allocation7], 1
    %3371 = vsyncpa %s3370, 1

</llo_original>
